<compile_context>
chip_gen: v6e
topology: v6e:2x2x1
jax: 0.10.0
libtpu: 0.0.40
codegen_flags: <defaults>
</compile_context>

<pallas_src>
import functools
import math

import jax
import jax.numpy as jnp
from jax import lax
from jax.experimental import pallas as pl
from jax.experimental.pallas import tpu as pltpu


# ----------------------------------------------------------------------------
# Fused Bottle2neck kernel (one grid step == one image, channels-first layout)
# ----------------------------------------------------------------------------
def _bottle2neck_kernel(x_ref, mask_ref, w1_ref, b1_ref, w2_ref, b2_ref,
                        w3_ref, b3_ref, out_ref,
                        *, H, W, width, scale, nums, out_c):
    f32, bf16 = jnp.float32, jnp.bfloat16
    HW = H * W
    PAD = W + 1                               # covers the largest tap offset

    x_f32 = x_ref[0]                          # (Cin, HW) f32 -- also residual
    x_bf = x_f32.astype(bf16)

    not_left = mask_ref[0]                    # (1, HW) bf16: source col w-1 ok
    not_right = mask_ref[1]                   # (1, HW) bf16: source col w+1 ok

    # conv1 + bn1 (folded) + ReLU for ALL split groups in one MXU matmul.
    spx_all = jnp.dot(w1_ref[...], x_bf, preferred_element_type=f32)
    spx_all = jnp.maximum(spx_all + b1_ref[...], 0.0)        # (mid_c, HW) f32

    zpad = jnp.zeros((width, PAD), bf16)      # hoisted: reused by every group
    acc3 = jnp.zeros((out_c, HW), f32)        # conv3 accumulator

    sp = None
    for i in range(nums):
        spx_i = spx_all[i * width:(i + 1) * width, :]
        sp_in = spx_i if i == 0 else sp + spx_i               # Res2Net hierarchy
        sp_bf = sp_in.astype(bf16)

        # 3x3 / stride-1 / pad-1 conv as 9 shifted bf16 MXU matmul-accumulates.
        # Lane-padded value handles row over/underflow with zeros; left/right
        # image borders are masked.
        sp_pad = jnp.concatenate([zpad, sp_bf, zpad], axis=1)  # (width, HW+2PAD)
        acc = jnp.zeros((width, HW), f32)
        for dy in range(3):
            for dx in range(3):
                off = (dy - 1) * W + (dx - 1)
                win = sp_bf if off == 0 else sp_pad[:, PAD + off:PAD + off + HW]
                if dx == 0:
                    win = win * not_left
                elif dx == 2:
                    win = win * not_right
                acc = acc + jnp.dot(w2_ref[i * 9 + dy * 3 + dx], win,
                                    preferred_element_type=f32)
        sp = jnp.maximum(acc + b2_ref[i], 0.0)                # bn bias + ReLU

        # conv3 contribution of group i (== concat-then-matmul).
        acc3 = acc3 + jnp.dot(w3_ref[i], sp.astype(bf16),
                              preferred_element_type=f32)

    if scale != 1:
        # stype='normal': last split bypasses the 3x3 conv.
        spx_last = spx_all[(scale - 1) * width:scale * width, :]
        acc3 = acc3 + jnp.dot(w3_ref[scale - 1], spx_last.astype(bf16),
                              preferred_element_type=f32)

    out = acc3 + b3_ref[...] + x_f32                          # bn3 bias + residual
    out_ref[0] = jnp.maximum(out, 0.0).astype(out_ref.dtype)


def bottle2neck_forward(x_nchw, params):
    N, Cin, H, W = x_nchw.shape
    width, scale, nums = params["width"], params["scale"], params["nums"]
    out_c = params["b3"].shape[0]
    HW = H * W

    # NCHW -> (N, C, H*W): free reshape (no transpose); HW is the lane dim.
    x_rows = x_nchw.reshape(N, Cin, HW)

    # {0,1} bf16 masks for the left/right image borders of the 3x3 conv taps.
    wcol = jnp.arange(HW, dtype=jnp.int32) % W
    border_mask = jnp.stack([(wcol > 0), (wcol < W - 1)]
                            ).astype(jnp.bfloat16)[:, None, :]       # (2,1,HW)

    kernel = functools.partial(_bottle2neck_kernel, H=H, W=W, width=width,
                               scale=scale, nums=nums, out_c=out_c)

    def resident(a):  # weights/biases/masks: fetched once, VMEM-resident
        nd = a.ndim
        return pl.BlockSpec(a.shape, lambda n: (0,) * nd)

    y = pl.pallas_call(
        kernel,
        out_shape=jax.ShapeDtypeStruct((N, out_c, HW), jnp.float32),
        grid=(N,),
        in_specs=[
            pl.BlockSpec((1, Cin, HW), lambda n: (n, 0, 0)),   # streamed image
            resident(border_mask),
            resident(params["w1"]),
            resident(params["b1"]),
            resident(params["w2"]),
            resident(params["b2"]),
            resident(params["w3"]),
            resident(params["b3"]),
        ],
        out_specs=pl.BlockSpec((1, out_c, HW), lambda n: (n, 0, 0)),
        compiler_params=pltpu.CompilerParams(
            dimension_semantics=("parallel",)),
    )(x_rows, border_mask, params["w1"], params["b1"], params["w2"],
      params["b2"], params["w3"], params["b3"])

    # TODO(synk): for large feature maps (one image's activations > VMEM) add a
    # second grid axis over row slabs with a 1-row halo recompute of conv1.
    return y.reshape(N, out_c, H, W)   # free reshape back to NCHW


# ----------------------------------------------------------------------------
# Parameter init (deterministic, synthetic) + eval-mode BN folding (eps=1e-5)
# ----------------------------------------------------------------------------
def _fold_bn(gamma, beta, mean, var, eps=1e-5):
    s = gamma / jnp.sqrt(var + eps)
    return s, beta - mean * s


def init_params(key, inplanes, planes, baseWidth=26, scale=4):
    width = int(math.floor(planes * (baseWidth / 64.0)))
    nums = 1 if scale == 1 else scale - 1
    mid_c = width * scale
    out_c = planes * 4
    f32, bf16 = jnp.float32, jnp.bfloat16

    ks = jax.random.split(key, 4 + 2 * nums)

    def bn_params(k, c):
        k1, k2, k3, k4 = jax.random.split(k, 4)
        gamma = 0.5 + jax.random.uniform(k1, (c,), f32)
        beta = 0.1 * jax.random.normal(k2, (c,), f32)
        mean = 0.1 * jax.random.normal(k3, (c,), f32)
        var = 0.5 + jax.random.uniform(k4, (c,), f32)
        return _fold_bn(gamma, beta, mean, var)

    params = {"width": width, "scale": scale, "nums": nums}

    # conv1: torch (mid_c, inplanes, 1, 1) -> (mid_c, Cin), BN scale folded.
    w1_t = 0.1 * jax.random.normal(ks[0], (mid_c, inplanes), f32)
    s1, b1 = bn_params(ks[1], mid_c)
    params["w1"] = (w1_t * s1[:, None]).astype(bf16)            # (mid_c, Cin)
    params["b1"] = b1.reshape(mid_c, 1)

    # 3x3 convs: torch (width, width, 3, 3) -> per-tap (out, in), scale folded.
    w2_list, b2_list = [], []
    for i in range(nums):
        wt = 0.1 * jax.random.normal(ks[2 + 2 * i], (width, width, 3, 3), f32)
        s2, b2 = bn_params(ks[3 + 2 * i], width)
        wf = wt * s2[:, None, None, None]
        w2_list.append(jnp.transpose(wf, (2, 3, 0, 1)).reshape(9, width, width))
        b2_list.append(b2.reshape(width, 1))
    params["w2"] = jnp.concatenate(w2_list, axis=0).astype(bf16)  # (nums*9,w,w)
    params["b2"] = jnp.stack(b2_list)                             # (nums, w, 1)

    # conv3: torch (out_c, mid_c, 1, 1) -> (out_c, mid_c), split by input group.
    w3_t = 0.1 * jax.random.normal(ks[2 + 2 * nums], (out_c, mid_c), f32)
    s3, b3 = bn_params(ks[3 + 2 * nums], out_c)
    w3f = w3_t * s3[:, None]
    params["w3"] = (w3f.reshape(out_c, scale, width)
                    .transpose(1, 0, 2).astype(bf16))             # (scale,oc,w)
    params["b3"] = b3.reshape(out_c, 1)
    return params


# ----------------------------------------------------------------------------
# Pure-JAX reference (same folded bf16 weights, 3x3 via lax.conv) for checking
# ----------------------------------------------------------------------------
def reference_forward(x_nchw, params):
    N, Cin, H, W = x_nchw.shape
    width, scale, nums = params["width"], params["scale"], params["nums"]
    out_c = params["b3"].shape[0]
    f32, bf16 = jnp.float32, jnp.bfloat16

    x = x_nchw.reshape(N, Cin, H * W)
    x_bf = x.astype(bf16)

    spx_all = jnp.einsum("oc,ncp->nop", params["w1"], x_bf,
                         preferred_element_type=f32)
    spx_all = jnp.maximum(spx_all + params["b1"][None], 0.0)   # (N, mid_c, HW)

    acc3 = jnp.zeros((N, out_c, H * W), f32)
    sp = None
    for i in range(nums):
        spx_i = spx_all[:, i * width:(i + 1) * width, :]
        sp_in = spx_i if i == 0 else sp + spx_i
        img = sp_in.reshape(N, width, H, W).astype(bf16)
        k = (params["w2"][i * 9:(i + 1) * 9]               # (9, out, in)
             .reshape(3, 3, width, width)
             .transpose(2, 3, 0, 1))                        # OIHW
        conv = lax.conv_general_dilated(
            img, k, window_strides=(1, 1), padding="SAME",
            dimension_numbers=("NCHW", "OIHW", "NCHW"),
            preferred_element_type=f32)
        sp = jnp.maximum(conv.reshape(N, width, H * W) + params["b2"][i][None],
                         0.0)
        acc3 = acc3 + jnp.einsum("ow,nwp->nop", params["w3"][i],
                                 sp.astype(bf16), preferred_element_type=f32)
    if scale != 1:
        spx_last = spx_all[:, (scale - 1) * width:scale * width, :]
        acc3 = acc3 + jnp.einsum("ow,nwp->nop", params["w3"][scale - 1],
                                 spx_last.astype(bf16),
                                 preferred_element_type=f32)
    out = jnp.maximum(acc3 + params["b3"][None] + x, 0.0)
    return out.reshape(N, out_c, H, W)


if __name__ == "__main__":
    key = jax.random.PRNGKey(0)
    k_x, k_p = jax.random.split(key)

    # planes=16 -> expansion*planes = 64 = inplanes, so downsample=None and the
    # identity residual is valid; baseWidth=26, scale=4 -> width=6.
    inplanes, planes = 64, 16
    N, H, W = 2, 16, 16

    x = jax.random.normal(k_x, (N, inplanes, H, W), dtype=jnp.float32)
    params = init_params(k_p, inplanes, planes, baseWidth=26, scale=4)

    y = jax.block_until_ready(bottle2neck_forward(x, params))
    y_ref = reference_forward(x, params)

    assert y.shape == (N, inplanes, H, W)
    assert jnp.allclose(y, y_ref, atol=2e-2, rtol=2e-2), \
        float(jnp.max(jnp.abs(y - y_ref)))

    print("KERNEL_OK")
</pallas_src>

<mosaic_0001>
module attributes {stable_mosaic.version = 11 : i64} {
  func.func @_bottle2neck_kernel(%arg0: i32, %arg1: memref<1x64x256xf32, #tpu.memory_space<vmem>>, %arg2: memref<2x1x256xbf16, #tpu.memory_space<vmem>>, %arg3: memref<24x64xbf16, #tpu.memory_space<vmem>>, %arg4: memref<24x1xf32, #tpu.memory_space<vmem>>, %arg5: memref<27x6x6xbf16, #tpu.memory_space<vmem>>, %arg6: memref<3x6x1xf32, #tpu.memory_space<vmem>>, %arg7: memref<4x64x6xbf16, #tpu.memory_space<vmem>>, %arg8: memref<64x1xf32, #tpu.memory_space<vmem>>, %arg9: memref<1x64x256xf32, #tpu.memory_space<vmem>>) attributes {dimension_semantics = [#tpu.dimension_semantics<parallel>], iteration_bounds = array<i64: 2>, scalar_prefetch = 0 : i64, scratch_operands = 0 : i64, tpu.core_type = #tpu.core_type<tc>, window_params = [{transform_indices = @transform_0, window_bounds = array<i64: 1, 64, 256>}, {pipeline_mode = #tpu.pipeline_mode<synchronous>, transform_indices = @transform_1, window_bounds = array<i64: 2, 1, 256>}, {pipeline_mode = #tpu.pipeline_mode<synchronous>, transform_indices = @transform_2, window_bounds = array<i64: 24, 64>}, {pipeline_mode = #tpu.pipeline_mode<synchronous>, transform_indices = @transform_3, window_bounds = array<i64: 24, 1>}, {pipeline_mode = #tpu.pipeline_mode<synchronous>, transform_indices = @transform_4, window_bounds = array<i64: 27, 6, 6>}, {pipeline_mode = #tpu.pipeline_mode<synchronous>, transform_indices = @transform_5, window_bounds = array<i64: 3, 6, 1>}, {pipeline_mode = #tpu.pipeline_mode<synchronous>, transform_indices = @transform_6, window_bounds = array<i64: 4, 64, 6>}, {pipeline_mode = #tpu.pipeline_mode<synchronous>, transform_indices = @transform_7, window_bounds = array<i64: 64, 1>}, {transform_indices = @transform_8, window_bounds = array<i64: 1, 64, 256>}]} {
    %c0 = arith.constant 0 : index
    %c0_0 = arith.constant 0 : index
    %c0_1 = arith.constant 0 : index
    %0 = vector.load %arg1[%c0, %c0_0, %c0_1] : memref<1x64x256xf32, #tpu.memory_space<vmem>>, vector<1x64x256xf32>
    %1 = vector.shape_cast %0 : vector<1x64x256xf32> to vector<64x256xf32>
    %2 = arith.truncf %1 : vector<64x256xf32> to vector<64x256xbf16>
    %c0_2 = arith.constant 0 : index
    %c0_3 = arith.constant 0 : index
    %c0_4 = arith.constant 0 : index
    %3 = vector.load %arg2[%c0_2, %c0_3, %c0_4] : memref<2x1x256xbf16, #tpu.memory_space<vmem>>, vector<1x1x256xbf16>
    %4 = vector.shape_cast %3 : vector<1x1x256xbf16> to vector<1x256xbf16>
    %c1 = arith.constant 1 : index
    %c0_5 = arith.constant 0 : index
    %c0_6 = arith.constant 0 : index
    %5 = vector.load %arg2[%c1, %c0_5, %c0_6] : memref<2x1x256xbf16, #tpu.memory_space<vmem>>, vector<1x1x256xbf16>
    %6 = vector.shape_cast %5 : vector<1x1x256xbf16> to vector<1x256xbf16>
    %c0_7 = arith.constant 0 : index
    %c0_8 = arith.constant 0 : index
    %7 = vector.load %arg3[%c0_7, %c0_8] : memref<24x64xbf16, #tpu.memory_space<vmem>>, vector<24x64xbf16>
    %cst = arith.constant dense<0.000000e+00> : vector<24x256xf32>
    %8 = tpu.matmul %7, %2, %cst {dimension_numbers = #tpu.dot_dimension_numbers<[1], [0], [0], [1], [0, 0, 1, 1], [], []>} : vector<24x64xbf16>, vector<64x256xbf16>, vector<24x256xf32> -> vector<24x256xf32>
    %c0_9 = arith.constant 0 : index
    %c0_10 = arith.constant 0 : index
    %9 = vector.load %arg4[%c0_9, %c0_10] : memref<24x1xf32, #tpu.memory_space<vmem>>, vector<24x1xf32>
    %10 = vector.broadcast %9 : vector<24x1xf32> to vector<24x256xf32>
    %11 = arith.addf %8, %10 : vector<24x256xf32>
    %cst_11 = arith.constant 0.000000e+00 : f32
    %12 = vector.broadcast %cst_11 : f32 to vector<24x256xf32>
    %13 = arith.maximumf %11, %12 : vector<24x256xf32>
    %cst_12 = arith.constant 0.000000e+00 : bf16
    %14 = vector.broadcast %cst_12 : bf16 to vector<6x17xbf16>
    %cst_13 = arith.constant 0.000000e+00 : f32
    %15 = vector.broadcast %cst_13 : f32 to vector<64x256xf32>
    %16 = vector.extract_strided_slice %13 {offsets = [0, 0], sizes = [6, 256], strides = [1, 1]} : vector<24x256xf32> to vector<6x256xf32>
    %17 = arith.truncf %16 : vector<6x256xf32> to vector<6x256xbf16>
    %18 = tpu.concatenate %14, %17, %14 in 1 : vector<6x17xbf16>, vector<6x256xbf16>, vector<6x17xbf16> -> vector<6x290xbf16>
    %cst_14 = arith.constant 0.000000e+00 : f32
    %19 = vector.broadcast %cst_14 : f32 to vector<6x256xf32>
    %20 = vector.extract_strided_slice %18 {offsets = [0, 0], sizes = [6, 256], strides = [1, 1]} : vector<6x290xbf16> to vector<6x256xbf16>
    %21 = vector.broadcast %4 : vector<1x256xbf16> to vector<6x256xbf16>
    %22 = arith.mulf %20, %21 : vector<6x256xbf16>
    %c0_15 = arith.constant 0 : index
    %c0_16 = arith.constant 0 : index
    %c0_17 = arith.constant 0 : index
    %23 = vector.load %arg5[%c0_15, %c0_16, %c0_17] : memref<27x6x6xbf16, #tpu.memory_space<vmem>>, vector<1x6x6xbf16>
    %24 = vector.shape_cast %23 : vector<1x6x6xbf16> to vector<6x6xbf16>
    %cst_18 = arith.constant dense<0.000000e+00> : vector<6x256xf32>
    %25 = tpu.matmul %24, %22, %cst_18 {dimension_numbers = #tpu.dot_dimension_numbers<[1], [0], [0], [1], [0, 0, 1, 1], [], []>} : vector<6x6xbf16>, vector<6x256xbf16>, vector<6x256xf32> -> vector<6x256xf32>
    %26 = arith.addf %19, %25 : vector<6x256xf32>
    %27 = vector.extract_strided_slice %18 {offsets = [0, 1], sizes = [6, 256], strides = [1, 1]} : vector<6x290xbf16> to vector<6x256xbf16>
    %c1_19 = arith.constant 1 : index
    %c0_20 = arith.constant 0 : index
    %c0_21 = arith.constant 0 : index
    %28 = vector.load %arg5[%c1_19, %c0_20, %c0_21] : memref<27x6x6xbf16, #tpu.memory_space<vmem>>, vector<1x6x6xbf16>
    %29 = vector.shape_cast %28 : vector<1x6x6xbf16> to vector<6x6xbf16>
    %cst_22 = arith.constant dense<0.000000e+00> : vector<6x256xf32>
    %30 = tpu.matmul %29, %27, %cst_22 {dimension_numbers = #tpu.dot_dimension_numbers<[1], [0], [0], [1], [0, 0, 1, 1], [], []>} : vector<6x6xbf16>, vector<6x256xbf16>, vector<6x256xf32> -> vector<6x256xf32>
    %31 = arith.addf %26, %30 : vector<6x256xf32>
    %32 = vector.extract_strided_slice %18 {offsets = [0, 2], sizes = [6, 256], strides = [1, 1]} : vector<6x290xbf16> to vector<6x256xbf16>
    %33 = vector.broadcast %6 : vector<1x256xbf16> to vector<6x256xbf16>
    %34 = arith.mulf %32, %33 : vector<6x256xbf16>
    %c2 = arith.constant 2 : index
    %c0_23 = arith.constant 0 : index
    %c0_24 = arith.constant 0 : index
    %35 = vector.load %arg5[%c2, %c0_23, %c0_24] : memref<27x6x6xbf16, #tpu.memory_space<vmem>>, vector<1x6x6xbf16>
    %36 = vector.shape_cast %35 : vector<1x6x6xbf16> to vector<6x6xbf16>
    %cst_25 = arith.constant dense<0.000000e+00> : vector<6x256xf32>
    %37 = tpu.matmul %36, %34, %cst_25 {dimension_numbers = #tpu.dot_dimension_numbers<[1], [0], [0], [1], [0, 0, 1, 1], [], []>} : vector<6x6xbf16>, vector<6x256xbf16>, vector<6x256xf32> -> vector<6x256xf32>
    %38 = arith.addf %31, %37 : vector<6x256xf32>
    %39 = vector.extract_strided_slice %18 {offsets = [0, 16], sizes = [6, 256], strides = [1, 1]} : vector<6x290xbf16> to vector<6x256xbf16>
    %40 = vector.broadcast %4 : vector<1x256xbf16> to vector<6x256xbf16>
    %41 = arith.mulf %39, %40 : vector<6x256xbf16>
    %c3 = arith.constant 3 : index
    %c0_26 = arith.constant 0 : index
    %c0_27 = arith.constant 0 : index
    %42 = vector.load %arg5[%c3, %c0_26, %c0_27] : memref<27x6x6xbf16, #tpu.memory_space<vmem>>, vector<1x6x6xbf16>
    %43 = vector.shape_cast %42 : vector<1x6x6xbf16> to vector<6x6xbf16>
    %cst_28 = arith.constant dense<0.000000e+00> : vector<6x256xf32>
    %44 = tpu.matmul %43, %41, %cst_28 {dimension_numbers = #tpu.dot_dimension_numbers<[1], [0], [0], [1], [0, 0, 1, 1], [], []>} : vector<6x6xbf16>, vector<6x256xbf16>, vector<6x256xf32> -> vector<6x256xf32>
    %45 = arith.addf %38, %44 : vector<6x256xf32>
    %c4 = arith.constant 4 : index
    %c0_29 = arith.constant 0 : index
    %c0_30 = arith.constant 0 : index
    %46 = vector.load %arg5[%c4, %c0_29, %c0_30] : memref<27x6x6xbf16, #tpu.memory_space<vmem>>, vector<1x6x6xbf16>
    %47 = vector.shape_cast %46 : vector<1x6x6xbf16> to vector<6x6xbf16>
    %cst_31 = arith.constant dense<0.000000e+00> : vector<6x256xf32>
    %48 = tpu.matmul %47, %17, %cst_31 {dimension_numbers = #tpu.dot_dimension_numbers<[1], [0], [0], [1], [0, 0, 1, 1], [], []>} : vector<6x6xbf16>, vector<6x256xbf16>, vector<6x256xf32> -> vector<6x256xf32>
    %49 = arith.addf %45, %48 : vector<6x256xf32>
    %50 = vector.extract_strided_slice %18 {offsets = [0, 18], sizes = [6, 256], strides = [1, 1]} : vector<6x290xbf16> to vector<6x256xbf16>
    %51 = vector.broadcast %6 : vector<1x256xbf16> to vector<6x256xbf16>
    %52 = arith.mulf %50, %51 : vector<6x256xbf16>
    %c5 = arith.constant 5 : index
    %c0_32 = arith.constant 0 : index
    %c0_33 = arith.constant 0 : index
    %53 = vector.load %arg5[%c5, %c0_32, %c0_33] : memref<27x6x6xbf16, #tpu.memory_space<vmem>>, vector<1x6x6xbf16>
    %54 = vector.shape_cast %53 : vector<1x6x6xbf16> to vector<6x6xbf16>
    %cst_34 = arith.constant dense<0.000000e+00> : vector<6x256xf32>
    %55 = tpu.matmul %54, %52, %cst_34 {dimension_numbers = #tpu.dot_dimension_numbers<[1], [0], [0], [1], [0, 0, 1, 1], [], []>} : vector<6x6xbf16>, vector<6x256xbf16>, vector<6x256xf32> -> vector<6x256xf32>
    %56 = arith.addf %49, %55 : vector<6x256xf32>
    %57 = vector.extract_strided_slice %18 {offsets = [0, 32], sizes = [6, 256], strides = [1, 1]} : vector<6x290xbf16> to vector<6x256xbf16>
    %58 = vector.broadcast %4 : vector<1x256xbf16> to vector<6x256xbf16>
    %59 = arith.mulf %57, %58 : vector<6x256xbf16>
    %c6 = arith.constant 6 : index
    %c0_35 = arith.constant 0 : index
    %c0_36 = arith.constant 0 : index
    %60 = vector.load %arg5[%c6, %c0_35, %c0_36] : memref<27x6x6xbf16, #tpu.memory_space<vmem>>, vector<1x6x6xbf16>
    %61 = vector.shape_cast %60 : vector<1x6x6xbf16> to vector<6x6xbf16>
    %cst_37 = arith.constant dense<0.000000e+00> : vector<6x256xf32>
    %62 = tpu.matmul %61, %59, %cst_37 {dimension_numbers = #tpu.dot_dimension_numbers<[1], [0], [0], [1], [0, 0, 1, 1], [], []>} : vector<6x6xbf16>, vector<6x256xbf16>, vector<6x256xf32> -> vector<6x256xf32>
    %63 = arith.addf %56, %62 : vector<6x256xf32>
    %64 = vector.extract_strided_slice %18 {offsets = [0, 33], sizes = [6, 256], strides = [1, 1]} : vector<6x290xbf16> to vector<6x256xbf16>
    %c7 = arith.constant 7 : index
    %c0_38 = arith.constant 0 : index
    %c0_39 = arith.constant 0 : index
    %65 = vector.load %arg5[%c7, %c0_38, %c0_39] : memref<27x6x6xbf16, #tpu.memory_space<vmem>>, vector<1x6x6xbf16>
    %66 = vector.shape_cast %65 : vector<1x6x6xbf16> to vector<6x6xbf16>
    %cst_40 = arith.constant dense<0.000000e+00> : vector<6x256xf32>
    %67 = tpu.matmul %66, %64, %cst_40 {dimension_numbers = #tpu.dot_dimension_numbers<[1], [0], [0], [1], [0, 0, 1, 1], [], []>} : vector<6x6xbf16>, vector<6x256xbf16>, vector<6x256xf32> -> vector<6x256xf32>
    %68 = arith.addf %63, %67 : vector<6x256xf32>
    %69 = vector.extract_strided_slice %18 {offsets = [0, 34], sizes = [6, 256], strides = [1, 1]} : vector<6x290xbf16> to vector<6x256xbf16>
    %70 = vector.broadcast %6 : vector<1x256xbf16> to vector<6x256xbf16>
    %71 = arith.mulf %69, %70 : vector<6x256xbf16>
    %c8 = arith.constant 8 : index
    %c0_41 = arith.constant 0 : index
    %c0_42 = arith.constant 0 : index
    %72 = vector.load %arg5[%c8, %c0_41, %c0_42] : memref<27x6x6xbf16, #tpu.memory_space<vmem>>, vector<1x6x6xbf16>
    %73 = vector.shape_cast %72 : vector<1x6x6xbf16> to vector<6x6xbf16>
    %cst_43 = arith.constant dense<0.000000e+00> : vector<6x256xf32>
    %74 = tpu.matmul %73, %71, %cst_43 {dimension_numbers = #tpu.dot_dimension_numbers<[1], [0], [0], [1], [0, 0, 1, 1], [], []>} : vector<6x6xbf16>, vector<6x256xbf16>, vector<6x256xf32> -> vector<6x256xf32>
    %75 = arith.addf %68, %74 : vector<6x256xf32>
    %c0_44 = arith.constant 0 : index
    %c0_45 = arith.constant 0 : index
    %c0_46 = arith.constant 0 : index
    %76 = vector.load %arg6[%c0_44, %c0_45, %c0_46] : memref<3x6x1xf32, #tpu.memory_space<vmem>>, vector<1x6x1xf32>
    %77 = vector.shape_cast %76 : vector<1x6x1xf32> to vector<6x1xf32>
    %78 = vector.broadcast %77 : vector<6x1xf32> to vector<6x256xf32>
    %79 = arith.addf %75, %78 : vector<6x256xf32>
    %cst_47 = arith.constant 0.000000e+00 : f32
    %80 = vector.broadcast %cst_47 : f32 to vector<6x256xf32>
    %81 = arith.maximumf %79, %80 : vector<6x256xf32>
    %c0_48 = arith.constant 0 : index
    %c0_49 = arith.constant 0 : index
    %c0_50 = arith.constant 0 : index
    %82 = vector.load %arg7[%c0_48, %c0_49, %c0_50] : memref<4x64x6xbf16, #tpu.memory_space<vmem>>, vector<1x64x6xbf16>
    %83 = vector.shape_cast %82 : vector<1x64x6xbf16> to vector<64x6xbf16>
    %84 = arith.truncf %81 : vector<6x256xf32> to vector<6x256xbf16>
    %cst_51 = arith.constant dense<0.000000e+00> : vector<64x256xf32>
    %85 = tpu.matmul %83, %84, %cst_51 {dimension_numbers = #tpu.dot_dimension_numbers<[1], [0], [0], [1], [0, 0, 1, 1], [], []>} : vector<64x6xbf16>, vector<6x256xbf16>, vector<64x256xf32> -> vector<64x256xf32>
    %86 = arith.addf %15, %85 : vector<64x256xf32>
    %87 = vector.extract_strided_slice %13 {offsets = [6, 0], sizes = [6, 256], strides = [1, 1]} : vector<24x256xf32> to vector<6x256xf32>
    %88 = arith.addf %81, %87 : vector<6x256xf32>
    %89 = arith.truncf %88 : vector<6x256xf32> to vector<6x256xbf16>
    %90 = tpu.concatenate %14, %89, %14 in 1 : vector<6x17xbf16>, vector<6x256xbf16>, vector<6x17xbf16> -> vector<6x290xbf16>
    %cst_52 = arith.constant 0.000000e+00 : f32
    %91 = vector.broadcast %cst_52 : f32 to vector<6x256xf32>
    %92 = vector.extract_strided_slice %90 {offsets = [0, 0], sizes = [6, 256], strides = [1, 1]} : vector<6x290xbf16> to vector<6x256xbf16>
    %93 = vector.broadcast %4 : vector<1x256xbf16> to vector<6x256xbf16>
    %94 = arith.mulf %92, %93 : vector<6x256xbf16>
    %c9 = arith.constant 9 : index
    %c0_53 = arith.constant 0 : index
    %c0_54 = arith.constant 0 : index
    %95 = vector.load %arg5[%c9, %c0_53, %c0_54] : memref<27x6x6xbf16, #tpu.memory_space<vmem>>, vector<1x6x6xbf16>
    %96 = vector.shape_cast %95 : vector<1x6x6xbf16> to vector<6x6xbf16>
    %cst_55 = arith.constant dense<0.000000e+00> : vector<6x256xf32>
    %97 = tpu.matmul %96, %94, %cst_55 {dimension_numbers = #tpu.dot_dimension_numbers<[1], [0], [0], [1], [0, 0, 1, 1], [], []>} : vector<6x6xbf16>, vector<6x256xbf16>, vector<6x256xf32> -> vector<6x256xf32>
    %98 = arith.addf %91, %97 : vector<6x256xf32>
    %99 = vector.extract_strided_slice %90 {offsets = [0, 1], sizes = [6, 256], strides = [1, 1]} : vector<6x290xbf16> to vector<6x256xbf16>
    %c10 = arith.constant 10 : index
    %c0_56 = arith.constant 0 : index
    %c0_57 = arith.constant 0 : index
    %100 = vector.load %arg5[%c10, %c0_56, %c0_57] : memref<27x6x6xbf16, #tpu.memory_space<vmem>>, vector<1x6x6xbf16>
    %101 = vector.shape_cast %100 : vector<1x6x6xbf16> to vector<6x6xbf16>
    %cst_58 = arith.constant dense<0.000000e+00> : vector<6x256xf32>
    %102 = tpu.matmul %101, %99, %cst_58 {dimension_numbers = #tpu.dot_dimension_numbers<[1], [0], [0], [1], [0, 0, 1, 1], [], []>} : vector<6x6xbf16>, vector<6x256xbf16>, vector<6x256xf32> -> vector<6x256xf32>
    %103 = arith.addf %98, %102 : vector<6x256xf32>
    %104 = vector.extract_strided_slice %90 {offsets = [0, 2], sizes = [6, 256], strides = [1, 1]} : vector<6x290xbf16> to vector<6x256xbf16>
    %105 = vector.broadcast %6 : vector<1x256xbf16> to vector<6x256xbf16>
    %106 = arith.mulf %104, %105 : vector<6x256xbf16>
    %c11 = arith.constant 11 : index
    %c0_59 = arith.constant 0 : index
    %c0_60 = arith.constant 0 : index
    %107 = vector.load %arg5[%c11, %c0_59, %c0_60] : memref<27x6x6xbf16, #tpu.memory_space<vmem>>, vector<1x6x6xbf16>
    %108 = vector.shape_cast %107 : vector<1x6x6xbf16> to vector<6x6xbf16>
    %cst_61 = arith.constant dense<0.000000e+00> : vector<6x256xf32>
    %109 = tpu.matmul %108, %106, %cst_61 {dimension_numbers = #tpu.dot_dimension_numbers<[1], [0], [0], [1], [0, 0, 1, 1], [], []>} : vector<6x6xbf16>, vector<6x256xbf16>, vector<6x256xf32> -> vector<6x256xf32>
    %110 = arith.addf %103, %109 : vector<6x256xf32>
    %111 = vector.extract_strided_slice %90 {offsets = [0, 16], sizes = [6, 256], strides = [1, 1]} : vector<6x290xbf16> to vector<6x256xbf16>
    %112 = vector.broadcast %4 : vector<1x256xbf16> to vector<6x256xbf16>
    %113 = arith.mulf %111, %112 : vector<6x256xbf16>
    %c12 = arith.constant 12 : index
    %c0_62 = arith.constant 0 : index
    %c0_63 = arith.constant 0 : index
    %114 = vector.load %arg5[%c12, %c0_62, %c0_63] : memref<27x6x6xbf16, #tpu.memory_space<vmem>>, vector<1x6x6xbf16>
    %115 = vector.shape_cast %114 : vector<1x6x6xbf16> to vector<6x6xbf16>
    %cst_64 = arith.constant dense<0.000000e+00> : vector<6x256xf32>
    %116 = tpu.matmul %115, %113, %cst_64 {dimension_numbers = #tpu.dot_dimension_numbers<[1], [0], [0], [1], [0, 0, 1, 1], [], []>} : vector<6x6xbf16>, vector<6x256xbf16>, vector<6x256xf32> -> vector<6x256xf32>
    %117 = arith.addf %110, %116 : vector<6x256xf32>
    %c13 = arith.constant 13 : index
    %c0_65 = arith.constant 0 : index
    %c0_66 = arith.constant 0 : index
    %118 = vector.load %arg5[%c13, %c0_65, %c0_66] : memref<27x6x6xbf16, #tpu.memory_space<vmem>>, vector<1x6x6xbf16>
    %119 = vector.shape_cast %118 : vector<1x6x6xbf16> to vector<6x6xbf16>
    %cst_67 = arith.constant dense<0.000000e+00> : vector<6x256xf32>
    %120 = tpu.matmul %119, %89, %cst_67 {dimension_numbers = #tpu.dot_dimension_numbers<[1], [0], [0], [1], [0, 0, 1, 1], [], []>} : vector<6x6xbf16>, vector<6x256xbf16>, vector<6x256xf32> -> vector<6x256xf32>
    %121 = arith.addf %117, %120 : vector<6x256xf32>
    %122 = vector.extract_strided_slice %90 {offsets = [0, 18], sizes = [6, 256], strides = [1, 1]} : vector<6x290xbf16> to vector<6x256xbf16>
    %123 = vector.broadcast %6 : vector<1x256xbf16> to vector<6x256xbf16>
    %124 = arith.mulf %122, %123 : vector<6x256xbf16>
    %c14 = arith.constant 14 : index
    %c0_68 = arith.constant 0 : index
    %c0_69 = arith.constant 0 : index
    %125 = vector.load %arg5[%c14, %c0_68, %c0_69] : memref<27x6x6xbf16, #tpu.memory_space<vmem>>, vector<1x6x6xbf16>
    %126 = vector.shape_cast %125 : vector<1x6x6xbf16> to vector<6x6xbf16>
    %cst_70 = arith.constant dense<0.000000e+00> : vector<6x256xf32>
    %127 = tpu.matmul %126, %124, %cst_70 {dimension_numbers = #tpu.dot_dimension_numbers<[1], [0], [0], [1], [0, 0, 1, 1], [], []>} : vector<6x6xbf16>, vector<6x256xbf16>, vector<6x256xf32> -> vector<6x256xf32>
    %128 = arith.addf %121, %127 : vector<6x256xf32>
    %129 = vector.extract_strided_slice %90 {offsets = [0, 32], sizes = [6, 256], strides = [1, 1]} : vector<6x290xbf16> to vector<6x256xbf16>
    %130 = vector.broadcast %4 : vector<1x256xbf16> to vector<6x256xbf16>
    %131 = arith.mulf %129, %130 : vector<6x256xbf16>
    %c15 = arith.constant 15 : index
    %c0_71 = arith.constant 0 : index
    %c0_72 = arith.constant 0 : index
    %132 = vector.load %arg5[%c15, %c0_71, %c0_72] : memref<27x6x6xbf16, #tpu.memory_space<vmem>>, vector<1x6x6xbf16>
    %133 = vector.shape_cast %132 : vector<1x6x6xbf16> to vector<6x6xbf16>
    %cst_73 = arith.constant dense<0.000000e+00> : vector<6x256xf32>
    %134 = tpu.matmul %133, %131, %cst_73 {dimension_numbers = #tpu.dot_dimension_numbers<[1], [0], [0], [1], [0, 0, 1, 1], [], []>} : vector<6x6xbf16>, vector<6x256xbf16>, vector<6x256xf32> -> vector<6x256xf32>
    %135 = arith.addf %128, %134 : vector<6x256xf32>
    %136 = vector.extract_strided_slice %90 {offsets = [0, 33], sizes = [6, 256], strides = [1, 1]} : vector<6x290xbf16> to vector<6x256xbf16>
    %c16 = arith.constant 16 : index
    %c0_74 = arith.constant 0 : index
    %c0_75 = arith.constant 0 : index
    %137 = vector.load %arg5[%c16, %c0_74, %c0_75] : memref<27x6x6xbf16, #tpu.memory_space<vmem>>, vector<1x6x6xbf16>
    %138 = vector.shape_cast %137 : vector<1x6x6xbf16> to vector<6x6xbf16>
    %cst_76 = arith.constant dense<0.000000e+00> : vector<6x256xf32>
    %139 = tpu.matmul %138, %136, %cst_76 {dimension_numbers = #tpu.dot_dimension_numbers<[1], [0], [0], [1], [0, 0, 1, 1], [], []>} : vector<6x6xbf16>, vector<6x256xbf16>, vector<6x256xf32> -> vector<6x256xf32>
    %140 = arith.addf %135, %139 : vector<6x256xf32>
    %141 = vector.extract_strided_slice %90 {offsets = [0, 34], sizes = [6, 256], strides = [1, 1]} : vector<6x290xbf16> to vector<6x256xbf16>
    %142 = vector.broadcast %6 : vector<1x256xbf16> to vector<6x256xbf16>
    %143 = arith.mulf %141, %142 : vector<6x256xbf16>
    %c17 = arith.constant 17 : index
    %c0_77 = arith.constant 0 : index
    %c0_78 = arith.constant 0 : index
    %144 = vector.load %arg5[%c17, %c0_77, %c0_78] : memref<27x6x6xbf16, #tpu.memory_space<vmem>>, vector<1x6x6xbf16>
    %145 = vector.shape_cast %144 : vector<1x6x6xbf16> to vector<6x6xbf16>
    %cst_79 = arith.constant dense<0.000000e+00> : vector<6x256xf32>
    %146 = tpu.matmul %145, %143, %cst_79 {dimension_numbers = #tpu.dot_dimension_numbers<[1], [0], [0], [1], [0, 0, 1, 1], [], []>} : vector<6x6xbf16>, vector<6x256xbf16>, vector<6x256xf32> -> vector<6x256xf32>
    %147 = arith.addf %140, %146 : vector<6x256xf32>
    %c1_80 = arith.constant 1 : index
    %c0_81 = arith.constant 0 : index
    %c0_82 = arith.constant 0 : index
    %148 = vector.load %arg6[%c1_80, %c0_81, %c0_82] : memref<3x6x1xf32, #tpu.memory_space<vmem>>, vector<1x6x1xf32>
    %149 = vector.shape_cast %148 : vector<1x6x1xf32> to vector<6x1xf32>
    %150 = vector.broadcast %149 : vector<6x1xf32> to vector<6x256xf32>
    %151 = arith.addf %147, %150 : vector<6x256xf32>
    %cst_83 = arith.constant 0.000000e+00 : f32
    %152 = vector.broadcast %cst_83 : f32 to vector<6x256xf32>
    %153 = arith.maximumf %151, %152 : vector<6x256xf32>
    %c1_84 = arith.constant 1 : index
    %c0_85 = arith.constant 0 : index
    %c0_86 = arith.constant 0 : index
    %154 = vector.load %arg7[%c1_84, %c0_85, %c0_86] : memref<4x64x6xbf16, #tpu.memory_space<vmem>>, vector<1x64x6xbf16>
    %155 = vector.shape_cast %154 : vector<1x64x6xbf16> to vector<64x6xbf16>
    %156 = arith.truncf %153 : vector<6x256xf32> to vector<6x256xbf16>
    %cst_87 = arith.constant dense<0.000000e+00> : vector<64x256xf32>
    %157 = tpu.matmul %155, %156, %cst_87 {dimension_numbers = #tpu.dot_dimension_numbers<[1], [0], [0], [1], [0, 0, 1, 1], [], []>} : vector<64x6xbf16>, vector<6x256xbf16>, vector<64x256xf32> -> vector<64x256xf32>
    %158 = arith.addf %86, %157 : vector<64x256xf32>
    %159 = vector.extract_strided_slice %13 {offsets = [12, 0], sizes = [6, 256], strides = [1, 1]} : vector<24x256xf32> to vector<6x256xf32>
    %160 = arith.addf %153, %159 : vector<6x256xf32>
    %161 = arith.truncf %160 : vector<6x256xf32> to vector<6x256xbf16>
    %162 = tpu.concatenate %14, %161, %14 in 1 : vector<6x17xbf16>, vector<6x256xbf16>, vector<6x17xbf16> -> vector<6x290xbf16>
    %cst_88 = arith.constant 0.000000e+00 : f32
    %163 = vector.broadcast %cst_88 : f32 to vector<6x256xf32>
    %164 = vector.extract_strided_slice %162 {offsets = [0, 0], sizes = [6, 256], strides = [1, 1]} : vector<6x290xbf16> to vector<6x256xbf16>
    %165 = vector.broadcast %4 : vector<1x256xbf16> to vector<6x256xbf16>
    %166 = arith.mulf %164, %165 : vector<6x256xbf16>
    %c18 = arith.constant 18 : index
    %c0_89 = arith.constant 0 : index
    %c0_90 = arith.constant 0 : index
    %167 = vector.load %arg5[%c18, %c0_89, %c0_90] : memref<27x6x6xbf16, #tpu.memory_space<vmem>>, vector<1x6x6xbf16>
    %168 = vector.shape_cast %167 : vector<1x6x6xbf16> to vector<6x6xbf16>
    %cst_91 = arith.constant dense<0.000000e+00> : vector<6x256xf32>
    %169 = tpu.matmul %168, %166, %cst_91 {dimension_numbers = #tpu.dot_dimension_numbers<[1], [0], [0], [1], [0, 0, 1, 1], [], []>} : vector<6x6xbf16>, vector<6x256xbf16>, vector<6x256xf32> -> vector<6x256xf32>
    %170 = arith.addf %163, %169 : vector<6x256xf32>
    %171 = vector.extract_strided_slice %162 {offsets = [0, 1], sizes = [6, 256], strides = [1, 1]} : vector<6x290xbf16> to vector<6x256xbf16>
    %c19 = arith.constant 19 : index
    %c0_92 = arith.constant 0 : index
    %c0_93 = arith.constant 0 : index
    %172 = vector.load %arg5[%c19, %c0_92, %c0_93] : memref<27x6x6xbf16, #tpu.memory_space<vmem>>, vector<1x6x6xbf16>
    %173 = vector.shape_cast %172 : vector<1x6x6xbf16> to vector<6x6xbf16>
    %cst_94 = arith.constant dense<0.000000e+00> : vector<6x256xf32>
    %174 = tpu.matmul %173, %171, %cst_94 {dimension_numbers = #tpu.dot_dimension_numbers<[1], [0], [0], [1], [0, 0, 1, 1], [], []>} : vector<6x6xbf16>, vector<6x256xbf16>, vector<6x256xf32> -> vector<6x256xf32>
    %175 = arith.addf %170, %174 : vector<6x256xf32>
    %176 = vector.extract_strided_slice %162 {offsets = [0, 2], sizes = [6, 256], strides = [1, 1]} : vector<6x290xbf16> to vector<6x256xbf16>
    %177 = vector.broadcast %6 : vector<1x256xbf16> to vector<6x256xbf16>
    %178 = arith.mulf %176, %177 : vector<6x256xbf16>
    %c20 = arith.constant 20 : index
    %c0_95 = arith.constant 0 : index
    %c0_96 = arith.constant 0 : index
    %179 = vector.load %arg5[%c20, %c0_95, %c0_96] : memref<27x6x6xbf16, #tpu.memory_space<vmem>>, vector<1x6x6xbf16>
    %180 = vector.shape_cast %179 : vector<1x6x6xbf16> to vector<6x6xbf16>
    %cst_97 = arith.constant dense<0.000000e+00> : vector<6x256xf32>
    %181 = tpu.matmul %180, %178, %cst_97 {dimension_numbers = #tpu.dot_dimension_numbers<[1], [0], [0], [1], [0, 0, 1, 1], [], []>} : vector<6x6xbf16>, vector<6x256xbf16>, vector<6x256xf32> -> vector<6x256xf32>
    %182 = arith.addf %175, %181 : vector<6x256xf32>
    %183 = vector.extract_strided_slice %162 {offsets = [0, 16], sizes = [6, 256], strides = [1, 1]} : vector<6x290xbf16> to vector<6x256xbf16>
    %184 = vector.broadcast %4 : vector<1x256xbf16> to vector<6x256xbf16>
    %185 = arith.mulf %183, %184 : vector<6x256xbf16>
    %c21 = arith.constant 21 : index
    %c0_98 = arith.constant 0 : index
    %c0_99 = arith.constant 0 : index
    %186 = vector.load %arg5[%c21, %c0_98, %c0_99] : memref<27x6x6xbf16, #tpu.memory_space<vmem>>, vector<1x6x6xbf16>
    %187 = vector.shape_cast %186 : vector<1x6x6xbf16> to vector<6x6xbf16>
    %cst_100 = arith.constant dense<0.000000e+00> : vector<6x256xf32>
    %188 = tpu.matmul %187, %185, %cst_100 {dimension_numbers = #tpu.dot_dimension_numbers<[1], [0], [0], [1], [0, 0, 1, 1], [], []>} : vector<6x6xbf16>, vector<6x256xbf16>, vector<6x256xf32> -> vector<6x256xf32>
    %189 = arith.addf %182, %188 : vector<6x256xf32>
    %c22 = arith.constant 22 : index
    %c0_101 = arith.constant 0 : index
    %c0_102 = arith.constant 0 : index
    %190 = vector.load %arg5[%c22, %c0_101, %c0_102] : memref<27x6x6xbf16, #tpu.memory_space<vmem>>, vector<1x6x6xbf16>
    %191 = vector.shape_cast %190 : vector<1x6x6xbf16> to vector<6x6xbf16>
    %cst_103 = arith.constant dense<0.000000e+00> : vector<6x256xf32>
    %192 = tpu.matmul %191, %161, %cst_103 {dimension_numbers = #tpu.dot_dimension_numbers<[1], [0], [0], [1], [0, 0, 1, 1], [], []>} : vector<6x6xbf16>, vector<6x256xbf16>, vector<6x256xf32> -> vector<6x256xf32>
    %193 = arith.addf %189, %192 : vector<6x256xf32>
    %194 = vector.extract_strided_slice %162 {offsets = [0, 18], sizes = [6, 256], strides = [1, 1]} : vector<6x290xbf16> to vector<6x256xbf16>
    %195 = vector.broadcast %6 : vector<1x256xbf16> to vector<6x256xbf16>
    %196 = arith.mulf %194, %195 : vector<6x256xbf16>
    %c23 = arith.constant 23 : index
    %c0_104 = arith.constant 0 : index
    %c0_105 = arith.constant 0 : index
    %197 = vector.load %arg5[%c23, %c0_104, %c0_105] : memref<27x6x6xbf16, #tpu.memory_space<vmem>>, vector<1x6x6xbf16>
    %198 = vector.shape_cast %197 : vector<1x6x6xbf16> to vector<6x6xbf16>
    %cst_106 = arith.constant dense<0.000000e+00> : vector<6x256xf32>
    %199 = tpu.matmul %198, %196, %cst_106 {dimension_numbers = #tpu.dot_dimension_numbers<[1], [0], [0], [1], [0, 0, 1, 1], [], []>} : vector<6x6xbf16>, vector<6x256xbf16>, vector<6x256xf32> -> vector<6x256xf32>
    %200 = arith.addf %193, %199 : vector<6x256xf32>
    %201 = vector.extract_strided_slice %162 {offsets = [0, 32], sizes = [6, 256], strides = [1, 1]} : vector<6x290xbf16> to vector<6x256xbf16>
    %202 = vector.broadcast %4 : vector<1x256xbf16> to vector<6x256xbf16>
    %203 = arith.mulf %201, %202 : vector<6x256xbf16>
    %c24 = arith.constant 24 : index
    %c0_107 = arith.constant 0 : index
    %c0_108 = arith.constant 0 : index
    %204 = vector.load %arg5[%c24, %c0_107, %c0_108] : memref<27x6x6xbf16, #tpu.memory_space<vmem>>, vector<1x6x6xbf16>
    %205 = vector.shape_cast %204 : vector<1x6x6xbf16> to vector<6x6xbf16>
    %cst_109 = arith.constant dense<0.000000e+00> : vector<6x256xf32>
    %206 = tpu.matmul %205, %203, %cst_109 {dimension_numbers = #tpu.dot_dimension_numbers<[1], [0], [0], [1], [0, 0, 1, 1], [], []>} : vector<6x6xbf16>, vector<6x256xbf16>, vector<6x256xf32> -> vector<6x256xf32>
    %207 = arith.addf %200, %206 : vector<6x256xf32>
    %208 = vector.extract_strided_slice %162 {offsets = [0, 33], sizes = [6, 256], strides = [1, 1]} : vector<6x290xbf16> to vector<6x256xbf16>
    %c25 = arith.constant 25 : index
    %c0_110 = arith.constant 0 : index
    %c0_111 = arith.constant 0 : index
    %209 = vector.load %arg5[%c25, %c0_110, %c0_111] : memref<27x6x6xbf16, #tpu.memory_space<vmem>>, vector<1x6x6xbf16>
    %210 = vector.shape_cast %209 : vector<1x6x6xbf16> to vector<6x6xbf16>
    %cst_112 = arith.constant dense<0.000000e+00> : vector<6x256xf32>
    %211 = tpu.matmul %210, %208, %cst_112 {dimension_numbers = #tpu.dot_dimension_numbers<[1], [0], [0], [1], [0, 0, 1, 1], [], []>} : vector<6x6xbf16>, vector<6x256xbf16>, vector<6x256xf32> -> vector<6x256xf32>
    %212 = arith.addf %207, %211 : vector<6x256xf32>
    %213 = vector.extract_strided_slice %162 {offsets = [0, 34], sizes = [6, 256], strides = [1, 1]} : vector<6x290xbf16> to vector<6x256xbf16>
    %214 = vector.broadcast %6 : vector<1x256xbf16> to vector<6x256xbf16>
    %215 = arith.mulf %213, %214 : vector<6x256xbf16>
    %c26 = arith.constant 26 : index
    %c0_113 = arith.constant 0 : index
    %c0_114 = arith.constant 0 : index
    %216 = vector.load %arg5[%c26, %c0_113, %c0_114] : memref<27x6x6xbf16, #tpu.memory_space<vmem>>, vector<1x6x6xbf16>
    %217 = vector.shape_cast %216 : vector<1x6x6xbf16> to vector<6x6xbf16>
    %cst_115 = arith.constant dense<0.000000e+00> : vector<6x256xf32>
    %218 = tpu.matmul %217, %215, %cst_115 {dimension_numbers = #tpu.dot_dimension_numbers<[1], [0], [0], [1], [0, 0, 1, 1], [], []>} : vector<6x6xbf16>, vector<6x256xbf16>, vector<6x256xf32> -> vector<6x256xf32>
    %219 = arith.addf %212, %218 : vector<6x256xf32>
    %c2_116 = arith.constant 2 : index
    %c0_117 = arith.constant 0 : index
    %c0_118 = arith.constant 0 : index
    %220 = vector.load %arg6[%c2_116, %c0_117, %c0_118] : memref<3x6x1xf32, #tpu.memory_space<vmem>>, vector<1x6x1xf32>
    %221 = vector.shape_cast %220 : vector<1x6x1xf32> to vector<6x1xf32>
    %222 = vector.broadcast %221 : vector<6x1xf32> to vector<6x256xf32>
    %223 = arith.addf %219, %222 : vector<6x256xf32>
    %cst_119 = arith.constant 0.000000e+00 : f32
    %224 = vector.broadcast %cst_119 : f32 to vector<6x256xf32>
    %225 = arith.maximumf %223, %224 : vector<6x256xf32>
    %c2_120 = arith.constant 2 : index
    %c0_121 = arith.constant 0 : index
    %c0_122 = arith.constant 0 : index
    %226 = vector.load %arg7[%c2_120, %c0_121, %c0_122] : memref<4x64x6xbf16, #tpu.memory_space<vmem>>, vector<1x64x6xbf16>
    %227 = vector.shape_cast %226 : vector<1x64x6xbf16> to vector<64x6xbf16>
    %228 = arith.truncf %225 : vector<6x256xf32> to vector<6x256xbf16>
    %cst_123 = arith.constant dense<0.000000e+00> : vector<64x256xf32>
    %229 = tpu.matmul %227, %228, %cst_123 {dimension_numbers = #tpu.dot_dimension_numbers<[1], [0], [0], [1], [0, 0, 1, 1], [], []>} : vector<64x6xbf16>, vector<6x256xbf16>, vector<64x256xf32> -> vector<64x256xf32>
    %230 = arith.addf %158, %229 : vector<64x256xf32>
    %231 = vector.extract_strided_slice %13 {offsets = [18, 0], sizes = [6, 256], strides = [1, 1]} : vector<24x256xf32> to vector<6x256xf32>
    %c3_124 = arith.constant 3 : index
    %c0_125 = arith.constant 0 : index
    %c0_126 = arith.constant 0 : index
    %232 = vector.load %arg7[%c3_124, %c0_125, %c0_126] : memref<4x64x6xbf16, #tpu.memory_space<vmem>>, vector<1x64x6xbf16>
    %233 = vector.shape_cast %232 : vector<1x64x6xbf16> to vector<64x6xbf16>
    %234 = arith.truncf %231 : vector<6x256xf32> to vector<6x256xbf16>
    %cst_127 = arith.constant dense<0.000000e+00> : vector<64x256xf32>
    %235 = tpu.matmul %233, %234, %cst_127 {dimension_numbers = #tpu.dot_dimension_numbers<[1], [0], [0], [1], [0, 0, 1, 1], [], []>} : vector<64x6xbf16>, vector<6x256xbf16>, vector<64x256xf32> -> vector<64x256xf32>
    %236 = arith.addf %230, %235 : vector<64x256xf32>
    %c0_128 = arith.constant 0 : index
    %c0_129 = arith.constant 0 : index
    %237 = vector.load %arg8[%c0_128, %c0_129] : memref<64x1xf32, #tpu.memory_space<vmem>>, vector<64x1xf32>
    %238 = vector.broadcast %237 : vector<64x1xf32> to vector<64x256xf32>
    %239 = arith.addf %236, %238 : vector<64x256xf32>
    %240 = arith.addf %239, %1 : vector<64x256xf32>
    %cst_130 = arith.constant 0.000000e+00 : f32
    %241 = vector.broadcast %cst_130 : f32 to vector<64x256xf32>
    %242 = arith.maximumf %240, %241 : vector<64x256xf32>
    %c0_131 = arith.constant 0 : index
    %c0_132 = arith.constant 0 : index
    %c0_133 = arith.constant 0 : index
    %243 = vector.load %arg9[%c0_131, %c0_132, %c0_133] : memref<1x64x256xf32, #tpu.memory_space<vmem>>, vector<1x64x256xf32>
    %244 = vector.shape_cast %243 : vector<1x64x256xf32> to vector<64x256xf32>
    %245 = vector.shape_cast %242 : vector<64x256xf32> to vector<1x64x256xf32>
    tpu.vector_store %arg9[%c0_131, %c0_132, %c0_133], %245 {strides = array<i32>} : memref<1x64x256xf32, #tpu.memory_space<vmem>>, vector<1x64x256xf32>,
    return
  }
  func.func @transform_0(%arg0: i32) -> (i32, i32, i32) {
    %c0_i32 = arith.constant 0 : i32
    %c0_i32_0 = arith.constant 0 : i32
    %c0_i32_1 = arith.constant 0 : i32
    return %arg0, %c0_i32, %c0_i32_0 : i32, i32, i32
  }
  func.func @transform_1(%arg0: i32) -> (i32, i32, i32) {
    %c0_i32 = arith.constant 0 : i32
    %c0_i32_0 = arith.constant 0 : i32
    %c0_i32_1 = arith.constant 0 : i32
    %c0_i32_2 = arith.constant 0 : i32
    return %c0_i32, %c0_i32_0, %c0_i32_1 : i32, i32, i32
  }
  func.func @transform_2(%arg0: i32) -> (i32, i32) {
    %c0_i32 = arith.constant 0 : i32
    %c0_i32_0 = arith.constant 0 : i32
    %c0_i32_1 = arith.constant 0 : i32
    return %c0_i32, %c0_i32_0 : i32, i32
  }
  func.func @transform_3(%arg0: i32) -> (i32, i32) {
    %c0_i32 = arith.constant 0 : i32
    %c0_i32_0 = arith.constant 0 : i32
    %c0_i32_1 = arith.constant 0 : i32
    return %c0_i32, %c0_i32_0 : i32, i32
  }
  func.func @transform_4(%arg0: i32) -> (i32, i32, i32) {
    %c0_i32 = arith.constant 0 : i32
    %c0_i32_0 = arith.constant 0 : i32
    %c0_i32_1 = arith.constant 0 : i32
    %c0_i32_2 = arith.constant 0 : i32
    return %c0_i32, %c0_i32_0, %c0_i32_1 : i32, i32, i32
  }
  func.func @transform_5(%arg0: i32) -> (i32, i32, i32) {
    %c0_i32 = arith.constant 0 : i32
    %c0_i32_0 = arith.constant 0 : i32
    %c0_i32_1 = arith.constant 0 : i32
    %c0_i32_2 = arith.constant 0 : i32
    return %c0_i32, %c0_i32_0, %c0_i32_1 : i32, i32, i32
  }
  func.func @transform_6(%arg0: i32) -> (i32, i32, i32) {
    %c0_i32 = arith.constant 0 : i32
    %c0_i32_0 = arith.constant 0 : i32
    %c0_i32_1 = arith.constant 0 : i32
    %c0_i32_2 = arith.constant 0 : i32
    return %c0_i32, %c0_i32_0, %c0_i32_1 : i32, i32, i32
  }
  func.func @transform_7(%arg0: i32) -> (i32, i32) {
    %c0_i32 = arith.constant 0 : i32
    %c0_i32_0 = arith.constant 0 : i32
    %c0_i32_1 = arith.constant 0 : i32
    return %c0_i32, %c0_i32_0 : i32, i32
  }
  func.func @transform_8(%arg0: i32) -> (i32, i32, i32) {
    %c0_i32 = arith.constant 0 : i32
    %c0_i32_0 = arith.constant 0 : i32
    %c0_i32_1 = arith.constant 0 : i32
    return %arg0, %c0_i32, %c0_i32_0 : i32, i32, i32
  }
}

</mosaic_0001>

<llo_original>
// kernel: tpu_custom_call.1
$region0: #{tpu_custom_call.1}
  #allocation0 [shape = 'u32[]', space=smem, size = 0x4, offset = 0x4, fixed_abs, tag = 'smem constant byte address 0x4 - core index']
  #allocation1 [shape = 'u32[144,128]{1,0:T(1,128)}', space=vmem, size = 0x12000, scoped, tag = 'internal scratch']
  %s0 = inlined_call_operand.vmem [shape: f32[2,64,256], index: 0, kind: input, shape index: {}]
  %s1 = inlined_call_operand.vmem [shape: bf16[2,1,256], index: 1, kind: input, shape index: {}]
  %s2 = inlined_call_operand.vmem [shape: bf16[24,64], index: 2, kind: input, shape index: {}]
  %s3 = inlined_call_operand.vmem [shape: f32[24,1], index: 3, kind: input, shape index: {}]
  %s4 = inlined_call_operand.vmem [shape: bf16[27,6,6], index: 4, kind: input, shape index: {}]
  %s5 = inlined_call_operand.vmem [shape: f32[3,6,1], index: 5, kind: input, shape index: {}]
  %s6 = inlined_call_operand.vmem [shape: bf16[4,64,6], index: 6, kind: input, shape index: {}]
  %s7 = inlined_call_operand.vmem [shape: f32[64,1], index: 7, kind: input, shape index: {}]
  %s8 = inlined_call_operand.hbm [shape: f32[2,64,256], index: 8, kind: output, shape index: {}]
  %s9 = sld [smem:[#allocation0]]
  $region65: #{tpu_custom_call.1} parent=0
    _
  %s11 = ssub.s32 1, %s9
  %s12 = scalar_select 0, %s11, %s9
  $region1: #{tpu_custom_call.1} parent=0
    #allocation2 [shape = 'u8[131072]{0}', space=vmem, size = 0x20000, scoped, tag = 'output window, operand 0']
    #allocation3 [shape = 's32[2]{0}', space=sflag, size = 0x8, scoped, tag = 'scoped memory for tpu_custom_call.1']
    %13 = vsyncpa [#allocation3], 0
    %s14 = scalar_lea.sflag [#allocation3], 1
    %15 = vsyncpa %s14, 0
    loop: start=0, step=1, limit=4
    $region2: #{tpu_custom_call.1} parent=1 // loop_pre_header
      _
    $region3: #{tpu_custom_call.1} parent=1 // loop_header
      %s17 = sphi 0, %s21
      %p18 = scmp.ge.s32.totalorder %s17, 4
      %s27 = sphi 0, %s29
      %s30 = sphi 0, %s27
      %s31 = sphi 0, %s30
      %s47 = sphi 0, %s31
      %s51 = sphi 0, %s51
      %s53 = sphi 0, %s51
      %s54 = sphi 0, %s53
      %s68 = sphi 0, %s54
      %s72 = sphi 0, %s72
      %s74 = sphi 0, %s72
      %s75 = sphi 0, %s74
      %s89 = sphi 0, %s75
      %s93 = sphi 0, %s93
      %s95 = sphi 0, %s93
      %s96 = sphi 0, %s95
      %s110 = sphi 0, %s96
      %s114 = sphi 0, %s114
      %s116 = sphi 0, %s114
      %s117 = sphi 0, %s116
      %s131 = sphi 0, %s117
      %s135 = sphi 0, %s135
      %s137 = sphi 0, %s135
      %s138 = sphi 0, %s137
      %s152 = sphi 0, %s138
      %s156 = sphi 0, %s156
      %s158 = sphi 0, %s156
      %s159 = sphi 0, %s158
      %s173 = sphi 0, %s159
      %s177 = sphi 0, %s177
      %s179 = sphi 0, %s177
      %s180 = sphi 0, %s179
      %s194 = sphi 0, %s180
      %s200 = sphi 0, %s202
      %s203 = sphi 0, %s200
      %s204 = sphi 0, %s203
      %s220 = sphi 0, %s204
    $region4: #{tpu_custom_call.1} parent=1 // loop_header_branch
      %20 = sbr.rel (%p18) target = $region8
    $region5: #{tpu_custom_call.1} parent=1 // loop_body
      %s22 = ssub.s32 %s17, 1
      %s23 = ssub.s32 %s17, 2
      %s24 = sadd.s32 %s17, 1
      %s25 = ssub.s32 %s17, %s24
      %p26 = scmp.eq.s32.totalorder %s25, 0
      %s28 = sadd.s32 %s27, 1
      %s29 = scalar_select %p26, %s27, %s28
      %p32 = pneg %p26
      %p33 = scmp.eq.s32.totalorder %s17, 1
      %p34 = por %p32, %p33
      %p35 = scmp.ne.s32.totalorder %s27, %s30
      %p36 = scmp.eq.s32.totalorder %s17, 0
      %p37 = por %p35, %p36
      %p38 = scmp.ne.s32.totalorder %s27, %s30
      %p39 = scmp.eq.s32.totalorder %s22, 1
      %p40 = por %p38, %p39
      %p41 = scmp.ne.s32.totalorder %s30, %s31
      %p42 = scmp.eq.s32.totalorder %s22, 0
      %p43 = por %p41, %p42
      %p44 = scmp.ne.s32.totalorder %s30, %s31
      %p45 = scmp.eq.s32.totalorder %s23, 1
      %p46 = por %p44, %p45
      %p48 = scmp.ne.s32.totalorder %s31, %s47
      %p49 = scmp.eq.s32.totalorder %s23, 0
      %p50 = por %p48, %p49
      %s52 = sadd.s32 %s51, 1
      %p55 = scmp.eq.s32.totalorder %s17, 1
      %p56 = scmp.ne.s32.totalorder %s51, %s53
      %p57 = scmp.eq.s32.totalorder %s17, 0
      %p58 = por %p56, %p57
      %p59 = scmp.ne.s32.totalorder %s51, %s53
      %p60 = scmp.eq.s32.totalorder %s22, 1
      %p61 = por %p59, %p60
      %p62 = scmp.ne.s32.totalorder %s53, %s54
      %p63 = scmp.eq.s32.totalorder %s22, 0
      %p64 = por %p62, %p63
      %p65 = scmp.ne.s32.totalorder %s53, %s54
      %p66 = scmp.eq.s32.totalorder %s23, 1
      %p67 = por %p65, %p66
      %p69 = scmp.ne.s32.totalorder %s54, %s68
      %p70 = scmp.eq.s32.totalorder %s23, 0
      %p71 = por %p69, %p70
      %s73 = sadd.s32 %s72, 1
      %p76 = scmp.eq.s32.totalorder %s17, 1
      %p77 = scmp.ne.s32.totalorder %s72, %s74
      %p78 = scmp.eq.s32.totalorder %s17, 0
      %p79 = por %p77, %p78
      %p80 = scmp.ne.s32.totalorder %s72, %s74
      %p81 = scmp.eq.s32.totalorder %s22, 1
      %p82 = por %p80, %p81
      %p83 = scmp.ne.s32.totalorder %s74, %s75
      %p84 = scmp.eq.s32.totalorder %s22, 0
      %p85 = por %p83, %p84
      %p86 = scmp.ne.s32.totalorder %s74, %s75
      %p87 = scmp.eq.s32.totalorder %s23, 1
      %p88 = por %p86, %p87
      %p90 = scmp.ne.s32.totalorder %s75, %s89
      %p91 = scmp.eq.s32.totalorder %s23, 0
      %p92 = por %p90, %p91
      %s94 = sadd.s32 %s93, 1
      %p97 = scmp.eq.s32.totalorder %s17, 1
      %p98 = scmp.ne.s32.totalorder %s93, %s95
      %p99 = scmp.eq.s32.totalorder %s17, 0
      %p100 = por %p98, %p99
      %p101 = scmp.ne.s32.totalorder %s93, %s95
      %p102 = scmp.eq.s32.totalorder %s22, 1
      %p103 = por %p101, %p102
      %p104 = scmp.ne.s32.totalorder %s95, %s96
      %p105 = scmp.eq.s32.totalorder %s22, 0
      %p106 = por %p104, %p105
      %p107 = scmp.ne.s32.totalorder %s95, %s96
      %p108 = scmp.eq.s32.totalorder %s23, 1
      %p109 = por %p107, %p108
      %p111 = scmp.ne.s32.totalorder %s96, %s110
      %p112 = scmp.eq.s32.totalorder %s23, 0
      %p113 = por %p111, %p112
      %s115 = sadd.s32 %s114, 1
      %p118 = scmp.eq.s32.totalorder %s17, 1
      %p119 = scmp.ne.s32.totalorder %s114, %s116
      %p120 = scmp.eq.s32.totalorder %s17, 0
      %p121 = por %p119, %p120
      %p122 = scmp.ne.s32.totalorder %s114, %s116
      %p123 = scmp.eq.s32.totalorder %s22, 1
      %p124 = por %p122, %p123
      %p125 = scmp.ne.s32.totalorder %s116, %s117
      %p126 = scmp.eq.s32.totalorder %s22, 0
      %p127 = por %p125, %p126
      %p128 = scmp.ne.s32.totalorder %s116, %s117
      %p129 = scmp.eq.s32.totalorder %s23, 1
      %p130 = por %p128, %p129
      %p132 = scmp.ne.s32.totalorder %s117, %s131
      %p133 = scmp.eq.s32.totalorder %s23, 0
      %p134 = por %p132, %p133
      %s136 = sadd.s32 %s135, 1
      %p139 = scmp.eq.s32.totalorder %s17, 1
      %p140 = scmp.ne.s32.totalorder %s135, %s137
      %p141 = scmp.eq.s32.totalorder %s17, 0
      %p142 = por %p140, %p141
      %p143 = scmp.ne.s32.totalorder %s135, %s137
      %p144 = scmp.eq.s32.totalorder %s22, 1
      %p145 = por %p143, %p144
      %p146 = scmp.ne.s32.totalorder %s137, %s138
      %p147 = scmp.eq.s32.totalorder %s22, 0
      %p148 = por %p146, %p147
      %p149 = scmp.ne.s32.totalorder %s137, %s138
      %p150 = scmp.eq.s32.totalorder %s23, 1
      %p151 = por %p149, %p150
      %p153 = scmp.ne.s32.totalorder %s138, %s152
      %p154 = scmp.eq.s32.totalorder %s23, 0
      %p155 = por %p153, %p154
      %s157 = sadd.s32 %s156, 1
      %p160 = scmp.eq.s32.totalorder %s17, 1
      %p161 = scmp.ne.s32.totalorder %s156, %s158
      %p162 = scmp.eq.s32.totalorder %s17, 0
      %p163 = por %p161, %p162
      %p164 = scmp.ne.s32.totalorder %s156, %s158
      %p165 = scmp.eq.s32.totalorder %s22, 1
      %p166 = por %p164, %p165
      %p167 = scmp.ne.s32.totalorder %s158, %s159
      %p168 = scmp.eq.s32.totalorder %s22, 0
      %p169 = por %p167, %p168
      %p170 = scmp.ne.s32.totalorder %s158, %s159
      %p171 = scmp.eq.s32.totalorder %s23, 1
      %p172 = por %p170, %p171
      %p174 = scmp.ne.s32.totalorder %s159, %s173
      %p175 = scmp.eq.s32.totalorder %s23, 0
      %p176 = por %p174, %p175
      %s178 = sadd.s32 %s177, 1
      %p181 = scmp.eq.s32.totalorder %s17, 1
      %p182 = scmp.ne.s32.totalorder %s177, %s179
      %p183 = scmp.eq.s32.totalorder %s17, 0
      %p184 = por %p182, %p183
      %p185 = scmp.ne.s32.totalorder %s177, %s179
      %p186 = scmp.eq.s32.totalorder %s22, 1
      %p187 = por %p185, %p186
      %p188 = scmp.ne.s32.totalorder %s179, %s180
      %p189 = scmp.eq.s32.totalorder %s22, 0
      %p190 = por %p188, %p189
      %p191 = scmp.ne.s32.totalorder %s179, %s180
      %p192 = scmp.eq.s32.totalorder %s23, 1
      %p193 = por %p191, %p192
      %p195 = scmp.ne.s32.totalorder %s180, %s194
      %p196 = scmp.eq.s32.totalorder %s23, 0
      %p197 = por %p195, %p196
      %s198 = ssub.s32 %s17, %s24
      %p199 = scmp.eq.s32.totalorder %s198, 0
      %s201 = sadd.s32 %s200, 1
      %s202 = scalar_select %p199, %s200, %s201
      %p205 = pneg %p199
      %p206 = scmp.eq.s32.totalorder %s17, 1
      %p207 = por %p205, %p206
      %p208 = scmp.ne.s32.totalorder %s200, %s203
      %p209 = scmp.eq.s32.totalorder %s17, 0
      %p210 = por %p208, %p209
      %p211 = scmp.ne.s32.totalorder %s200, %s203
      %p212 = scmp.eq.s32.totalorder %s22, 1
      %p213 = por %p211, %p212
      %p214 = scmp.ne.s32.totalorder %s203, %s204
      %p215 = scmp.eq.s32.totalorder %s22, 0
      %p216 = por %p214, %p215
      %p217 = scmp.ne.s32.totalorder %s203, %s204
      %p218 = scmp.eq.s32.totalorder %s23, 1
      %p219 = por %p217, %p218
      %p221 = scmp.ne.s32.totalorder %s204, %s220
      %p222 = scmp.eq.s32.totalorder %s23, 0
      %p223 = por %p221, %p222
      %p224 = scmp.le.s32.totalorder 1, %s17
      %p225 = scmp.lt.s32.totalorder %s17, 3
      %p226 = pnand %p224, %p225
      %p227 = pneg %p226
      // Predicated region
      $region9: #{tpu_custom_call.1} parent=5 // pred_check
        _
      $region10: #{tpu_custom_call.1} parent=5 // pred_check_branch
        %229 = sbr.rel (%p226) target = $region12
      $region11: #{tpu_custom_call.1} parent=5 // pred_region
        %s230 = ssub.s32 %s17, 1
        // Predicated region
        $region13: #{tpu_custom_call.1} parent=11 // pred_check
          %p231 = pneg %p64
        $region14: #{tpu_custom_call.1} parent=11 // pred_check_branch
          %233 = sbr.rel (%p231) target = $region16
        $region15: #{tpu_custom_call.1} parent=11 // pred_region
          _
        $region16: #{tpu_custom_call.1} parent=11 // pred_fallthru
          _
        // Predicated region
        $region17: #{tpu_custom_call.1} parent=11 // pred_check
          %p234 = pneg %p85
        $region18: #{tpu_custom_call.1} parent=11 // pred_check_branch
          %236 = sbr.rel (%p234) target = $region20
        $region19: #{tpu_custom_call.1} parent=11 // pred_region
          _
        $region20: #{tpu_custom_call.1} parent=11 // pred_fallthru
          _
        // Predicated region
        $region21: #{tpu_custom_call.1} parent=11 // pred_check
          %p237 = pneg %p106
        $region22: #{tpu_custom_call.1} parent=11 // pred_check_branch
          %239 = sbr.rel (%p237) target = $region24
        $region23: #{tpu_custom_call.1} parent=11 // pred_region
          _
        $region24: #{tpu_custom_call.1} parent=11 // pred_fallthru
          _
        // Predicated region
        $region25: #{tpu_custom_call.1} parent=11 // pred_check
          %p240 = pneg %p127
        $region26: #{tpu_custom_call.1} parent=11 // pred_check_branch
          %242 = sbr.rel (%p240) target = $region28
        $region27: #{tpu_custom_call.1} parent=11 // pred_region
          _
        $region28: #{tpu_custom_call.1} parent=11 // pred_fallthru
          _
        // Predicated region
        $region29: #{tpu_custom_call.1} parent=11 // pred_check
          %p243 = pneg %p148
        $region30: #{tpu_custom_call.1} parent=11 // pred_check_branch
          %245 = sbr.rel (%p243) target = $region32
        $region31: #{tpu_custom_call.1} parent=11 // pred_region
          _
        $region32: #{tpu_custom_call.1} parent=11 // pred_fallthru
          _
        // Predicated region
        $region33: #{tpu_custom_call.1} parent=11 // pred_check
          %p246 = pneg %p169
        $region34: #{tpu_custom_call.1} parent=11 // pred_check_branch
          %248 = sbr.rel (%p246) target = $region36
        $region35: #{tpu_custom_call.1} parent=11 // pred_region
          _
        $region36: #{tpu_custom_call.1} parent=11 // pred_fallthru
          _
        // Predicated region
        $region37: #{tpu_custom_call.1} parent=11 // pred_check
          %p249 = pneg %p190
        $region38: #{tpu_custom_call.1} parent=11 // pred_check_branch
          %251 = sbr.rel (%p249) target = $region40
        $region39: #{tpu_custom_call.1} parent=11 // pred_region
          _
        $region40: #{tpu_custom_call.1} parent=11 // pred_fallthru
          _
      $region12: #{tpu_custom_call.1} parent=5 // pred_fallthru
        _
      %p252 = scmp.lt.s32.totalorder %s17, 2
      // Predicated region
      $region41: #{tpu_custom_call.1} parent=5 // pred_check
        %p253 = pneg %p252
      $region42: #{tpu_custom_call.1} parent=5 // pred_check_branch
        %255 = sbr.rel (%p253) target = $region44
      $region43: #{tpu_custom_call.1} parent=5 // pred_region
        // Predicated region
        $region45: #{tpu_custom_call.1} parent=43 // pred_check
          %p256 = pneg %p37
        $region46: #{tpu_custom_call.1} parent=43 // pred_check_branch
          %258 = sbr.rel (%p256) target = $region48
        $region47: #{tpu_custom_call.1} parent=43 // pred_region
          %p259 = scmp.lt.s32.totalorder %s17, 1
          %s260 = scalar_select %p259, %s17, 1
          %s261 = smul.addr %s260, 16
          %s262 = smul.addr %s261, 8
          %s263 = scalar_lea.vmem %s0, %s262
        $region48: #{tpu_custom_call.1} parent=43 // pred_fallthru
          _
      $region44: #{tpu_custom_call.1} parent=5 // pred_fallthru
        _
      %p264 = scmp.le.s32.totalorder 1, %s17
      %p265 = scmp.lt.s32.totalorder %s17, 3
      %p266 = pnand %p264, %p265
      %p267 = pneg %p266
      // Predicated region
      $region49: #{tpu_custom_call.1} parent=5 // pred_check
        _
      $region50: #{tpu_custom_call.1} parent=5 // pred_check_branch
        %269 = sbr.rel (%p266) target = $region52
      $region51: #{tpu_custom_call.1} parent=5 // pred_region
        %s270 = ssub.s32 %s17, 1
        %p271 = scmp.lt.s32.totalorder %s22, 1
        %s272 = scalar_select %p271, %s22, 1
        %s273 = smul.addr %s272, 16
        %s274 = smul.addr %s273, 8
        %s275 = scalar_lea.vmem %s0, %s274
        %p276 = pneg %p43
        %p277 = pneg %p40
        %p278 = pneg %p64
        %p279 = pneg %p61
        %p280 = pneg %p85
        %p281 = pneg %p82
        %p282 = pneg %p106
        %p283 = pneg %p103
        %p284 = pneg %p127
        %p285 = pneg %p124
        %p286 = pneg %p148
        %p287 = pneg %p145
        %p288 = pneg %p169
        %p289 = pneg %p166
        %p290 = pneg %p190
        %p291 = pneg %p187
        %p292 = pneg %p216
        %p293 = pneg %p213
        %s294 = sand.u32 %s203, 1
        %s295 = scalar_lea.sflag [#allocation3], %s294
        %s296 = sand.u32 %s203, 1
        %s297 = smul.addr %s296, 128
        %s298 = scalar_lea.vmem [#allocation2], %s297
        %p299 = scmp.lt.s32.totalorder %s22, 1
        %s300 = scalar_select %p299, %s22, 1
        %s301 = smul.addr %s300, 16
        %s302 = smul.addr %s301, 8
        %s303 = scalar_lea.vmem %s0, %s302
        %v305 = vld [vmem:[%s303] sm:$0xff]
        %v306 = vld [vmem:[%s303 + $0x8] sm:$0xff]
        %v307 = vld [vmem:[%s303 + $0x10] sm:$0xff]
        %v308 = vld [vmem:[%s303 + $0x18] sm:$0xff]
        %v309 = vld [vmem:[%s303 + $0x20] sm:$0xff]
        %v310 = vld [vmem:[%s303 + $0x28] sm:$0xff]
        %v311 = vld [vmem:[%s303 + $0x30] sm:$0xff]
        %v312 = vld [vmem:[%s303 + $0x38] sm:$0xff]
        %v313 = vld [vmem:[%s303 + $0x40] sm:$0xff]
        %v314 = vld [vmem:[%s303 + $0x48] sm:$0xff]
        %v315 = vld [vmem:[%s303 + $0x50] sm:$0xff]
        %v316 = vld [vmem:[%s303 + $0x58] sm:$0xff]
        %v317 = vld [vmem:[%s303 + $0x60] sm:$0xff]
        %v318 = vld [vmem:[%s303 + $0x68] sm:$0xff]
        %v319 = vld [vmem:[%s303 + $0x70] sm:$0xff]
        %v320 = vld [vmem:[%s303 + $0x78] sm:$0xff]
        %v321 = vpack.c.bf16 %v307, %v305
        %v322 = vpack.c.bf16 %v308, %v306
        %v323 = vpack.c.bf16 %v311, %v309
        %v324 = vpack.c.bf16 %v312, %v310
        %v325 = vpack.c.bf16 %v315, %v313
        %v326 = vpack.c.bf16 %v316, %v314
        %v327 = vpack.c.bf16 %v319, %v317
        %v328 = vpack.c.bf16 %v320, %v318
        %v329 = vld [vmem:[%s1] sm:$0x3]
        %s330 = scalar_lea.vmem %s1, 2
        %v331 = vld [vmem:[%s330] sm:$0x3]
        %v332 = vld [vmem:[%s2] sm:$0xf]
        %v333 = vld [vmem:[%s2 + $0x4] sm:$0xf]
        %v334 = vld [vmem:[%s2 + $0x8] sm:$0xf]
        %v335 = vld [vmem:[%s3] sm:$0xff]
        %v336 = vld [vmem:[%s3 + $0x8] sm:$0xff]
        %v337 = vld [vmem:[%s3 + $0x10] sm:$0xff]
        %339 = vset.pattern.permute.xlu0 0
        %340 = vperm.xlu0 %339, %v335
        %v341 = vpop.permute.xlu0 %340
        %344 = vset.pattern.permute.xlu0 0
        %345 = vperm.xlu0 %344, %v336
        %v346 = vpop.permute.xlu0 %345
        %349 = vset.pattern.permute.xlu0 0
        %350 = vperm.xlu0 %349, %v337
        %v351 = vpop.permute.xlu0 %350
        %v356 = vunpack.c.l.b16 %v332
        %v357 = vunpack.c.l.b16 %v333
        %v358 = vunpack.c.l.b16 %v334
        %v359 = vpack.c.b16 %v357, %v356
        %v360 = vpack.c.b16 %v358, %v358
        %vm361 = vcmask 523264
        %v363 = vsel %vm361, %v359, 0
        %v366 = vsel %vm361, %v360, 0
        %368 = vmatprep.subr.bf16.mxu0 0
        %369 = vmatpush1.bf16.msra.mxu0 0
        %370 = vmatprep.subr.bf16.mxu0 0
        %371 = vmatpush1.bf16.msra.mxu0 0
        %372 = vmatprep.subr.bf16.mxu0 0
        %373 = vmatpush1.bf16.msra.mxu0 0
        %374 = vmatprep.subr.bf16.mxu0 0
        %375 = vmatpush1.bf16.msra.mxu0 0
        %376 = vmatprep.subr.bf16.mxu0 %v328
        %377 = vmatpush1.bf16.msra.mxu0 %v327
        %378 = vmatprep.subr.bf16.mxu0 %v326
        %379 = vmatpush1.bf16.msra.mxu0 %v325
        %380 = vmatprep.subr.bf16.mxu0 %v324
        %381 = vmatpush1.bf16.msra.mxu0 %v323
        %382 = vmatprep.subr.bf16.mxu0 %v322
        %383 = vmatpush1.bf16.msra.mxu0 %v321
        %384 = vmatprep.subr.bf16.mxu0 0
        %385 = vmatpush2.bf16.msra.mxu0 0
        %386 = vmatprep.subr.bf16.mxu0 0
        %387 = vmatpush2.bf16.msra.mxu0 0
        %388 = vmatprep.subr.bf16.mxu0 0
        %389 = vmatpush2.bf16.msra.mxu0 0
        %390 = vmatprep.subr.bf16.mxu0 0
        %391 = vmatpush2.bf16.msra.mxu0 0
        %392 = vmatprep.subr.bf16.mxu0 0
        %393 = vmatpush2.bf16.msra.mxu0 0
        %394 = vmatprep.subr.bf16.mxu0 0
        %395 = vmatpush2.bf16.msra.mxu0 0
        %396 = vmatprep.subr.bf16.mxu0 0
        %397 = vmatpush2.bf16.msra.mxu0 0
        %398 = vmatprep.subr.bf16.mxu0 0
        %399 = vmatpush2.bf16.msra.mxu0 0
        %400 = vmatprep.mubr.bf16.mxu0 0
        %401 = vmatmul.mubr.bf16.gmra.mxu0 %v363
        %v402 = vpop.f32.mrf.mxu0
        %v403 = vadd.f32 %v341, %v402
        %v404 = vpop.f32.mrf.mxu0
        %v405 = vadd.f32 %v341, %v404
        %v406 = vpop.f32.mrf.mxu0
        %v407 = vadd.f32 %v346, %v406
        %v408 = vpop.f32.mrf.mxu0
        %v409 = vadd.f32 %v346, %v408
        %410 = vmatprep.mubr.bf16.mxu0 0
        %411 = vmatmul.mubr.bf16.gmra.mxu0 %v366
        %v412 = vpop.f32.mrf.mxu0
        %v413 = vadd.f32 %v351, %v412
        %v414 = vpop.f32.mrf.mxu0
        %v415 = vadd.f32 %v351, %v414
        %v416 = vpop.f32.mrf.mxu0
        %v417 = vpop.f32.mrf.mxu0
        %418 = vdwg.mxu0
        %v419 = vmax.f32 %v403, 0.0
        %v420 = vmax.f32 %v405, 0.0
        %v421 = vmax.f32 %v407, 0.0
        %v422 = vmax.f32 %v409, 0.0
        %v423 = vmax.f32 %v413, 0.0
        %v424 = vmax.f32 %v415, 0.0
        %v425 = vpack.c.bf16 %v419, %v419
        %v426 = vpack.c.bf16 %v420, %v420
        %429 = vrot.lane.b32.xlu0 %v425, 17
        %v430 = vpop.permute.xlu0 %429
        %431 = vrot.lane.b32.xlu0 %v426, 17
        %v432 = vpop.permute.xlu0 %431
        %vm433 = vcmask 138240
        %v434 = vsel %vm433, %v430, %v432
        %vm436 = vcmask 138240
        %v439 = vsel %vm436, 0, %v430
        %v442 = vsel %vm436, %v432, 0
        %v446 = vunpack.c.l.s4 1966171168
        %v447 = vunpack.c.0.s8 %v446
        %v448 = vlaneseq
        %v449 = vshrl.u32 %v448, 7
        %v450 = vsub.s32 %v447, %v449
        %v451 = vrot.slane %v329, %v450
        %v452 = vcombine.high %v451, %v451
        %v454 = vunpack.c.l.s4 1966171168
        %v455 = vunpack.c.0.s8 %v454
        %v456 = vlaneseq
        %v457 = vshrl.u32 %v456, 7
        %v458 = vsub.s32 %v455, %v457
        %v459 = vrot.slane %v451, %v458
        %v461 = vunpack.c.l.s4 1966171168
        %v462 = vunpack.c.0.s8 %v461
        %v463 = vlaneseq
        %v464 = vshrl.u32 %v463, 7
        %v465 = vsub.s32 %v462, %v464
        %v466 = vrot.slane %v452, %v465
        %v468 = vpack.i.b16 %v459, %v459
        %v470 = vlaneseq
        %v471 = vshrl.u32 %v470, 7
        %v472 = vsub.s32 0, %v471
        %v473 = vrot.slane %v468, %v472
        %v475 = vpack.i.b16 %v466, %v466
        %v477 = vlaneseq
        %v478 = vshrl.u32 %v477, 7
        %v479 = vsub.s32 0, %v478
        %v480 = vrot.slane %v475, %v479
        %v481 = vmul.bf16 %v439, %v473
        %v482 = vmul.bf16 %v434, %v480
        %v483 = vld [vmem:[%s4] sm:$0x7]
        %s484 = scalar_lea.vmem %s4, 4
        %v485 = vld [vmem:[%s484] sm:$0x7]
        %488 = vrot.lane.b32.xlu0 %v439, 127
        %v489 = vpop.permute.xlu0 %488
        %490 = vrot.lane.b32.xlu0 %v434, 127
        %v491 = vpop.permute.xlu0 %490
        %492 = vrot.lane.b32.xlu0 %v442, 127
        %v493 = vpop.permute.xlu0 %492
        %vm494 = vcmask 1039360
        %v495 = vsel %vm494, %v489, %v491
        %v496 = vsel %vm494, %v491, %v493
        %vm497 = vcmask 48128
        %v499 = vsel %vm497, %v485, 0
        %vm501 = vcmask 1042432
        %v503 = vsel %vm501, %v495, 0
        %v506 = vsel %vm501, %v496, 0
        %508 = vmatprep.subr.bf16.mxu0 0
        %509 = vmatpush1.bf16.msra.mxu0 0
        %510 = vmatprep.subr.bf16.mxu0 0
        %511 = vmatpush1.bf16.msra.mxu0 0
        %512 = vmatprep.subr.bf16.mxu0 0
        %513 = vmatpush1.bf16.msra.mxu0 0
        %514 = vmatprep.subr.bf16.mxu0 0
        %515 = vmatpush1.bf16.msra.mxu0 0
        %516 = vmatprep.subr.bf16.mxu0 0
        %517 = vmatpush1.bf16.msra.mxu0 0
        %518 = vmatprep.subr.bf16.mxu0 0
        %519 = vmatpush1.bf16.msra.mxu0 0
        %520 = vmatprep.subr.bf16.mxu0 0
        %521 = vmatpush1.bf16.msra.mxu0 0
        %522 = vmatprep.subr.bf16.mxu0 %v506
        %523 = vmatpush1.bf16.msra.mxu0 %v503
        %524 = vmatprep.subr.bf16.mxu0 0
        %525 = vmatpush2.bf16.msra.mxu0 0
        %526 = vmatprep.subr.bf16.mxu0 0
        %527 = vmatpush2.bf16.msra.mxu0 0
        %528 = vmatprep.subr.bf16.mxu0 0
        %529 = vmatpush2.bf16.msra.mxu0 0
        %530 = vmatprep.subr.bf16.mxu0 0
        %531 = vmatpush2.bf16.msra.mxu0 0
        %532 = vmatprep.subr.bf16.mxu0 0
        %533 = vmatpush2.bf16.msra.mxu0 0
        %534 = vmatprep.subr.bf16.mxu0 0
        %535 = vmatpush2.bf16.msra.mxu0 0
        %536 = vmatprep.subr.bf16.mxu0 0
        %537 = vmatpush2.bf16.msra.mxu0 0
        %538 = vmatprep.subr.bf16.mxu0 0
        %539 = vmatpush2.bf16.msra.mxu0 0
        %540 = vmatprep.mubr.bf16.mxu0 0
        %541 = vmatmul.mubr.bf16.gmra.mxu0 %v499
        %v542 = vpop.f32.mrf.mxu0
        %v543 = vadd.f32 0.0, %v542
        %v544 = vpop.f32.mrf.mxu0
        %v545 = vadd.f32 0.0, %v544
        %v546 = vpop.f32.mrf.mxu0
        %v547 = vpop.f32.mrf.mxu0
        %548 = vdwg.mxu0
        %v550 = vsel %vm497, %v483, 0
        %v553 = vsel %vm501, %v481, 0
        %v556 = vsel %vm501, %v482, 0
        %558 = vmatprep.subr.bf16.mxu0 0
        %559 = vmatpush1.bf16.msra.mxu0 0
        %560 = vmatprep.subr.bf16.mxu0 0
        %561 = vmatpush1.bf16.msra.mxu0 0
        %562 = vmatprep.subr.bf16.mxu0 0
        %563 = vmatpush1.bf16.msra.mxu0 0
        %564 = vmatprep.subr.bf16.mxu0 0
        %565 = vmatpush1.bf16.msra.mxu0 0
        %566 = vmatprep.subr.bf16.mxu0 0
        %567 = vmatpush1.bf16.msra.mxu0 0
        %568 = vmatprep.subr.bf16.mxu0 0
        %569 = vmatpush1.bf16.msra.mxu0 0
        %570 = vmatprep.subr.bf16.mxu0 0
        %571 = vmatpush1.bf16.msra.mxu0 0
        %572 = vmatprep.subr.bf16.mxu0 %v556
        %573 = vmatpush1.bf16.msra.mxu0 %v553
        %574 = vmatprep.subr.bf16.mxu0 0
        %575 = vmatpush2.bf16.msra.mxu0 0
        %576 = vmatprep.subr.bf16.mxu0 0
        %577 = vmatpush2.bf16.msra.mxu0 0
        %578 = vmatprep.subr.bf16.mxu0 0
        %579 = vmatpush2.bf16.msra.mxu0 0
        %580 = vmatprep.subr.bf16.mxu0 0
        %581 = vmatpush2.bf16.msra.mxu0 0
        %582 = vmatprep.subr.bf16.mxu0 0
        %583 = vmatpush2.bf16.msra.mxu0 0
        %584 = vmatprep.subr.bf16.mxu0 0
        %585 = vmatpush2.bf16.msra.mxu0 0
        %586 = vmatprep.subr.bf16.mxu0 0
        %587 = vmatpush2.bf16.msra.mxu0 0
        %588 = vmatprep.subr.bf16.mxu0 0
        %589 = vmatpush2.bf16.msra.mxu0 0
        %590 = vmatprep.mubr.bf16.mxu0 0
        %591 = vmatmul.mubr.bf16.gmra.mxu0 %v550
        %v592 = vpop.f32.mrf.mxu0
        %v593 = vadd.f32 %v543, %v592
        %v594 = vpop.f32.mrf.mxu0
        %v595 = vadd.f32 %v545, %v594
        %v596 = vpop.f32.mrf.mxu0
        %v597 = vpop.f32.mrf.mxu0
        %598 = vdwg.mxu0
        %v601 = vunpack.c.l.s4 1966171168
        %v602 = vunpack.c.0.s8 %v601
        %v603 = vlaneseq
        %v604 = vshrl.u32 %v603, 7
        %v605 = vsub.s32 %v602, %v604
        %v606 = vrot.slane %v331, %v605
        %v607 = vcombine.high %v606, %v606
        %v609 = vunpack.c.l.s4 1966171168
        %v610 = vunpack.c.0.s8 %v609
        %v611 = vlaneseq
        %v612 = vshrl.u32 %v611, 7
        %v613 = vsub.s32 %v610, %v612
        %v614 = vrot.slane %v606, %v613
        %v616 = vunpack.c.l.s4 1966171168
        %v617 = vunpack.c.0.s8 %v616
        %v618 = vlaneseq
        %v619 = vshrl.u32 %v618, 7
        %v620 = vsub.s32 %v617, %v619
        %v621 = vrot.slane %v607, %v620
        %v623 = vpack.i.b16 %v614, %v614
        %v625 = vlaneseq
        %v626 = vshrl.u32 %v625, 7
        %v627 = vsub.s32 0, %v626
        %v628 = vrot.slane %v623, %v627
        %v630 = vpack.i.b16 %v621, %v621
        %v632 = vlaneseq
        %v633 = vshrl.u32 %v632, 7
        %v634 = vsub.s32 0, %v633
        %v635 = vrot.slane %v630, %v634
        %638 = vrot.lane.b32.xlu0 %v628, 2
        %v639 = vpop.permute.xlu0 %638
        %640 = vrot.lane.b32.xlu0 %v635, 2
        %v641 = vpop.permute.xlu0 %640
        %vm642 = vcmask 15360
        %v643 = vsel %vm642, %v639, %v641
        %v647 = vmul.bf16 %v439, %v639
        %v648 = vmul.bf16 %v434, %v643
        %v649 = vmul.bf16 %v442, %v641
        %s650 = scalar_lea.vmem %s4, 8
        %v651 = vld [vmem:[%s650] sm:$0x7]
        %655 = vrot.lane.b32.xlu0 %v647, 126
        %v656 = vpop.permute.xlu0 %655
        %657 = vrot.lane.b32.xlu0 %v648, 126
        %v658 = vpop.permute.xlu0 %657
        %659 = vrot.lane.b32.xlu0 %v649, 126
        %v660 = vpop.permute.xlu0 %659
        %vm661 = vcmask 1031168
        %v662 = vsel %vm661, %v656, %v658
        %v663 = vsel %vm661, %v658, %v660
        %v665 = vsel %vm497, %v651, 0
        %v668 = vsel %vm501, %v662, 0
        %v671 = vsel %vm501, %v663, 0
        %673 = vmatprep.subr.bf16.mxu0 0
        %674 = vmatpush1.bf16.msra.mxu0 0
        %675 = vmatprep.subr.bf16.mxu0 0
        %676 = vmatpush1.bf16.msra.mxu0 0
        %677 = vmatprep.subr.bf16.mxu0 0
        %678 = vmatpush1.bf16.msra.mxu0 0
        %679 = vmatprep.subr.bf16.mxu0 0
        %680 = vmatpush1.bf16.msra.mxu0 0
        %681 = vmatprep.subr.bf16.mxu0 0
        %682 = vmatpush1.bf16.msra.mxu0 0
        %683 = vmatprep.subr.bf16.mxu0 0
        %684 = vmatpush1.bf16.msra.mxu0 0
        %685 = vmatprep.subr.bf16.mxu0 0
        %686 = vmatpush1.bf16.msra.mxu0 0
        %687 = vmatprep.subr.bf16.mxu0 %v671
        %688 = vmatpush1.bf16.msra.mxu0 %v668
        %689 = vmatprep.subr.bf16.mxu0 0
        %690 = vmatpush2.bf16.msra.mxu0 0
        %691 = vmatprep.subr.bf16.mxu0 0
        %692 = vmatpush2.bf16.msra.mxu0 0
        %693 = vmatprep.subr.bf16.mxu0 0
        %694 = vmatpush2.bf16.msra.mxu0 0
        %695 = vmatprep.subr.bf16.mxu0 0
        %696 = vmatpush2.bf16.msra.mxu0 0
        %697 = vmatprep.subr.bf16.mxu0 0
        %698 = vmatpush2.bf16.msra.mxu0 0
        %699 = vmatprep.subr.bf16.mxu0 0
        %700 = vmatpush2.bf16.msra.mxu0 0
        %701 = vmatprep.subr.bf16.mxu0 0
        %702 = vmatpush2.bf16.msra.mxu0 0
        %703 = vmatprep.subr.bf16.mxu0 0
        %704 = vmatpush2.bf16.msra.mxu0 0
        %705 = vmatprep.mubr.bf16.mxu0 0
        %706 = vmatmul.mubr.bf16.gmra.mxu0 %v665
        %v707 = vpop.f32.mrf.mxu0
        %v708 = vadd.f32 0.0, %v707
        %v709 = vpop.f32.mrf.mxu0
        %v710 = vadd.f32 0.0, %v709
        %v711 = vpop.f32.mrf.mxu0
        %v712 = vpop.f32.mrf.mxu0
        %713 = vdwg.mxu0
        %v714 = vadd.f32 %v593, %v708
        %v715 = vadd.f32 %v595, %v710
        %718 = vrot.lane.b32.xlu0 %v473, 16
        %v719 = vpop.permute.xlu0 %718
        %720 = vrot.lane.b32.xlu0 %v480, 16
        %v721 = vpop.permute.xlu0 %720
        %vm722 = vcmask 130048
        %v723 = vsel %vm722, %v719, %v721
        %v727 = vmul.bf16 %v439, %v719
        %v728 = vmul.bf16 %v434, %v723
        %v729 = vmul.bf16 %v442, %v721
        %s730 = scalar_lea.vmem %s4, 12
        %v731 = vld [vmem:[%s730] sm:$0x7]
        %735 = vrot.lane.b32.xlu0 %v727, 112
        %v736 = vpop.permute.xlu0 %735
        %737 = vrot.lane.b32.xlu0 %v728, 112
        %v738 = vpop.permute.xlu0 %737
        %739 = vrot.lane.b32.xlu0 %v729, 112
        %v740 = vpop.permute.xlu0 %739
        %vm741 = vcmask 916480
        %v742 = vsel %vm741, %v736, %v738
        %v743 = vsel %vm741, %v738, %v740
        %v745 = vsel %vm497, %v731, 0
        %v748 = vsel %vm501, %v742, 0
        %v751 = vsel %vm501, %v743, 0
        %753 = vmatprep.subr.bf16.mxu0 0
        %754 = vmatpush1.bf16.msra.mxu0 0
        %755 = vmatprep.subr.bf16.mxu0 0
        %756 = vmatpush1.bf16.msra.mxu0 0
        %757 = vmatprep.subr.bf16.mxu0 0
        %758 = vmatpush1.bf16.msra.mxu0 0
        %759 = vmatprep.subr.bf16.mxu0 0
        %760 = vmatpush1.bf16.msra.mxu0 0
        %761 = vmatprep.subr.bf16.mxu0 0
        %762 = vmatpush1.bf16.msra.mxu0 0
        %763 = vmatprep.subr.bf16.mxu0 0
        %764 = vmatpush1.bf16.msra.mxu0 0
        %765 = vmatprep.subr.bf16.mxu0 0
        %766 = vmatpush1.bf16.msra.mxu0 0
        %767 = vmatprep.subr.bf16.mxu0 %v751
        %768 = vmatpush1.bf16.msra.mxu0 %v748
        %769 = vmatprep.subr.bf16.mxu0 0
        %770 = vmatpush2.bf16.msra.mxu0 0
        %771 = vmatprep.subr.bf16.mxu0 0
        %772 = vmatpush2.bf16.msra.mxu0 0
        %773 = vmatprep.subr.bf16.mxu0 0
        %774 = vmatpush2.bf16.msra.mxu0 0
        %775 = vmatprep.subr.bf16.mxu0 0
        %776 = vmatpush2.bf16.msra.mxu0 0
        %777 = vmatprep.subr.bf16.mxu0 0
        %778 = vmatpush2.bf16.msra.mxu0 0
        %779 = vmatprep.subr.bf16.mxu0 0
        %780 = vmatpush2.bf16.msra.mxu0 0
        %781 = vmatprep.subr.bf16.mxu0 0
        %782 = vmatpush2.bf16.msra.mxu0 0
        %783 = vmatprep.subr.bf16.mxu0 0
        %784 = vmatpush2.bf16.msra.mxu0 0
        %785 = vmatprep.mubr.bf16.mxu0 0
        %786 = vmatmul.mubr.bf16.gmra.mxu0 %v745
        %v787 = vpop.f32.mrf.mxu0
        %v788 = vadd.f32 0.0, %v787
        %v789 = vpop.f32.mrf.mxu0
        %v790 = vadd.f32 0.0, %v789
        %v791 = vpop.f32.mrf.mxu0
        %v792 = vpop.f32.mrf.mxu0
        %793 = vdwg.mxu0
        %v794 = vadd.f32 %v714, %v788
        %v795 = vadd.f32 %v715, %v790
        %s796 = scalar_lea.vmem %s4, 16
        %v797 = vld [vmem:[%s796] sm:$0x7]
        %v799 = vsel %vm497, %v797, 0
        %v802 = vsel %vm501, %v425, 0
        %v805 = vsel %vm501, %v426, 0
        %807 = vmatprep.subr.bf16.mxu0 0
        %808 = vmatpush1.bf16.msra.mxu0 0
        %809 = vmatprep.subr.bf16.mxu0 0
        %810 = vmatpush1.bf16.msra.mxu0 0
        %811 = vmatprep.subr.bf16.mxu0 0
        %812 = vmatpush1.bf16.msra.mxu0 0
        %813 = vmatprep.subr.bf16.mxu0 0
        %814 = vmatpush1.bf16.msra.mxu0 0
        %815 = vmatprep.subr.bf16.mxu0 0
        %816 = vmatpush1.bf16.msra.mxu0 0
        %817 = vmatprep.subr.bf16.mxu0 0
        %818 = vmatpush1.bf16.msra.mxu0 0
        %819 = vmatprep.subr.bf16.mxu0 0
        %820 = vmatpush1.bf16.msra.mxu0 0
        %821 = vmatprep.subr.bf16.mxu0 %v805
        %822 = vmatpush1.bf16.msra.mxu0 %v802
        %823 = vmatprep.subr.bf16.mxu0 0
        %824 = vmatpush2.bf16.msra.mxu0 0
        %825 = vmatprep.subr.bf16.mxu0 0
        %826 = vmatpush2.bf16.msra.mxu0 0
        %827 = vmatprep.subr.bf16.mxu0 0
        %828 = vmatpush2.bf16.msra.mxu0 0
        %829 = vmatprep.subr.bf16.mxu0 0
        %830 = vmatpush2.bf16.msra.mxu0 0
        %831 = vmatprep.subr.bf16.mxu0 0
        %832 = vmatpush2.bf16.msra.mxu0 0
        %833 = vmatprep.subr.bf16.mxu0 0
        %834 = vmatpush2.bf16.msra.mxu0 0
        %835 = vmatprep.subr.bf16.mxu0 0
        %836 = vmatpush2.bf16.msra.mxu0 0
        %837 = vmatprep.subr.bf16.mxu0 0
        %838 = vmatpush2.bf16.msra.mxu0 0
        %839 = vmatprep.mubr.bf16.mxu0 0
        %840 = vmatmul.mubr.bf16.gmra.mxu0 %v799
        %v841 = vpop.f32.mrf.mxu0
        %v842 = vadd.f32 0.0, %v841
        %v843 = vpop.f32.mrf.mxu0
        %v844 = vadd.f32 0.0, %v843
        %v845 = vpop.f32.mrf.mxu0
        %v846 = vpop.f32.mrf.mxu0
        %847 = vdwg.mxu0
        %v848 = vadd.f32 %v794, %v842
        %v849 = vadd.f32 %v795, %v844
        %850 = vrot.lane.b32.xlu0 %v628, 18
        %v851 = vpop.permute.xlu0 %850
        %852 = vrot.lane.b32.xlu0 %v635, 18
        %v853 = vpop.permute.xlu0 %852
        %vm854 = vcmask 146432
        %v855 = vsel %vm854, %v851, %v853
        %v859 = vmul.bf16 %v439, %v851
        %v860 = vmul.bf16 %v434, %v855
        %v861 = vmul.bf16 %v442, %v853
        %s862 = scalar_lea.vmem %s4, 20
        %v863 = vld [vmem:[%s862] sm:$0x7]
        %867 = vrot.lane.b32.xlu0 %v859, 110
        %v868 = vpop.permute.xlu0 %867
        %869 = vrot.lane.b32.xlu0 %v860, 110
        %v870 = vpop.permute.xlu0 %869
        %871 = vrot.lane.b32.xlu0 %v861, 110
        %v872 = vpop.permute.xlu0 %871
        %vm873 = vcmask 900096
        %v874 = vsel %vm873, %v868, %v870
        %v875 = vsel %vm873, %v870, %v872
        %v877 = vsel %vm497, %v863, 0
        %v880 = vsel %vm501, %v874, 0
        %v883 = vsel %vm501, %v875, 0
        %885 = vmatprep.subr.bf16.mxu0 0
        %886 = vmatpush1.bf16.msra.mxu0 0
        %887 = vmatprep.subr.bf16.mxu0 0
        %888 = vmatpush1.bf16.msra.mxu0 0
        %889 = vmatprep.subr.bf16.mxu0 0
        %890 = vmatpush1.bf16.msra.mxu0 0
        %891 = vmatprep.subr.bf16.mxu0 0
        %892 = vmatpush1.bf16.msra.mxu0 0
        %893 = vmatprep.subr.bf16.mxu0 0
        %894 = vmatpush1.bf16.msra.mxu0 0
        %895 = vmatprep.subr.bf16.mxu0 0
        %896 = vmatpush1.bf16.msra.mxu0 0
        %897 = vmatprep.subr.bf16.mxu0 0
        %898 = vmatpush1.bf16.msra.mxu0 0
        %899 = vmatprep.subr.bf16.mxu0 %v883
        %900 = vmatpush1.bf16.msra.mxu0 %v880
        %901 = vmatprep.subr.bf16.mxu0 0
        %902 = vmatpush2.bf16.msra.mxu0 0
        %903 = vmatprep.subr.bf16.mxu0 0
        %904 = vmatpush2.bf16.msra.mxu0 0
        %905 = vmatprep.subr.bf16.mxu0 0
        %906 = vmatpush2.bf16.msra.mxu0 0
        %907 = vmatprep.subr.bf16.mxu0 0
        %908 = vmatpush2.bf16.msra.mxu0 0
        %909 = vmatprep.subr.bf16.mxu0 0
        %910 = vmatpush2.bf16.msra.mxu0 0
        %911 = vmatprep.subr.bf16.mxu0 0
        %912 = vmatpush2.bf16.msra.mxu0 0
        %913 = vmatprep.subr.bf16.mxu0 0
        %914 = vmatpush2.bf16.msra.mxu0 0
        %915 = vmatprep.subr.bf16.mxu0 0
        %916 = vmatpush2.bf16.msra.mxu0 0
        %917 = vmatprep.mubr.bf16.mxu0 0
        %918 = vmatmul.mubr.bf16.gmra.mxu0 %v877
        %v919 = vpop.f32.mrf.mxu0
        %v920 = vadd.f32 0.0, %v919
        %v921 = vpop.f32.mrf.mxu0
        %v922 = vadd.f32 0.0, %v921
        %v923 = vpop.f32.mrf.mxu0
        %v924 = vpop.f32.mrf.mxu0
        %925 = vdwg.mxu0
        %v926 = vadd.f32 %v848, %v920
        %v927 = vadd.f32 %v849, %v922
        %928 = vrot.lane.b32.xlu0 %v473, 32
        %v929 = vpop.permute.xlu0 %928
        %930 = vrot.lane.b32.xlu0 %v480, 32
        %v931 = vpop.permute.xlu0 %930
        %vm932 = vcmask 261120
        %v933 = vsel %vm932, %v929, %v931
        %v937 = vmul.bf16 %v439, %v929
        %v938 = vmul.bf16 %v434, %v933
        %v939 = vmul.bf16 %v442, %v931
        %s940 = scalar_lea.vmem %s4, 24
        %v941 = vld [vmem:[%s940] sm:$0x7]
        %945 = vrot.lane.b32.xlu0 %v937, 96
        %v946 = vpop.permute.xlu0 %945
        %947 = vrot.lane.b32.xlu0 %v938, 96
        %v948 = vpop.permute.xlu0 %947
        %949 = vrot.lane.b32.xlu0 %v939, 96
        %v950 = vpop.permute.xlu0 %949
        %vm951 = vcmask 785408
        %v952 = vsel %vm951, %v946, %v948
        %v953 = vsel %vm951, %v948, %v950
        %v955 = vsel %vm497, %v941, 0
        %v958 = vsel %vm501, %v952, 0
        %v961 = vsel %vm501, %v953, 0
        %963 = vmatprep.subr.bf16.mxu0 0
        %964 = vmatpush1.bf16.msra.mxu0 0
        %965 = vmatprep.subr.bf16.mxu0 0
        %966 = vmatpush1.bf16.msra.mxu0 0
        %967 = vmatprep.subr.bf16.mxu0 0
        %968 = vmatpush1.bf16.msra.mxu0 0
        %969 = vmatprep.subr.bf16.mxu0 0
        %970 = vmatpush1.bf16.msra.mxu0 0
        %971 = vmatprep.subr.bf16.mxu0 0
        %972 = vmatpush1.bf16.msra.mxu0 0
        %973 = vmatprep.subr.bf16.mxu0 0
        %974 = vmatpush1.bf16.msra.mxu0 0
        %975 = vmatprep.subr.bf16.mxu0 0
        %976 = vmatpush1.bf16.msra.mxu0 0
        %977 = vmatprep.subr.bf16.mxu0 %v961
        %978 = vmatpush1.bf16.msra.mxu0 %v958
        %979 = vmatprep.subr.bf16.mxu0 0
        %980 = vmatpush2.bf16.msra.mxu0 0
        %981 = vmatprep.subr.bf16.mxu0 0
        %982 = vmatpush2.bf16.msra.mxu0 0
        %983 = vmatprep.subr.bf16.mxu0 0
        %984 = vmatpush2.bf16.msra.mxu0 0
        %985 = vmatprep.subr.bf16.mxu0 0
        %986 = vmatpush2.bf16.msra.mxu0 0
        %987 = vmatprep.subr.bf16.mxu0 0
        %988 = vmatpush2.bf16.msra.mxu0 0
        %989 = vmatprep.subr.bf16.mxu0 0
        %990 = vmatpush2.bf16.msra.mxu0 0
        %991 = vmatprep.subr.bf16.mxu0 0
        %992 = vmatpush2.bf16.msra.mxu0 0
        %993 = vmatprep.subr.bf16.mxu0 0
        %994 = vmatpush2.bf16.msra.mxu0 0
        %995 = vmatprep.mubr.bf16.mxu0 0
        %996 = vmatmul.mubr.bf16.gmra.mxu0 %v955
        %v997 = vpop.f32.mrf.mxu0
        %v998 = vadd.f32 0.0, %v997
        %v999 = vpop.f32.mrf.mxu0
        %v1000 = vadd.f32 0.0, %v999
        %v1001 = vpop.f32.mrf.mxu0
        %v1002 = vpop.f32.mrf.mxu0
        %1003 = vdwg.mxu0
        %v1004 = vadd.f32 %v926, %v998
        %v1005 = vadd.f32 %v927, %v1000
        %s1006 = scalar_lea.vmem %s4, 28
        %v1007 = vld [vmem:[%s1006] sm:$0x7]
        %1008 = vrot.lane.b32.xlu0 %v439, 95
        %v1009 = vpop.permute.xlu0 %1008
        %1010 = vrot.lane.b32.xlu0 %v434, 95
        %v1011 = vpop.permute.xlu0 %1010
        %1012 = vrot.lane.b32.xlu0 %v442, 95
        %v1013 = vpop.permute.xlu0 %1012
        %vm1014 = vcmask 777216
        %v1015 = vsel %vm1014, %v1009, %v1011
        %v1016 = vsel %vm1014, %v1011, %v1013
        %v1018 = vsel %vm497, %v1007, 0
        %v1021 = vsel %vm501, %v1015, 0
        %v1024 = vsel %vm501, %v1016, 0
        %1026 = vmatprep.subr.bf16.mxu0 0
        %1027 = vmatpush1.bf16.msra.mxu0 0
        %1028 = vmatprep.subr.bf16.mxu0 0
        %1029 = vmatpush1.bf16.msra.mxu0 0
        %1030 = vmatprep.subr.bf16.mxu0 0
        %1031 = vmatpush1.bf16.msra.mxu0 0
        %1032 = vmatprep.subr.bf16.mxu0 0
        %1033 = vmatpush1.bf16.msra.mxu0 0
        %1034 = vmatprep.subr.bf16.mxu0 0
        %1035 = vmatpush1.bf16.msra.mxu0 0
        %1036 = vmatprep.subr.bf16.mxu0 0
        %1037 = vmatpush1.bf16.msra.mxu0 0
        %1038 = vmatprep.subr.bf16.mxu0 0
        %1039 = vmatpush1.bf16.msra.mxu0 0
        %1040 = vmatprep.subr.bf16.mxu0 %v1024
        %1041 = vmatpush1.bf16.msra.mxu0 %v1021
        %1042 = vmatprep.subr.bf16.mxu0 0
        %1043 = vmatpush2.bf16.msra.mxu0 0
        %1044 = vmatprep.subr.bf16.mxu0 0
        %1045 = vmatpush2.bf16.msra.mxu0 0
        %1046 = vmatprep.subr.bf16.mxu0 0
        %1047 = vmatpush2.bf16.msra.mxu0 0
        %1048 = vmatprep.subr.bf16.mxu0 0
        %1049 = vmatpush2.bf16.msra.mxu0 0
        %1050 = vmatprep.subr.bf16.mxu0 0
        %1051 = vmatpush2.bf16.msra.mxu0 0
        %1052 = vmatprep.subr.bf16.mxu0 0
        %1053 = vmatpush2.bf16.msra.mxu0 0
        %1054 = vmatprep.subr.bf16.mxu0 0
        %1055 = vmatpush2.bf16.msra.mxu0 0
        %1056 = vmatprep.subr.bf16.mxu0 0
        %1057 = vmatpush2.bf16.msra.mxu0 0
        %1058 = vmatprep.mubr.bf16.mxu0 0
        %1059 = vmatmul.mubr.bf16.gmra.mxu0 %v1018
        %v1060 = vpop.f32.mrf.mxu0
        %v1061 = vadd.f32 0.0, %v1060
        %v1062 = vpop.f32.mrf.mxu0
        %v1063 = vadd.f32 0.0, %v1062
        %v1064 = vpop.f32.mrf.mxu0
        %v1065 = vpop.f32.mrf.mxu0
        %1066 = vdwg.mxu0
        %v1067 = vadd.f32 %v1004, %v1061
        %v1068 = vadd.f32 %v1005, %v1063
        %1069 = vrot.lane.b32.xlu0 %v628, 34
        %v1070 = vpop.permute.xlu0 %1069
        %1071 = vrot.lane.b32.xlu0 %v635, 34
        %v1072 = vpop.permute.xlu0 %1071
        %vm1073 = vcmask 277504
        %v1074 = vsel %vm1073, %v1070, %v1072
        %v1078 = vmul.bf16 %v439, %v1070
        %v1079 = vmul.bf16 %v434, %v1074
        %v1080 = vmul.bf16 %v442, %v1072
        %s1081 = scalar_lea.vmem %s4, 32
        %v1082 = vld [vmem:[%s1081] sm:$0x7]
        %1086 = vrot.lane.b32.xlu0 %v1078, 94
        %v1087 = vpop.permute.xlu0 %1086
        %1088 = vrot.lane.b32.xlu0 %v1079, 94
        %v1089 = vpop.permute.xlu0 %1088
        %1090 = vrot.lane.b32.xlu0 %v1080, 94
        %v1091 = vpop.permute.xlu0 %1090
        %vm1092 = vcmask 769024
        %v1093 = vsel %vm1092, %v1087, %v1089
        %v1094 = vsel %vm1092, %v1089, %v1091
        %v1096 = vsel %vm497, %v1082, 0
        %v1099 = vsel %vm501, %v1093, 0
        %v1102 = vsel %vm501, %v1094, 0
        %1104 = vmatprep.subr.bf16.mxu0 0
        %1105 = vmatpush1.bf16.msra.mxu0 0
        %1106 = vmatprep.subr.bf16.mxu0 0
        %1107 = vmatpush1.bf16.msra.mxu0 0
        %1108 = vmatprep.subr.bf16.mxu0 0
        %1109 = vmatpush1.bf16.msra.mxu0 0
        %1110 = vmatprep.subr.bf16.mxu0 0
        %1111 = vmatpush1.bf16.msra.mxu0 0
        %1112 = vmatprep.subr.bf16.mxu0 0
        %1113 = vmatpush1.bf16.msra.mxu0 0
        %1114 = vmatprep.subr.bf16.mxu0 0
        %1115 = vmatpush1.bf16.msra.mxu0 0
        %1116 = vmatprep.subr.bf16.mxu0 0
        %1117 = vmatpush1.bf16.msra.mxu0 0
        %1118 = vmatprep.subr.bf16.mxu0 %v1102
        %1119 = vmatpush1.bf16.msra.mxu0 %v1099
        %1120 = vmatprep.subr.bf16.mxu0 0
        %1121 = vmatpush2.bf16.msra.mxu0 0
        %1122 = vmatprep.subr.bf16.mxu0 0
        %1123 = vmatpush2.bf16.msra.mxu0 0
        %1124 = vmatprep.subr.bf16.mxu0 0
        %1125 = vmatpush2.bf16.msra.mxu0 0
        %1126 = vmatprep.subr.bf16.mxu0 0
        %1127 = vmatpush2.bf16.msra.mxu0 0
        %1128 = vmatprep.subr.bf16.mxu0 0
        %1129 = vmatpush2.bf16.msra.mxu0 0
        %1130 = vmatprep.subr.bf16.mxu0 0
        %1131 = vmatpush2.bf16.msra.mxu0 0
        %1132 = vmatprep.subr.bf16.mxu0 0
        %1133 = vmatpush2.bf16.msra.mxu0 0
        %1134 = vmatprep.subr.bf16.mxu0 0
        %1135 = vmatpush2.bf16.msra.mxu0 0
        %1136 = vmatprep.mubr.bf16.mxu0 0
        %1137 = vmatmul.mubr.bf16.gmra.mxu0 %v1096
        %v1138 = vpop.f32.mrf.mxu0
        %v1139 = vadd.f32 0.0, %v1138
        %v1140 = vpop.f32.mrf.mxu0
        %v1141 = vadd.f32 0.0, %v1140
        %v1142 = vpop.f32.mrf.mxu0
        %v1143 = vpop.f32.mrf.mxu0
        %1144 = vdwg.mxu0
        %v1145 = vadd.f32 %v1067, %v1139
        %v1146 = vadd.f32 %v1068, %v1141
        %v1147 = vld [vmem:[%s5] sm:$0x3f]
        %1149 = vset.pattern.permute.xlu0 0
        %1150 = vperm.xlu0 %1149, %v1147
        %v1151 = vpop.permute.xlu0 %1150
        %v1153 = vadd.f32 %v1145, %v1151
        %v1154 = vadd.f32 %v1146, %v1151
        %v1155 = vmax.f32 %v1153, 0.0
        %v1156 = vmax.f32 %v1154, 0.0
        %v1157 = vld [vmem:[%s6] sm:$0xf]
        %v1158 = vld [vmem:[%s6 + $0x4] sm:$0xf]
        %v1159 = vld [vmem:[%s6 + $0x8] sm:$0xf]
        %v1160 = vld [vmem:[%s6 + $0xc] sm:$0xf]
        %v1161 = vld [vmem:[%s6 + $0x10] sm:$0xf]
        %v1162 = vld [vmem:[%s6 + $0x14] sm:$0xf]
        %v1163 = vld [vmem:[%s6 + $0x18] sm:$0xf]
        %v1164 = vld [vmem:[%s6 + $0x1c] sm:$0xf]
        %v1165 = vpack.c.bf16 %v1155, %v1155
        %v1166 = vpack.c.bf16 %v1156, %v1156
        %vm1171 = vcmask 1041408
        %v1172 = vrot.slane %v419, 6
        %v1173 = vrot.slane %v421, 6
        %v1174 = vsel %vm1171, %v1172, %v1173
        %v1175 = vrot.slane %v420, 6
        %v1176 = vrot.slane %v422, 6
        %v1177 = vsel %vm1171, %v1175, %v1176
        %v1180 = vadd.f32 %v1155, %v1174
        %v1181 = vadd.f32 %v1156, %v1177
        %v1182 = vpack.c.bf16 %v1180, %v1180
        %v1183 = vpack.c.bf16 %v1181, %v1181
        %1186 = vrot.lane.b32.xlu0 %v1182, 17
        %v1187 = vpop.permute.xlu0 %1186
        %1188 = vrot.lane.b32.xlu0 %v1183, 17
        %v1189 = vpop.permute.xlu0 %1188
        %v1190 = vsel %vm433, %v1187, %v1189
        %v1193 = vsel %vm436, 0, %v1187
        %v1196 = vsel %vm436, %v1189, 0
        %v1198 = vmul.bf16 %v1193, %v473
        %v1199 = vmul.bf16 %v1190, %v480
        %s1200 = scalar_lea.vmem %s4, 36
        %v1201 = vld [vmem:[%s1200] sm:$0x7]
        %s1202 = scalar_lea.vmem %s4, 40
        %v1203 = vld [vmem:[%s1202] sm:$0x7]
        %1206 = vrot.lane.b32.xlu0 %v1193, 127
        %v1207 = vpop.permute.xlu0 %1206
        %1208 = vrot.lane.b32.xlu0 %v1190, 127
        %v1209 = vpop.permute.xlu0 %1208
        %1210 = vrot.lane.b32.xlu0 %v1196, 127
        %v1211 = vpop.permute.xlu0 %1210
        %v1212 = vsel %vm494, %v1207, %v1209
        %v1213 = vsel %vm494, %v1209, %v1211
        %v1215 = vsel %vm497, %v1203, 0
        %v1218 = vsel %vm501, %v1212, 0
        %v1221 = vsel %vm501, %v1213, 0
        %1223 = vmatprep.subr.bf16.mxu0 0
        %1224 = vmatpush1.bf16.msra.mxu0 0
        %1225 = vmatprep.subr.bf16.mxu0 0
        %1226 = vmatpush1.bf16.msra.mxu0 0
        %1227 = vmatprep.subr.bf16.mxu0 0
        %1228 = vmatpush1.bf16.msra.mxu0 0
        %1229 = vmatprep.subr.bf16.mxu0 0
        %1230 = vmatpush1.bf16.msra.mxu0 0
        %1231 = vmatprep.subr.bf16.mxu0 0
        %1232 = vmatpush1.bf16.msra.mxu0 0
        %1233 = vmatprep.subr.bf16.mxu0 0
        %1234 = vmatpush1.bf16.msra.mxu0 0
        %1235 = vmatprep.subr.bf16.mxu0 0
        %1236 = vmatpush1.bf16.msra.mxu0 0
        %1237 = vmatprep.subr.bf16.mxu0 %v1221
        %1238 = vmatpush1.bf16.msra.mxu0 %v1218
        %1239 = vmatprep.subr.bf16.mxu0 0
        %1240 = vmatpush2.bf16.msra.mxu0 0
        %1241 = vmatprep.subr.bf16.mxu0 0
        %1242 = vmatpush2.bf16.msra.mxu0 0
        %1243 = vmatprep.subr.bf16.mxu0 0
        %1244 = vmatpush2.bf16.msra.mxu0 0
        %1245 = vmatprep.subr.bf16.mxu0 0
        %1246 = vmatpush2.bf16.msra.mxu0 0
        %1247 = vmatprep.subr.bf16.mxu0 0
        %1248 = vmatpush2.bf16.msra.mxu0 0
        %1249 = vmatprep.subr.bf16.mxu0 0
        %1250 = vmatpush2.bf16.msra.mxu0 0
        %1251 = vmatprep.subr.bf16.mxu0 0
        %1252 = vmatpush2.bf16.msra.mxu0 0
        %1253 = vmatprep.subr.bf16.mxu0 0
        %1254 = vmatpush2.bf16.msra.mxu0 0
        %1255 = vmatprep.mubr.bf16.mxu0 0
        %1256 = vmatmul.mubr.bf16.gmra.mxu0 %v1215
        %v1257 = vpop.f32.mrf.mxu0
        %v1258 = vadd.f32 0.0, %v1257
        %v1259 = vpop.f32.mrf.mxu0
        %v1260 = vadd.f32 0.0, %v1259
        %v1261 = vpop.f32.mrf.mxu0
        %v1262 = vpop.f32.mrf.mxu0
        %1263 = vdwg.mxu0
        %v1265 = vsel %vm497, %v1201, 0
        %v1268 = vsel %vm501, %v1198, 0
        %v1271 = vsel %vm501, %v1199, 0
        %1273 = vmatprep.subr.bf16.mxu0 0
        %1274 = vmatpush1.bf16.msra.mxu0 0
        %1275 = vmatprep.subr.bf16.mxu0 0
        %1276 = vmatpush1.bf16.msra.mxu0 0
        %1277 = vmatprep.subr.bf16.mxu0 0
        %1278 = vmatpush1.bf16.msra.mxu0 0
        %1279 = vmatprep.subr.bf16.mxu0 0
        %1280 = vmatpush1.bf16.msra.mxu0 0
        %1281 = vmatprep.subr.bf16.mxu0 0
        %1282 = vmatpush1.bf16.msra.mxu0 0
        %1283 = vmatprep.subr.bf16.mxu0 0
        %1284 = vmatpush1.bf16.msra.mxu0 0
        %1285 = vmatprep.subr.bf16.mxu0 0
        %1286 = vmatpush1.bf16.msra.mxu0 0
        %1287 = vmatprep.subr.bf16.mxu0 %v1271
        %1288 = vmatpush1.bf16.msra.mxu0 %v1268
        %1289 = vmatprep.subr.bf16.mxu0 0
        %1290 = vmatpush2.bf16.msra.mxu0 0
        %1291 = vmatprep.subr.bf16.mxu0 0
        %1292 = vmatpush2.bf16.msra.mxu0 0
        %1293 = vmatprep.subr.bf16.mxu0 0
        %1294 = vmatpush2.bf16.msra.mxu0 0
        %1295 = vmatprep.subr.bf16.mxu0 0
        %1296 = vmatpush2.bf16.msra.mxu0 0
        %1297 = vmatprep.subr.bf16.mxu0 0
        %1298 = vmatpush2.bf16.msra.mxu0 0
        %1299 = vmatprep.subr.bf16.mxu0 0
        %1300 = vmatpush2.bf16.msra.mxu0 0
        %1301 = vmatprep.subr.bf16.mxu0 0
        %1302 = vmatpush2.bf16.msra.mxu0 0
        %1303 = vmatprep.subr.bf16.mxu0 0
        %1304 = vmatpush2.bf16.msra.mxu0 0
        %1305 = vmatprep.mubr.bf16.mxu0 0
        %1306 = vmatmul.mubr.bf16.gmra.mxu0 %v1265
        %v1307 = vpop.f32.mrf.mxu0
        %v1308 = vadd.f32 %v1258, %v1307
        %v1309 = vpop.f32.mrf.mxu0
        %v1310 = vadd.f32 %v1260, %v1309
        %v1311 = vpop.f32.mrf.mxu0
        %v1312 = vpop.f32.mrf.mxu0
        %1313 = vdwg.mxu0
        %v1314 = vmul.bf16 %v1193, %v639
        %v1315 = vmul.bf16 %v1190, %v643
        %v1316 = vmul.bf16 %v1196, %v641
        %s1317 = scalar_lea.vmem %s4, 44
        %v1318 = vld [vmem:[%s1317] sm:$0x7]
        %1322 = vrot.lane.b32.xlu0 %v1314, 126
        %v1323 = vpop.permute.xlu0 %1322
        %1324 = vrot.lane.b32.xlu0 %v1315, 126
        %v1325 = vpop.permute.xlu0 %1324
        %1326 = vrot.lane.b32.xlu0 %v1316, 126
        %v1327 = vpop.permute.xlu0 %1326
        %v1328 = vsel %vm661, %v1323, %v1325
        %v1329 = vsel %vm661, %v1325, %v1327
        %v1331 = vsel %vm497, %v1318, 0
        %v1334 = vsel %vm501, %v1328, 0
        %v1337 = vsel %vm501, %v1329, 0
        %1339 = vmatprep.subr.bf16.mxu0 0
        %1340 = vmatpush1.bf16.msra.mxu0 0
        %1341 = vmatprep.subr.bf16.mxu0 0
        %1342 = vmatpush1.bf16.msra.mxu0 0
        %1343 = vmatprep.subr.bf16.mxu0 0
        %1344 = vmatpush1.bf16.msra.mxu0 0
        %1345 = vmatprep.subr.bf16.mxu0 0
        %1346 = vmatpush1.bf16.msra.mxu0 0
        %1347 = vmatprep.subr.bf16.mxu0 0
        %1348 = vmatpush1.bf16.msra.mxu0 0
        %1349 = vmatprep.subr.bf16.mxu0 0
        %1350 = vmatpush1.bf16.msra.mxu0 0
        %1351 = vmatprep.subr.bf16.mxu0 0
        %1352 = vmatpush1.bf16.msra.mxu0 0
        %1353 = vmatprep.subr.bf16.mxu0 %v1337
        %1354 = vmatpush1.bf16.msra.mxu0 %v1334
        %1355 = vmatprep.subr.bf16.mxu0 0
        %1356 = vmatpush2.bf16.msra.mxu0 0
        %1357 = vmatprep.subr.bf16.mxu0 0
        %1358 = vmatpush2.bf16.msra.mxu0 0
        %1359 = vmatprep.subr.bf16.mxu0 0
        %1360 = vmatpush2.bf16.msra.mxu0 0
        %1361 = vmatprep.subr.bf16.mxu0 0
        %1362 = vmatpush2.bf16.msra.mxu0 0
        %1363 = vmatprep.subr.bf16.mxu0 0
        %1364 = vmatpush2.bf16.msra.mxu0 0
        %1365 = vmatprep.subr.bf16.mxu0 0
        %1366 = vmatpush2.bf16.msra.mxu0 0
        %1367 = vmatprep.subr.bf16.mxu0 0
        %1368 = vmatpush2.bf16.msra.mxu0 0
        %1369 = vmatprep.subr.bf16.mxu0 0
        %1370 = vmatpush2.bf16.msra.mxu0 0
        %1371 = vmatprep.mubr.bf16.mxu0 0
        %1372 = vmatmul.mubr.bf16.gmra.mxu0 %v1331
        %v1373 = vpop.f32.mrf.mxu0
        %v1374 = vadd.f32 0.0, %v1373
        %v1375 = vpop.f32.mrf.mxu0
        %v1376 = vadd.f32 0.0, %v1375
        %v1377 = vpop.f32.mrf.mxu0
        %v1378 = vpop.f32.mrf.mxu0
        %1379 = vdwg.mxu0
        %v1380 = vadd.f32 %v1308, %v1374
        %v1381 = vadd.f32 %v1310, %v1376
        %v1382 = vmul.bf16 %v1193, %v719
        %v1383 = vmul.bf16 %v1190, %v723
        %v1384 = vmul.bf16 %v1196, %v721
        %s1385 = scalar_lea.vmem %s4, 48
        %v1386 = vld [vmem:[%s1385] sm:$0x7]
        %1390 = vrot.lane.b32.xlu0 %v1382, 112
        %v1391 = vpop.permute.xlu0 %1390
        %1392 = vrot.lane.b32.xlu0 %v1383, 112
        %v1393 = vpop.permute.xlu0 %1392
        %1394 = vrot.lane.b32.xlu0 %v1384, 112
        %v1395 = vpop.permute.xlu0 %1394
        %v1396 = vsel %vm741, %v1391, %v1393
        %v1397 = vsel %vm741, %v1393, %v1395
        %v1399 = vsel %vm497, %v1386, 0
        %v1402 = vsel %vm501, %v1396, 0
        %v1405 = vsel %vm501, %v1397, 0
        %1407 = vmatprep.subr.bf16.mxu0 0
        %1408 = vmatpush1.bf16.msra.mxu0 0
        %1409 = vmatprep.subr.bf16.mxu0 0
        %1410 = vmatpush1.bf16.msra.mxu0 0
        %1411 = vmatprep.subr.bf16.mxu0 0
        %1412 = vmatpush1.bf16.msra.mxu0 0
        %1413 = vmatprep.subr.bf16.mxu0 0
        %1414 = vmatpush1.bf16.msra.mxu0 0
        %1415 = vmatprep.subr.bf16.mxu0 0
        %1416 = vmatpush1.bf16.msra.mxu0 0
        %1417 = vmatprep.subr.bf16.mxu0 0
        %1418 = vmatpush1.bf16.msra.mxu0 0
        %1419 = vmatprep.subr.bf16.mxu0 0
        %1420 = vmatpush1.bf16.msra.mxu0 0
        %1421 = vmatprep.subr.bf16.mxu0 %v1405
        %1422 = vmatpush1.bf16.msra.mxu0 %v1402
        %1423 = vmatprep.subr.bf16.mxu0 0
        %1424 = vmatpush2.bf16.msra.mxu0 0
        %1425 = vmatprep.subr.bf16.mxu0 0
        %1426 = vmatpush2.bf16.msra.mxu0 0
        %1427 = vmatprep.subr.bf16.mxu0 0
        %1428 = vmatpush2.bf16.msra.mxu0 0
        %1429 = vmatprep.subr.bf16.mxu0 0
        %1430 = vmatpush2.bf16.msra.mxu0 0
        %1431 = vmatprep.subr.bf16.mxu0 0
        %1432 = vmatpush2.bf16.msra.mxu0 0
        %1433 = vmatprep.subr.bf16.mxu0 0
        %1434 = vmatpush2.bf16.msra.mxu0 0
        %1435 = vmatprep.subr.bf16.mxu0 0
        %1436 = vmatpush2.bf16.msra.mxu0 0
        %1437 = vmatprep.subr.bf16.mxu0 0
        %1438 = vmatpush2.bf16.msra.mxu0 0
        %1439 = vmatprep.mubr.bf16.mxu0 0
        %1440 = vmatmul.mubr.bf16.gmra.mxu0 %v1399
        %v1441 = vpop.f32.mrf.mxu0
        %v1442 = vadd.f32 0.0, %v1441
        %v1443 = vpop.f32.mrf.mxu0
        %v1444 = vadd.f32 0.0, %v1443
        %v1445 = vpop.f32.mrf.mxu0
        %v1446 = vpop.f32.mrf.mxu0
        %1447 = vdwg.mxu0
        %v1448 = vadd.f32 %v1380, %v1442
        %v1449 = vadd.f32 %v1381, %v1444
        %s1450 = scalar_lea.vmem %s4, 52
        %v1451 = vld [vmem:[%s1450] sm:$0x7]
        %v1453 = vsel %vm497, %v1451, 0
        %v1456 = vsel %vm501, %v1182, 0
        %v1459 = vsel %vm501, %v1183, 0
        %1461 = vmatprep.subr.bf16.mxu0 0
        %1462 = vmatpush1.bf16.msra.mxu0 0
        %1463 = vmatprep.subr.bf16.mxu0 0
        %1464 = vmatpush1.bf16.msra.mxu0 0
        %1465 = vmatprep.subr.bf16.mxu0 0
        %1466 = vmatpush1.bf16.msra.mxu0 0
        %1467 = vmatprep.subr.bf16.mxu0 0
        %1468 = vmatpush1.bf16.msra.mxu0 0
        %1469 = vmatprep.subr.bf16.mxu0 0
        %1470 = vmatpush1.bf16.msra.mxu0 0
        %1471 = vmatprep.subr.bf16.mxu0 0
        %1472 = vmatpush1.bf16.msra.mxu0 0
        %1473 = vmatprep.subr.bf16.mxu0 0
        %1474 = vmatpush1.bf16.msra.mxu0 0
        %1475 = vmatprep.subr.bf16.mxu0 %v1459
        %1476 = vmatpush1.bf16.msra.mxu0 %v1456
        %1477 = vmatprep.subr.bf16.mxu0 0
        %1478 = vmatpush2.bf16.msra.mxu0 0
        %1479 = vmatprep.subr.bf16.mxu0 0
        %1480 = vmatpush2.bf16.msra.mxu0 0
        %1481 = vmatprep.subr.bf16.mxu0 0
        %1482 = vmatpush2.bf16.msra.mxu0 0
        %1483 = vmatprep.subr.bf16.mxu0 0
        %1484 = vmatpush2.bf16.msra.mxu0 0
        %1485 = vmatprep.subr.bf16.mxu0 0
        %1486 = vmatpush2.bf16.msra.mxu0 0
        %1487 = vmatprep.subr.bf16.mxu0 0
        %1488 = vmatpush2.bf16.msra.mxu0 0
        %1489 = vmatprep.subr.bf16.mxu0 0
        %1490 = vmatpush2.bf16.msra.mxu0 0
        %1491 = vmatprep.subr.bf16.mxu0 0
        %1492 = vmatpush2.bf16.msra.mxu0 0
        %1493 = vmatprep.mubr.bf16.mxu0 0
        %1494 = vmatmul.mubr.bf16.gmra.mxu0 %v1453
        %v1495 = vpop.f32.mrf.mxu0
        %v1496 = vadd.f32 0.0, %v1495
        %v1497 = vpop.f32.mrf.mxu0
        %v1498 = vadd.f32 0.0, %v1497
        %v1499 = vpop.f32.mrf.mxu0
        %v1500 = vpop.f32.mrf.mxu0
        %1501 = vdwg.mxu0
        %v1502 = vadd.f32 %v1448, %v1496
        %v1503 = vadd.f32 %v1449, %v1498
        %v1504 = vmul.bf16 %v1193, %v851
        %v1505 = vmul.bf16 %v1190, %v855
        %v1506 = vmul.bf16 %v1196, %v853
        %s1507 = scalar_lea.vmem %s4, 56
        %v1508 = vld [vmem:[%s1507] sm:$0x7]
        %1512 = vrot.lane.b32.xlu0 %v1504, 110
        %v1513 = vpop.permute.xlu0 %1512
        %1514 = vrot.lane.b32.xlu0 %v1505, 110
        %v1515 = vpop.permute.xlu0 %1514
        %1516 = vrot.lane.b32.xlu0 %v1506, 110
        %v1517 = vpop.permute.xlu0 %1516
        %v1518 = vsel %vm873, %v1513, %v1515
        %v1519 = vsel %vm873, %v1515, %v1517
        %v1521 = vsel %vm497, %v1508, 0
        %v1524 = vsel %vm501, %v1518, 0
        %v1527 = vsel %vm501, %v1519, 0
        %1529 = vmatprep.subr.bf16.mxu0 0
        %1530 = vmatpush1.bf16.msra.mxu0 0
        %1531 = vmatprep.subr.bf16.mxu0 0
        %1532 = vmatpush1.bf16.msra.mxu0 0
        %1533 = vmatprep.subr.bf16.mxu0 0
        %1534 = vmatpush1.bf16.msra.mxu0 0
        %1535 = vmatprep.subr.bf16.mxu0 0
        %1536 = vmatpush1.bf16.msra.mxu0 0
        %1537 = vmatprep.subr.bf16.mxu0 0
        %1538 = vmatpush1.bf16.msra.mxu0 0
        %1539 = vmatprep.subr.bf16.mxu0 0
        %1540 = vmatpush1.bf16.msra.mxu0 0
        %1541 = vmatprep.subr.bf16.mxu0 0
        %1542 = vmatpush1.bf16.msra.mxu0 0
        %1543 = vmatprep.subr.bf16.mxu0 %v1527
        %1544 = vmatpush1.bf16.msra.mxu0 %v1524
        %1545 = vmatprep.subr.bf16.mxu0 0
        %1546 = vmatpush2.bf16.msra.mxu0 0
        %1547 = vmatprep.subr.bf16.mxu0 0
        %1548 = vmatpush2.bf16.msra.mxu0 0
        %1549 = vmatprep.subr.bf16.mxu0 0
        %1550 = vmatpush2.bf16.msra.mxu0 0
        %1551 = vmatprep.subr.bf16.mxu0 0
        %1552 = vmatpush2.bf16.msra.mxu0 0
        %1553 = vmatprep.subr.bf16.mxu0 0
        %1554 = vmatpush2.bf16.msra.mxu0 0
        %1555 = vmatprep.subr.bf16.mxu0 0
        %1556 = vmatpush2.bf16.msra.mxu0 0
        %1557 = vmatprep.subr.bf16.mxu0 0
        %1558 = vmatpush2.bf16.msra.mxu0 0
        %1559 = vmatprep.subr.bf16.mxu0 0
        %1560 = vmatpush2.bf16.msra.mxu0 0
        %1561 = vmatprep.mubr.bf16.mxu0 0
        %1562 = vmatmul.mubr.bf16.gmra.mxu0 %v1521
        %v1563 = vpop.f32.mrf.mxu0
        %v1564 = vadd.f32 0.0, %v1563
        %v1565 = vpop.f32.mrf.mxu0
        %v1566 = vadd.f32 0.0, %v1565
        %v1567 = vpop.f32.mrf.mxu0
        %v1568 = vpop.f32.mrf.mxu0
        %1569 = vdwg.mxu0
        %v1570 = vadd.f32 %v1502, %v1564
        %v1571 = vadd.f32 %v1503, %v1566
        %v1572 = vmul.bf16 %v1193, %v929
        %v1573 = vmul.bf16 %v1190, %v933
        %v1574 = vmul.bf16 %v1196, %v931
        %s1575 = scalar_lea.vmem %s4, 60
        %v1576 = vld [vmem:[%s1575] sm:$0x7]
        %1580 = vrot.lane.b32.xlu0 %v1572, 96
        %v1581 = vpop.permute.xlu0 %1580
        %1582 = vrot.lane.b32.xlu0 %v1573, 96
        %v1583 = vpop.permute.xlu0 %1582
        %1584 = vrot.lane.b32.xlu0 %v1574, 96
        %v1585 = vpop.permute.xlu0 %1584
        %v1586 = vsel %vm951, %v1581, %v1583
        %v1587 = vsel %vm951, %v1583, %v1585
        %v1589 = vsel %vm497, %v1576, 0
        %v1592 = vsel %vm501, %v1586, 0
        %v1595 = vsel %vm501, %v1587, 0
        %1597 = vmatprep.subr.bf16.mxu0 0
        %1598 = vmatpush1.bf16.msra.mxu0 0
        %1599 = vmatprep.subr.bf16.mxu0 0
        %1600 = vmatpush1.bf16.msra.mxu0 0
        %1601 = vmatprep.subr.bf16.mxu0 0
        %1602 = vmatpush1.bf16.msra.mxu0 0
        %1603 = vmatprep.subr.bf16.mxu0 0
        %1604 = vmatpush1.bf16.msra.mxu0 0
        %1605 = vmatprep.subr.bf16.mxu0 0
        %1606 = vmatpush1.bf16.msra.mxu0 0
        %1607 = vmatprep.subr.bf16.mxu0 0
        %1608 = vmatpush1.bf16.msra.mxu0 0
        %1609 = vmatprep.subr.bf16.mxu0 0
        %1610 = vmatpush1.bf16.msra.mxu0 0
        %1611 = vmatprep.subr.bf16.mxu0 %v1595
        %1612 = vmatpush1.bf16.msra.mxu0 %v1592
        %1613 = vmatprep.subr.bf16.mxu0 0
        %1614 = vmatpush2.bf16.msra.mxu0 0
        %1615 = vmatprep.subr.bf16.mxu0 0
        %1616 = vmatpush2.bf16.msra.mxu0 0
        %1617 = vmatprep.subr.bf16.mxu0 0
        %1618 = vmatpush2.bf16.msra.mxu0 0
        %1619 = vmatprep.subr.bf16.mxu0 0
        %1620 = vmatpush2.bf16.msra.mxu0 0
        %1621 = vmatprep.subr.bf16.mxu0 0
        %1622 = vmatpush2.bf16.msra.mxu0 0
        %1623 = vmatprep.subr.bf16.mxu0 0
        %1624 = vmatpush2.bf16.msra.mxu0 0
        %1625 = vmatprep.subr.bf16.mxu0 0
        %1626 = vmatpush2.bf16.msra.mxu0 0
        %1627 = vmatprep.subr.bf16.mxu0 0
        %1628 = vmatpush2.bf16.msra.mxu0 0
        %1629 = vmatprep.mubr.bf16.mxu0 0
        %1630 = vmatmul.mubr.bf16.gmra.mxu0 %v1589
        %v1631 = vpop.f32.mrf.mxu0
        %v1632 = vadd.f32 0.0, %v1631
        %v1633 = vpop.f32.mrf.mxu0
        %v1634 = vadd.f32 0.0, %v1633
        %v1635 = vpop.f32.mrf.mxu0
        %v1636 = vpop.f32.mrf.mxu0
        %1637 = vdwg.mxu0
        %v1638 = vadd.f32 %v1570, %v1632
        %v1639 = vadd.f32 %v1571, %v1634
        %s1640 = scalar_lea.vmem %s4, 64
        %v1641 = vld [vmem:[%s1640] sm:$0x7]
        %1642 = vrot.lane.b32.xlu0 %v1193, 95
        %v1643 = vpop.permute.xlu0 %1642
        %1644 = vrot.lane.b32.xlu0 %v1190, 95
        %v1645 = vpop.permute.xlu0 %1644
        %1646 = vrot.lane.b32.xlu0 %v1196, 95
        %v1647 = vpop.permute.xlu0 %1646
        %v1648 = vsel %vm1014, %v1643, %v1645
        %v1649 = vsel %vm1014, %v1645, %v1647
        %v1651 = vsel %vm497, %v1641, 0
        %v1654 = vsel %vm501, %v1648, 0
        %v1657 = vsel %vm501, %v1649, 0
        %1659 = vmatprep.subr.bf16.mxu0 0
        %1660 = vmatpush1.bf16.msra.mxu0 0
        %1661 = vmatprep.subr.bf16.mxu0 0
        %1662 = vmatpush1.bf16.msra.mxu0 0
        %1663 = vmatprep.subr.bf16.mxu0 0
        %1664 = vmatpush1.bf16.msra.mxu0 0
        %1665 = vmatprep.subr.bf16.mxu0 0
        %1666 = vmatpush1.bf16.msra.mxu0 0
        %1667 = vmatprep.subr.bf16.mxu0 0
        %1668 = vmatpush1.bf16.msra.mxu0 0
        %1669 = vmatprep.subr.bf16.mxu0 0
        %1670 = vmatpush1.bf16.msra.mxu0 0
        %1671 = vmatprep.subr.bf16.mxu0 0
        %1672 = vmatpush1.bf16.msra.mxu0 0
        %1673 = vmatprep.subr.bf16.mxu0 %v1657
        %1674 = vmatpush1.bf16.msra.mxu0 %v1654
        %1675 = vmatprep.subr.bf16.mxu0 0
        %1676 = vmatpush2.bf16.msra.mxu0 0
        %1677 = vmatprep.subr.bf16.mxu0 0
        %1678 = vmatpush2.bf16.msra.mxu0 0
        %1679 = vmatprep.subr.bf16.mxu0 0
        %1680 = vmatpush2.bf16.msra.mxu0 0
        %1681 = vmatprep.subr.bf16.mxu0 0
        %1682 = vmatpush2.bf16.msra.mxu0 0
        %1683 = vmatprep.subr.bf16.mxu0 0
        %1684 = vmatpush2.bf16.msra.mxu0 0
        %1685 = vmatprep.subr.bf16.mxu0 0
        %1686 = vmatpush2.bf16.msra.mxu0 0
        %1687 = vmatprep.subr.bf16.mxu0 0
        %1688 = vmatpush2.bf16.msra.mxu0 0
        %1689 = vmatprep.subr.bf16.mxu0 0
        %1690 = vmatpush2.bf16.msra.mxu0 0
        %1691 = vmatprep.mubr.bf16.mxu0 0
        %1692 = vmatmul.mubr.bf16.gmra.mxu0 %v1651
        %v1693 = vpop.f32.mrf.mxu0
        %v1694 = vadd.f32 0.0, %v1693
        %v1695 = vpop.f32.mrf.mxu0
        %v1696 = vadd.f32 0.0, %v1695
        %v1697 = vpop.f32.mrf.mxu0
        %v1698 = vpop.f32.mrf.mxu0
        %1699 = vdwg.mxu0
        %v1700 = vadd.f32 %v1638, %v1694
        %v1701 = vadd.f32 %v1639, %v1696
        %v1702 = vmul.bf16 %v1193, %v1070
        %v1703 = vmul.bf16 %v1190, %v1074
        %v1704 = vmul.bf16 %v1196, %v1072
        %s1705 = scalar_lea.vmem %s4, 68
        %v1706 = vld [vmem:[%s1705] sm:$0x7]
        %1710 = vrot.lane.b32.xlu0 %v1702, 94
        %v1711 = vpop.permute.xlu0 %1710
        %1712 = vrot.lane.b32.xlu0 %v1703, 94
        %v1713 = vpop.permute.xlu0 %1712
        %1714 = vrot.lane.b32.xlu0 %v1704, 94
        %v1715 = vpop.permute.xlu0 %1714
        %v1716 = vsel %vm1092, %v1711, %v1713
        %v1717 = vsel %vm1092, %v1713, %v1715
        %v1719 = vsel %vm497, %v1706, 0
        %v1722 = vsel %vm501, %v1716, 0
        %v1725 = vsel %vm501, %v1717, 0
        %1727 = vmatprep.subr.bf16.mxu0 0
        %1728 = vmatpush1.bf16.msra.mxu0 0
        %1729 = vmatprep.subr.bf16.mxu0 0
        %1730 = vmatpush1.bf16.msra.mxu0 0
        %1731 = vmatprep.subr.bf16.mxu0 0
        %1732 = vmatpush1.bf16.msra.mxu0 0
        %1733 = vmatprep.subr.bf16.mxu0 0
        %1734 = vmatpush1.bf16.msra.mxu0 0
        %1735 = vmatprep.subr.bf16.mxu0 0
        %1736 = vmatpush1.bf16.msra.mxu0 0
        %1737 = vmatprep.subr.bf16.mxu0 0
        %1738 = vmatpush1.bf16.msra.mxu0 0
        %1739 = vmatprep.subr.bf16.mxu0 0
        %1740 = vmatpush1.bf16.msra.mxu0 0
        %1741 = vmatprep.subr.bf16.mxu0 %v1725
        %1742 = vmatpush1.bf16.msra.mxu0 %v1722
        %1743 = vmatprep.subr.bf16.mxu0 0
        %1744 = vmatpush2.bf16.msra.mxu0 0
        %1745 = vmatprep.subr.bf16.mxu0 0
        %1746 = vmatpush2.bf16.msra.mxu0 0
        %1747 = vmatprep.subr.bf16.mxu0 0
        %1748 = vmatpush2.bf16.msra.mxu0 0
        %1749 = vmatprep.subr.bf16.mxu0 0
        %1750 = vmatpush2.bf16.msra.mxu0 0
        %1751 = vmatprep.subr.bf16.mxu0 0
        %1752 = vmatpush2.bf16.msra.mxu0 0
        %1753 = vmatprep.subr.bf16.mxu0 0
        %1754 = vmatpush2.bf16.msra.mxu0 0
        %1755 = vmatprep.subr.bf16.mxu0 0
        %1756 = vmatpush2.bf16.msra.mxu0 0
        %1757 = vmatprep.subr.bf16.mxu0 0
        %1758 = vmatpush2.bf16.msra.mxu0 0
        %1759 = vmatprep.mubr.bf16.mxu0 0
        %1760 = vmatmul.mubr.bf16.gmra.mxu0 %v1719
        %v1761 = vpop.f32.mrf.mxu0
        %v1762 = vadd.f32 0.0, %v1761
        %v1763 = vpop.f32.mrf.mxu0
        %v1764 = vadd.f32 0.0, %v1763
        %v1765 = vpop.f32.mrf.mxu0
        %v1766 = vpop.f32.mrf.mxu0
        %1767 = vdwg.mxu0
        %v1768 = vadd.f32 %v1700, %v1762
        %v1769 = vadd.f32 %v1701, %v1764
        %s1770 = scalar_lea.vmem %s5, 8
        %v1771 = vld [vmem:[%s1770] sm:$0x3f]
        %1773 = vset.pattern.permute.xlu0 0
        %1774 = vperm.xlu0 %1773, %v1771
        %v1775 = vpop.permute.xlu0 %1774
        %v1777 = vadd.f32 %v1768, %v1775
        %v1778 = vadd.f32 %v1769, %v1775
        %v1779 = vmax.f32 %v1777, 0.0
        %v1780 = vmax.f32 %v1778, 0.0
        %s1781 = scalar_lea.vmem %s6, 32
        %v1782 = vld [vmem:[%s1781] sm:$0xf]
        %v1783 = vld [vmem:[%s1781 + $0x4] sm:$0xf]
        %v1784 = vld [vmem:[%s1781 + $0x8] sm:$0xf]
        %v1785 = vld [vmem:[%s1781 + $0xc] sm:$0xf]
        %v1786 = vld [vmem:[%s1781 + $0x10] sm:$0xf]
        %v1787 = vld [vmem:[%s1781 + $0x14] sm:$0xf]
        %v1788 = vld [vmem:[%s1781 + $0x18] sm:$0xf]
        %v1789 = vld [vmem:[%s1781 + $0x1c] sm:$0xf]
        %v1790 = vpack.c.bf16 %v1779, %v1779
        %v1791 = vpack.c.bf16 %v1780, %v1780
        %v1800 = vunpack.c.l.b16 %v1782
        %v1801 = vunpack.c.l.b16 %v1783
        %v1802 = vunpack.c.l.b16 %v1784
        %v1803 = vunpack.c.l.b16 %v1785
        %v1804 = vunpack.c.l.b16 %v1786
        %v1805 = vunpack.c.l.b16 %v1787
        %v1806 = vunpack.c.l.b16 %v1788
        %v1807 = vunpack.c.l.b16 %v1789
        %v1808 = vpack.c.b16 %v1801, %v1800
        %v1809 = vpack.c.b16 %v1803, %v1802
        %v1810 = vpack.c.b16 %v1805, %v1804
        %v1811 = vpack.c.b16 %v1807, %v1806
        %v1813 = vsel %vm497, %v1808, 0
        %v1816 = vsel %vm497, %v1809, 0
        %v1819 = vsel %vm497, %v1810, 0
        %v1822 = vsel %vm497, %v1811, 0
        %v1825 = vsel %vm501, %v1790, 0
        %v1828 = vsel %vm501, %v1791, 0
        %1830 = vmatprep.subr.bf16.mxu0 0
        %1831 = vmatpush1.bf16.msra.mxu0 0
        %1832 = vmatprep.subr.bf16.mxu0 0
        %1833 = vmatpush1.bf16.msra.mxu0 0
        %1834 = vmatprep.subr.bf16.mxu0 0
        %1835 = vmatpush1.bf16.msra.mxu0 0
        %1836 = vmatprep.subr.bf16.mxu0 0
        %1837 = vmatpush1.bf16.msra.mxu0 0
        %1838 = vmatprep.subr.bf16.mxu0 0
        %1839 = vmatpush1.bf16.msra.mxu0 0
        %1840 = vmatprep.subr.bf16.mxu0 0
        %1841 = vmatpush1.bf16.msra.mxu0 0
        %1842 = vmatprep.subr.bf16.mxu0 0
        %1843 = vmatpush1.bf16.msra.mxu0 0
        %1844 = vmatprep.subr.bf16.mxu0 %v1828
        %1845 = vmatpush1.bf16.msra.mxu0 %v1825
        %1846 = vmatprep.subr.bf16.mxu0 0
        %1847 = vmatpush2.bf16.msra.mxu0 0
        %1848 = vmatprep.subr.bf16.mxu0 0
        %1849 = vmatpush2.bf16.msra.mxu0 0
        %1850 = vmatprep.subr.bf16.mxu0 0
        %1851 = vmatpush2.bf16.msra.mxu0 0
        %1852 = vmatprep.subr.bf16.mxu0 0
        %1853 = vmatpush2.bf16.msra.mxu0 0
        %1854 = vmatprep.subr.bf16.mxu0 0
        %1855 = vmatpush2.bf16.msra.mxu0 0
        %1856 = vmatprep.subr.bf16.mxu0 0
        %1857 = vmatpush2.bf16.msra.mxu0 0
        %1858 = vmatprep.subr.bf16.mxu0 0
        %1859 = vmatpush2.bf16.msra.mxu0 0
        %1860 = vmatprep.subr.bf16.mxu0 0
        %1861 = vmatpush2.bf16.msra.mxu0 0
        %1862 = vmatprep.mubr.bf16.mxu0 0
        %1863 = vmatmul.mubr.bf16.gmra.mxu0 %v1813
        %v1864 = vpop.f32.mrf.mxu0
        %v1865 = vadd.f32 0.0, %v1864
        %v1866 = vpop.f32.mrf.mxu0
        %v1867 = vadd.f32 0.0, %v1866
        %v1868 = vpop.f32.mrf.mxu0
        %v1869 = vadd.f32 0.0, %v1868
        %v1870 = vpop.f32.mrf.mxu0
        %v1871 = vadd.f32 0.0, %v1870
        %1872 = vmatprep.mubr.bf16.mxu0 0
        %1873 = vmatmul.mubr.bf16.gmra.mxu0 %v1816
        %v1874 = vpop.f32.mrf.mxu0
        %v1875 = vadd.f32 0.0, %v1874
        %v1876 = vpop.f32.mrf.mxu0
        %v1877 = vadd.f32 0.0, %v1876
        %v1878 = vpop.f32.mrf.mxu0
        %v1879 = vadd.f32 0.0, %v1878
        %v1880 = vpop.f32.mrf.mxu0
        %v1881 = vadd.f32 0.0, %v1880
        %1882 = vmatprep.mubr.bf16.mxu0 0
        %1883 = vmatmul.mubr.bf16.gmra.mxu0 %v1819
        %v1884 = vpop.f32.mrf.mxu0
        %v1885 = vadd.f32 0.0, %v1884
        %v1886 = vpop.f32.mrf.mxu0
        %v1887 = vadd.f32 0.0, %v1886
        %v1888 = vpop.f32.mrf.mxu0
        %v1889 = vadd.f32 0.0, %v1888
        %v1890 = vpop.f32.mrf.mxu0
        %v1891 = vadd.f32 0.0, %v1890
        %1892 = vmatprep.mubr.bf16.mxu0 0
        %1893 = vmatmul.mubr.bf16.gmra.mxu0 %v1822
        %v1894 = vpop.f32.mrf.mxu0
        %v1895 = vadd.f32 0.0, %v1894
        %v1896 = vpop.f32.mrf.mxu0
        %v1897 = vadd.f32 0.0, %v1896
        %v1898 = vpop.f32.mrf.mxu0
        %v1899 = vadd.f32 0.0, %v1898
        %v1900 = vpop.f32.mrf.mxu0
        %v1901 = vadd.f32 0.0, %v1900
        %1902 = vdwg.mxu0
        %v1911 = vunpack.c.l.b16 %v1157
        %v1912 = vunpack.c.l.b16 %v1158
        %v1913 = vunpack.c.l.b16 %v1159
        %v1914 = vunpack.c.l.b16 %v1160
        %v1915 = vunpack.c.l.b16 %v1161
        %v1916 = vunpack.c.l.b16 %v1162
        %v1917 = vunpack.c.l.b16 %v1163
        %v1918 = vunpack.c.l.b16 %v1164
        %v1919 = vpack.c.b16 %v1912, %v1911
        %v1920 = vpack.c.b16 %v1914, %v1913
        %v1921 = vpack.c.b16 %v1916, %v1915
        %v1922 = vpack.c.b16 %v1918, %v1917
        %v1924 = vsel %vm497, %v1919, 0
        %v1927 = vsel %vm497, %v1920, 0
        %v1930 = vsel %vm497, %v1921, 0
        %v1933 = vsel %vm497, %v1922, 0
        %v1936 = vsel %vm501, %v1165, 0
        %v1939 = vsel %vm501, %v1166, 0
        %1941 = vmatprep.subr.bf16.mxu0 0
        %1942 = vmatpush1.bf16.msra.mxu0 0
        %1943 = vmatprep.subr.bf16.mxu0 0
        %1944 = vmatpush1.bf16.msra.mxu0 0
        %1945 = vmatprep.subr.bf16.mxu0 0
        %1946 = vmatpush1.bf16.msra.mxu0 0
        %1947 = vmatprep.subr.bf16.mxu0 0
        %1948 = vmatpush1.bf16.msra.mxu0 0
        %1949 = vmatprep.subr.bf16.mxu0 0
        %1950 = vmatpush1.bf16.msra.mxu0 0
        %1951 = vmatprep.subr.bf16.mxu0 0
        %1952 = vmatpush1.bf16.msra.mxu0 0
        %1953 = vmatprep.subr.bf16.mxu0 0
        %1954 = vmatpush1.bf16.msra.mxu0 0
        %1955 = vmatprep.subr.bf16.mxu0 %v1939
        %1956 = vmatpush1.bf16.msra.mxu0 %v1936
        %1957 = vmatprep.subr.bf16.mxu0 0
        %1958 = vmatpush2.bf16.msra.mxu0 0
        %1959 = vmatprep.subr.bf16.mxu0 0
        %1960 = vmatpush2.bf16.msra.mxu0 0
        %1961 = vmatprep.subr.bf16.mxu0 0
        %1962 = vmatpush2.bf16.msra.mxu0 0
        %1963 = vmatprep.subr.bf16.mxu0 0
        %1964 = vmatpush2.bf16.msra.mxu0 0
        %1965 = vmatprep.subr.bf16.mxu0 0
        %1966 = vmatpush2.bf16.msra.mxu0 0
        %1967 = vmatprep.subr.bf16.mxu0 0
        %1968 = vmatpush2.bf16.msra.mxu0 0
        %1969 = vmatprep.subr.bf16.mxu0 0
        %1970 = vmatpush2.bf16.msra.mxu0 0
        %1971 = vmatprep.subr.bf16.mxu0 0
        %1972 = vmatpush2.bf16.msra.mxu0 0
        %1973 = vmatprep.mubr.bf16.mxu0 0
        %1974 = vmatmul.mubr.bf16.gmra.mxu0 %v1924
        %v1975 = vpop.f32.mrf.mxu0
        %v1976 = vadd.f32 %v1865, %v1975
        %v1977 = vpop.f32.mrf.mxu0
        %v1978 = vadd.f32 %v1867, %v1977
        %v1979 = vpop.f32.mrf.mxu0
        %v1980 = vadd.f32 %v1869, %v1979
        %v1981 = vpop.f32.mrf.mxu0
        %v1982 = vadd.f32 %v1871, %v1981
        %1983 = vmatprep.mubr.bf16.mxu0 0
        %1984 = vmatmul.mubr.bf16.gmra.mxu0 %v1927
        %v1985 = vpop.f32.mrf.mxu0
        %v1986 = vadd.f32 %v1875, %v1985
        %v1987 = vpop.f32.mrf.mxu0
        %v1988 = vadd.f32 %v1877, %v1987
        %v1989 = vpop.f32.mrf.mxu0
        %v1990 = vadd.f32 %v1879, %v1989
        %v1991 = vpop.f32.mrf.mxu0
        %v1992 = vadd.f32 %v1881, %v1991
        %1993 = vmatprep.mubr.bf16.mxu0 0
        %1994 = vmatmul.mubr.bf16.gmra.mxu0 %v1930
        %v1995 = vpop.f32.mrf.mxu0
        %v1996 = vadd.f32 %v1885, %v1995
        %v1997 = vpop.f32.mrf.mxu0
        %v1998 = vadd.f32 %v1887, %v1997
        %v1999 = vpop.f32.mrf.mxu0
        %v2000 = vadd.f32 %v1889, %v1999
        %v2001 = vpop.f32.mrf.mxu0
        %v2002 = vadd.f32 %v1891, %v2001
        %2003 = vmatprep.mubr.bf16.mxu0 0
        %2004 = vmatmul.mubr.bf16.gmra.mxu0 %v1933
        %v2005 = vpop.f32.mrf.mxu0
        %v2006 = vadd.f32 %v1895, %v2005
        %v2007 = vpop.f32.mrf.mxu0
        %v2008 = vadd.f32 %v1897, %v2007
        %v2009 = vpop.f32.mrf.mxu0
        %v2010 = vadd.f32 %v1899, %v2009
        %v2011 = vpop.f32.mrf.mxu0
        %v2012 = vadd.f32 %v1901, %v2011
        %2013 = vdwg.mxu0
        %vm2016 = vcmask 1043456
        %v2017 = vrot.slane %v421, 4
        %v2018 = vrot.slane %v423, 4
        %v2019 = vsel %vm2016, %v2017, %v2018
        %v2020 = vrot.slane %v422, 4
        %v2021 = vrot.slane %v424, 4
        %v2022 = vsel %vm2016, %v2020, %v2021
        %v2025 = vadd.f32 %v1779, %v2019
        %v2026 = vadd.f32 %v1780, %v2022
        %v2027 = vpack.c.bf16 %v2025, %v2025
        %v2028 = vpack.c.bf16 %v2026, %v2026
        %2031 = vrot.lane.b32.xlu0 %v2027, 17
        %v2032 = vpop.permute.xlu0 %2031
        %2033 = vrot.lane.b32.xlu0 %v2028, 17
        %v2034 = vpop.permute.xlu0 %2033
        %v2035 = vsel %vm433, %v2032, %v2034
        %v2038 = vsel %vm436, 0, %v2032
        %v2041 = vsel %vm436, %v2034, 0
        %v2043 = vmul.bf16 %v2038, %v473
        %v2044 = vmul.bf16 %v2035, %v480
        %s2045 = scalar_lea.vmem %s4, 72
        %v2046 = vld [vmem:[%s2045] sm:$0x7]
        %s2047 = scalar_lea.vmem %s4, 76
        %v2048 = vld [vmem:[%s2047] sm:$0x7]
        %2051 = vrot.lane.b32.xlu0 %v2038, 127
        %v2052 = vpop.permute.xlu0 %2051
        %2053 = vrot.lane.b32.xlu0 %v2035, 127
        %v2054 = vpop.permute.xlu0 %2053
        %2055 = vrot.lane.b32.xlu0 %v2041, 127
        %v2056 = vpop.permute.xlu0 %2055
        %v2057 = vsel %vm494, %v2052, %v2054
        %v2058 = vsel %vm494, %v2054, %v2056
        %v2060 = vsel %vm497, %v2048, 0
        %v2063 = vsel %vm501, %v2057, 0
        %v2066 = vsel %vm501, %v2058, 0
        %2068 = vmatprep.subr.bf16.mxu0 0
        %2069 = vmatpush1.bf16.msra.mxu0 0
        %2070 = vmatprep.subr.bf16.mxu0 0
        %2071 = vmatpush1.bf16.msra.mxu0 0
        %2072 = vmatprep.subr.bf16.mxu0 0
        %2073 = vmatpush1.bf16.msra.mxu0 0
        %2074 = vmatprep.subr.bf16.mxu0 0
        %2075 = vmatpush1.bf16.msra.mxu0 0
        %2076 = vmatprep.subr.bf16.mxu0 0
        %2077 = vmatpush1.bf16.msra.mxu0 0
        %2078 = vmatprep.subr.bf16.mxu0 0
        %2079 = vmatpush1.bf16.msra.mxu0 0
        %2080 = vmatprep.subr.bf16.mxu0 0
        %2081 = vmatpush1.bf16.msra.mxu0 0
        %2082 = vmatprep.subr.bf16.mxu0 %v2066
        %2083 = vmatpush1.bf16.msra.mxu0 %v2063
        %2084 = vmatprep.subr.bf16.mxu0 0
        %2085 = vmatpush2.bf16.msra.mxu0 0
        %2086 = vmatprep.subr.bf16.mxu0 0
        %2087 = vmatpush2.bf16.msra.mxu0 0
        %2088 = vmatprep.subr.bf16.mxu0 0
        %2089 = vmatpush2.bf16.msra.mxu0 0
        %2090 = vmatprep.subr.bf16.mxu0 0
        %2091 = vmatpush2.bf16.msra.mxu0 0
        %2092 = vmatprep.subr.bf16.mxu0 0
        %2093 = vmatpush2.bf16.msra.mxu0 0
        %2094 = vmatprep.subr.bf16.mxu0 0
        %2095 = vmatpush2.bf16.msra.mxu0 0
        %2096 = vmatprep.subr.bf16.mxu0 0
        %2097 = vmatpush2.bf16.msra.mxu0 0
        %2098 = vmatprep.subr.bf16.mxu0 0
        %2099 = vmatpush2.bf16.msra.mxu0 0
        %2100 = vmatprep.mubr.bf16.mxu0 0
        %2101 = vmatmul.mubr.bf16.gmra.mxu0 %v2060
        %v2102 = vpop.f32.mrf.mxu0
        %v2103 = vadd.f32 0.0, %v2102
        %v2104 = vpop.f32.mrf.mxu0
        %v2105 = vadd.f32 0.0, %v2104
        %v2106 = vpop.f32.mrf.mxu0
        %v2107 = vpop.f32.mrf.mxu0
        %2108 = vdwg.mxu0
        %v2110 = vsel %vm497, %v2046, 0
        %v2113 = vsel %vm501, %v2043, 0
        %v2116 = vsel %vm501, %v2044, 0
        %2118 = vmatprep.subr.bf16.mxu0 0
        %2119 = vmatpush1.bf16.msra.mxu0 0
        %2120 = vmatprep.subr.bf16.mxu0 0
        %2121 = vmatpush1.bf16.msra.mxu0 0
        %2122 = vmatprep.subr.bf16.mxu0 0
        %2123 = vmatpush1.bf16.msra.mxu0 0
        %2124 = vmatprep.subr.bf16.mxu0 0
        %2125 = vmatpush1.bf16.msra.mxu0 0
        %2126 = vmatprep.subr.bf16.mxu0 0
        %2127 = vmatpush1.bf16.msra.mxu0 0
        %2128 = vmatprep.subr.bf16.mxu0 0
        %2129 = vmatpush1.bf16.msra.mxu0 0
        %2130 = vmatprep.subr.bf16.mxu0 0
        %2131 = vmatpush1.bf16.msra.mxu0 0
        %2132 = vmatprep.subr.bf16.mxu0 %v2116
        %2133 = vmatpush1.bf16.msra.mxu0 %v2113
        %2134 = vmatprep.subr.bf16.mxu0 0
        %2135 = vmatpush2.bf16.msra.mxu0 0
        %2136 = vmatprep.subr.bf16.mxu0 0
        %2137 = vmatpush2.bf16.msra.mxu0 0
        %2138 = vmatprep.subr.bf16.mxu0 0
        %2139 = vmatpush2.bf16.msra.mxu0 0
        %2140 = vmatprep.subr.bf16.mxu0 0
        %2141 = vmatpush2.bf16.msra.mxu0 0
        %2142 = vmatprep.subr.bf16.mxu0 0
        %2143 = vmatpush2.bf16.msra.mxu0 0
        %2144 = vmatprep.subr.bf16.mxu0 0
        %2145 = vmatpush2.bf16.msra.mxu0 0
        %2146 = vmatprep.subr.bf16.mxu0 0
        %2147 = vmatpush2.bf16.msra.mxu0 0
        %2148 = vmatprep.subr.bf16.mxu0 0
        %2149 = vmatpush2.bf16.msra.mxu0 0
        %2150 = vmatprep.mubr.bf16.mxu0 0
        %2151 = vmatmul.mubr.bf16.gmra.mxu0 %v2110
        %v2152 = vpop.f32.mrf.mxu0
        %v2153 = vadd.f32 %v2103, %v2152
        %v2154 = vpop.f32.mrf.mxu0
        %v2155 = vadd.f32 %v2105, %v2154
        %v2156 = vpop.f32.mrf.mxu0
        %v2157 = vpop.f32.mrf.mxu0
        %2158 = vdwg.mxu0
        %v2159 = vmul.bf16 %v2038, %v639
        %v2160 = vmul.bf16 %v2035, %v643
        %v2161 = vmul.bf16 %v2041, %v641
        %s2162 = scalar_lea.vmem %s4, 80
        %v2163 = vld [vmem:[%s2162] sm:$0x7]
        %2167 = vrot.lane.b32.xlu0 %v2159, 126
        %v2168 = vpop.permute.xlu0 %2167
        %2169 = vrot.lane.b32.xlu0 %v2160, 126
        %v2170 = vpop.permute.xlu0 %2169
        %2171 = vrot.lane.b32.xlu0 %v2161, 126
        %v2172 = vpop.permute.xlu0 %2171
        %v2173 = vsel %vm661, %v2168, %v2170
        %v2174 = vsel %vm661, %v2170, %v2172
        %v2176 = vsel %vm497, %v2163, 0
        %v2179 = vsel %vm501, %v2173, 0
        %v2182 = vsel %vm501, %v2174, 0
        %2184 = vmatprep.subr.bf16.mxu0 0
        %2185 = vmatpush1.bf16.msra.mxu0 0
        %2186 = vmatprep.subr.bf16.mxu0 0
        %2187 = vmatpush1.bf16.msra.mxu0 0
        %2188 = vmatprep.subr.bf16.mxu0 0
        %2189 = vmatpush1.bf16.msra.mxu0 0
        %2190 = vmatprep.subr.bf16.mxu0 0
        %2191 = vmatpush1.bf16.msra.mxu0 0
        %2192 = vmatprep.subr.bf16.mxu0 0
        %2193 = vmatpush1.bf16.msra.mxu0 0
        %2194 = vmatprep.subr.bf16.mxu0 0
        %2195 = vmatpush1.bf16.msra.mxu0 0
        %2196 = vmatprep.subr.bf16.mxu0 0
        %2197 = vmatpush1.bf16.msra.mxu0 0
        %2198 = vmatprep.subr.bf16.mxu0 %v2182
        %2199 = vmatpush1.bf16.msra.mxu0 %v2179
        %2200 = vmatprep.subr.bf16.mxu0 0
        %2201 = vmatpush2.bf16.msra.mxu0 0
        %2202 = vmatprep.subr.bf16.mxu0 0
        %2203 = vmatpush2.bf16.msra.mxu0 0
        %2204 = vmatprep.subr.bf16.mxu0 0
        %2205 = vmatpush2.bf16.msra.mxu0 0
        %2206 = vmatprep.subr.bf16.mxu0 0
        %2207 = vmatpush2.bf16.msra.mxu0 0
        %2208 = vmatprep.subr.bf16.mxu0 0
        %2209 = vmatpush2.bf16.msra.mxu0 0
        %2210 = vmatprep.subr.bf16.mxu0 0
        %2211 = vmatpush2.bf16.msra.mxu0 0
        %2212 = vmatprep.subr.bf16.mxu0 0
        %2213 = vmatpush2.bf16.msra.mxu0 0
        %2214 = vmatprep.subr.bf16.mxu0 0
        %2215 = vmatpush2.bf16.msra.mxu0 0
        %2216 = vmatprep.mubr.bf16.mxu0 0
        %2217 = vmatmul.mubr.bf16.gmra.mxu0 %v2176
        %v2218 = vpop.f32.mrf.mxu0
        %v2219 = vadd.f32 0.0, %v2218
        %v2220 = vpop.f32.mrf.mxu0
        %v2221 = vadd.f32 0.0, %v2220
        %v2222 = vpop.f32.mrf.mxu0
        %v2223 = vpop.f32.mrf.mxu0
        %2224 = vdwg.mxu0
        %v2225 = vadd.f32 %v2153, %v2219
        %v2226 = vadd.f32 %v2155, %v2221
        %v2227 = vmul.bf16 %v2038, %v719
        %v2228 = vmul.bf16 %v2035, %v723
        %v2229 = vmul.bf16 %v2041, %v721
        %s2230 = scalar_lea.vmem %s4, 84
        %v2231 = vld [vmem:[%s2230] sm:$0x7]
        %2235 = vrot.lane.b32.xlu0 %v2227, 112
        %v2236 = vpop.permute.xlu0 %2235
        %2237 = vrot.lane.b32.xlu0 %v2228, 112
        %v2238 = vpop.permute.xlu0 %2237
        %2239 = vrot.lane.b32.xlu0 %v2229, 112
        %v2240 = vpop.permute.xlu0 %2239
        %v2241 = vsel %vm741, %v2236, %v2238
        %v2242 = vsel %vm741, %v2238, %v2240
        %v2244 = vsel %vm497, %v2231, 0
        %v2247 = vsel %vm501, %v2241, 0
        %v2250 = vsel %vm501, %v2242, 0
        %2252 = vmatprep.subr.bf16.mxu0 0
        %2253 = vmatpush1.bf16.msra.mxu0 0
        %2254 = vmatprep.subr.bf16.mxu0 0
        %2255 = vmatpush1.bf16.msra.mxu0 0
        %2256 = vmatprep.subr.bf16.mxu0 0
        %2257 = vmatpush1.bf16.msra.mxu0 0
        %2258 = vmatprep.subr.bf16.mxu0 0
        %2259 = vmatpush1.bf16.msra.mxu0 0
        %2260 = vmatprep.subr.bf16.mxu0 0
        %2261 = vmatpush1.bf16.msra.mxu0 0
        %2262 = vmatprep.subr.bf16.mxu0 0
        %2263 = vmatpush1.bf16.msra.mxu0 0
        %2264 = vmatprep.subr.bf16.mxu0 0
        %2265 = vmatpush1.bf16.msra.mxu0 0
        %2266 = vmatprep.subr.bf16.mxu0 %v2250
        %2267 = vmatpush1.bf16.msra.mxu0 %v2247
        %2268 = vmatprep.subr.bf16.mxu0 0
        %2269 = vmatpush2.bf16.msra.mxu0 0
        %2270 = vmatprep.subr.bf16.mxu0 0
        %2271 = vmatpush2.bf16.msra.mxu0 0
        %2272 = vmatprep.subr.bf16.mxu0 0
        %2273 = vmatpush2.bf16.msra.mxu0 0
        %2274 = vmatprep.subr.bf16.mxu0 0
        %2275 = vmatpush2.bf16.msra.mxu0 0
        %2276 = vmatprep.subr.bf16.mxu0 0
        %2277 = vmatpush2.bf16.msra.mxu0 0
        %2278 = vmatprep.subr.bf16.mxu0 0
        %2279 = vmatpush2.bf16.msra.mxu0 0
        %2280 = vmatprep.subr.bf16.mxu0 0
        %2281 = vmatpush2.bf16.msra.mxu0 0
        %2282 = vmatprep.subr.bf16.mxu0 0
        %2283 = vmatpush2.bf16.msra.mxu0 0
        %2284 = vmatprep.mubr.bf16.mxu0 0
        %2285 = vmatmul.mubr.bf16.gmra.mxu0 %v2244
        %v2286 = vpop.f32.mrf.mxu0
        %v2287 = vadd.f32 0.0, %v2286
        %v2288 = vpop.f32.mrf.mxu0
        %v2289 = vadd.f32 0.0, %v2288
        %v2290 = vpop.f32.mrf.mxu0
        %v2291 = vpop.f32.mrf.mxu0
        %2292 = vdwg.mxu0
        %v2293 = vadd.f32 %v2225, %v2287
        %v2294 = vadd.f32 %v2226, %v2289
        %s2295 = scalar_lea.vmem %s4, 88
        %v2296 = vld [vmem:[%s2295] sm:$0x7]
        %v2298 = vsel %vm497, %v2296, 0
        %v2301 = vsel %vm501, %v2027, 0
        %v2304 = vsel %vm501, %v2028, 0
        %2306 = vmatprep.subr.bf16.mxu0 0
        %2307 = vmatpush1.bf16.msra.mxu0 0
        %2308 = vmatprep.subr.bf16.mxu0 0
        %2309 = vmatpush1.bf16.msra.mxu0 0
        %2310 = vmatprep.subr.bf16.mxu0 0
        %2311 = vmatpush1.bf16.msra.mxu0 0
        %2312 = vmatprep.subr.bf16.mxu0 0
        %2313 = vmatpush1.bf16.msra.mxu0 0
        %2314 = vmatprep.subr.bf16.mxu0 0
        %2315 = vmatpush1.bf16.msra.mxu0 0
        %2316 = vmatprep.subr.bf16.mxu0 0
        %2317 = vmatpush1.bf16.msra.mxu0 0
        %2318 = vmatprep.subr.bf16.mxu0 0
        %2319 = vmatpush1.bf16.msra.mxu0 0
        %2320 = vmatprep.subr.bf16.mxu0 %v2304
        %2321 = vmatpush1.bf16.msra.mxu0 %v2301
        %2322 = vmatprep.subr.bf16.mxu0 0
        %2323 = vmatpush2.bf16.msra.mxu0 0
        %2324 = vmatprep.subr.bf16.mxu0 0
        %2325 = vmatpush2.bf16.msra.mxu0 0
        %2326 = vmatprep.subr.bf16.mxu0 0
        %2327 = vmatpush2.bf16.msra.mxu0 0
        %2328 = vmatprep.subr.bf16.mxu0 0
        %2329 = vmatpush2.bf16.msra.mxu0 0
        %2330 = vmatprep.subr.bf16.mxu0 0
        %2331 = vmatpush2.bf16.msra.mxu0 0
        %2332 = vmatprep.subr.bf16.mxu0 0
        %2333 = vmatpush2.bf16.msra.mxu0 0
        %2334 = vmatprep.subr.bf16.mxu0 0
        %2335 = vmatpush2.bf16.msra.mxu0 0
        %2336 = vmatprep.subr.bf16.mxu0 0
        %2337 = vmatpush2.bf16.msra.mxu0 0
        %2338 = vmatprep.mubr.bf16.mxu0 0
        %2339 = vmatmul.mubr.bf16.gmra.mxu0 %v2298
        %v2340 = vpop.f32.mrf.mxu0
        %v2341 = vadd.f32 0.0, %v2340
        %v2342 = vpop.f32.mrf.mxu0
        %v2343 = vadd.f32 0.0, %v2342
        %v2344 = vpop.f32.mrf.mxu0
        %v2345 = vpop.f32.mrf.mxu0
        %2346 = vdwg.mxu0
        %v2347 = vadd.f32 %v2293, %v2341
        %v2348 = vadd.f32 %v2294, %v2343
        %v2349 = vmul.bf16 %v2038, %v851
        %v2350 = vmul.bf16 %v2035, %v855
        %v2351 = vmul.bf16 %v2041, %v853
        %s2352 = scalar_lea.vmem %s4, 92
        %v2353 = vld [vmem:[%s2352] sm:$0x7]
        %2357 = vrot.lane.b32.xlu0 %v2349, 110
        %v2358 = vpop.permute.xlu0 %2357
        %2359 = vrot.lane.b32.xlu0 %v2350, 110
        %v2360 = vpop.permute.xlu0 %2359
        %2361 = vrot.lane.b32.xlu0 %v2351, 110
        %v2362 = vpop.permute.xlu0 %2361
        %v2363 = vsel %vm873, %v2358, %v2360
        %v2364 = vsel %vm873, %v2360, %v2362
        %v2366 = vsel %vm497, %v2353, 0
        %v2369 = vsel %vm501, %v2363, 0
        %v2372 = vsel %vm501, %v2364, 0
        %2374 = vmatprep.subr.bf16.mxu0 0
        %2375 = vmatpush1.bf16.msra.mxu0 0
        %2376 = vmatprep.subr.bf16.mxu0 0
        %2377 = vmatpush1.bf16.msra.mxu0 0
        %2378 = vmatprep.subr.bf16.mxu0 0
        %2379 = vmatpush1.bf16.msra.mxu0 0
        %2380 = vmatprep.subr.bf16.mxu0 0
        %2381 = vmatpush1.bf16.msra.mxu0 0
        %2382 = vmatprep.subr.bf16.mxu0 0
        %2383 = vmatpush1.bf16.msra.mxu0 0
        %2384 = vmatprep.subr.bf16.mxu0 0
        %2385 = vmatpush1.bf16.msra.mxu0 0
        %2386 = vmatprep.subr.bf16.mxu0 0
        %2387 = vmatpush1.bf16.msra.mxu0 0
        %2388 = vmatprep.subr.bf16.mxu0 %v2372
        %2389 = vmatpush1.bf16.msra.mxu0 %v2369
        %2390 = vmatprep.subr.bf16.mxu0 0
        %2391 = vmatpush2.bf16.msra.mxu0 0
        %2392 = vmatprep.subr.bf16.mxu0 0
        %2393 = vmatpush2.bf16.msra.mxu0 0
        %2394 = vmatprep.subr.bf16.mxu0 0
        %2395 = vmatpush2.bf16.msra.mxu0 0
        %2396 = vmatprep.subr.bf16.mxu0 0
        %2397 = vmatpush2.bf16.msra.mxu0 0
        %2398 = vmatprep.subr.bf16.mxu0 0
        %2399 = vmatpush2.bf16.msra.mxu0 0
        %2400 = vmatprep.subr.bf16.mxu0 0
        %2401 = vmatpush2.bf16.msra.mxu0 0
        %2402 = vmatprep.subr.bf16.mxu0 0
        %2403 = vmatpush2.bf16.msra.mxu0 0
        %2404 = vmatprep.subr.bf16.mxu0 0
        %2405 = vmatpush2.bf16.msra.mxu0 0
        %2406 = vmatprep.mubr.bf16.mxu0 0
        %2407 = vmatmul.mubr.bf16.gmra.mxu0 %v2366
        %v2408 = vpop.f32.mrf.mxu0
        %v2409 = vadd.f32 0.0, %v2408
        %v2410 = vpop.f32.mrf.mxu0
        %v2411 = vadd.f32 0.0, %v2410
        %v2412 = vpop.f32.mrf.mxu0
        %v2413 = vpop.f32.mrf.mxu0
        %2414 = vdwg.mxu0
        %v2415 = vadd.f32 %v2347, %v2409
        %v2416 = vadd.f32 %v2348, %v2411
        %v2417 = vmul.bf16 %v2038, %v929
        %v2418 = vmul.bf16 %v2035, %v933
        %v2419 = vmul.bf16 %v2041, %v931
        %s2420 = scalar_lea.vmem %s4, 96
        %v2421 = vld [vmem:[%s2420] sm:$0x7]
        %2425 = vrot.lane.b32.xlu0 %v2417, 96
        %v2426 = vpop.permute.xlu0 %2425
        %2427 = vrot.lane.b32.xlu0 %v2418, 96
        %v2428 = vpop.permute.xlu0 %2427
        %2429 = vrot.lane.b32.xlu0 %v2419, 96
        %v2430 = vpop.permute.xlu0 %2429
        %v2431 = vsel %vm951, %v2426, %v2428
        %v2432 = vsel %vm951, %v2428, %v2430
        %v2434 = vsel %vm497, %v2421, 0
        %v2437 = vsel %vm501, %v2431, 0
        %v2440 = vsel %vm501, %v2432, 0
        %2442 = vmatprep.subr.bf16.mxu0 0
        %2443 = vmatpush1.bf16.msra.mxu0 0
        %2444 = vmatprep.subr.bf16.mxu0 0
        %2445 = vmatpush1.bf16.msra.mxu0 0
        %2446 = vmatprep.subr.bf16.mxu0 0
        %2447 = vmatpush1.bf16.msra.mxu0 0
        %2448 = vmatprep.subr.bf16.mxu0 0
        %2449 = vmatpush1.bf16.msra.mxu0 0
        %2450 = vmatprep.subr.bf16.mxu0 0
        %2451 = vmatpush1.bf16.msra.mxu0 0
        %2452 = vmatprep.subr.bf16.mxu0 0
        %2453 = vmatpush1.bf16.msra.mxu0 0
        %2454 = vmatprep.subr.bf16.mxu0 0
        %2455 = vmatpush1.bf16.msra.mxu0 0
        %2456 = vmatprep.subr.bf16.mxu0 %v2440
        %2457 = vmatpush1.bf16.msra.mxu0 %v2437
        %2458 = vmatprep.subr.bf16.mxu0 0
        %2459 = vmatpush2.bf16.msra.mxu0 0
        %2460 = vmatprep.subr.bf16.mxu0 0
        %2461 = vmatpush2.bf16.msra.mxu0 0
        %2462 = vmatprep.subr.bf16.mxu0 0
        %2463 = vmatpush2.bf16.msra.mxu0 0
        %2464 = vmatprep.subr.bf16.mxu0 0
        %2465 = vmatpush2.bf16.msra.mxu0 0
        %2466 = vmatprep.subr.bf16.mxu0 0
        %2467 = vmatpush2.bf16.msra.mxu0 0
        %2468 = vmatprep.subr.bf16.mxu0 0
        %2469 = vmatpush2.bf16.msra.mxu0 0
        %2470 = vmatprep.subr.bf16.mxu0 0
        %2471 = vmatpush2.bf16.msra.mxu0 0
        %2472 = vmatprep.subr.bf16.mxu0 0
        %2473 = vmatpush2.bf16.msra.mxu0 0
        %2474 = vmatprep.mubr.bf16.mxu0 0
        %2475 = vmatmul.mubr.bf16.gmra.mxu0 %v2434
        %v2476 = vpop.f32.mrf.mxu0
        %v2477 = vadd.f32 0.0, %v2476
        %v2478 = vpop.f32.mrf.mxu0
        %v2479 = vadd.f32 0.0, %v2478
        %v2480 = vpop.f32.mrf.mxu0
        %v2481 = vpop.f32.mrf.mxu0
        %2482 = vdwg.mxu0
        %v2483 = vadd.f32 %v2415, %v2477
        %v2484 = vadd.f32 %v2416, %v2479
        %s2485 = scalar_lea.vmem %s4, 100
        %v2486 = vld [vmem:[%s2485] sm:$0x7]
        %2487 = vrot.lane.b32.xlu0 %v2038, 95
        %v2488 = vpop.permute.xlu0 %2487
        %2489 = vrot.lane.b32.xlu0 %v2035, 95
        %v2490 = vpop.permute.xlu0 %2489
        %2491 = vrot.lane.b32.xlu0 %v2041, 95
        %v2492 = vpop.permute.xlu0 %2491
        %v2493 = vsel %vm1014, %v2488, %v2490
        %v2494 = vsel %vm1014, %v2490, %v2492
        %v2496 = vsel %vm497, %v2486, 0
        %v2499 = vsel %vm501, %v2493, 0
        %v2502 = vsel %vm501, %v2494, 0
        %2504 = vmatprep.subr.bf16.mxu0 0
        %2505 = vmatpush1.bf16.msra.mxu0 0
        %2506 = vmatprep.subr.bf16.mxu0 0
        %2507 = vmatpush1.bf16.msra.mxu0 0
        %2508 = vmatprep.subr.bf16.mxu0 0
        %2509 = vmatpush1.bf16.msra.mxu0 0
        %2510 = vmatprep.subr.bf16.mxu0 0
        %2511 = vmatpush1.bf16.msra.mxu0 0
        %2512 = vmatprep.subr.bf16.mxu0 0
        %2513 = vmatpush1.bf16.msra.mxu0 0
        %2514 = vmatprep.subr.bf16.mxu0 0
        %2515 = vmatpush1.bf16.msra.mxu0 0
        %2516 = vmatprep.subr.bf16.mxu0 0
        %2517 = vmatpush1.bf16.msra.mxu0 0
        %2518 = vmatprep.subr.bf16.mxu0 %v2502
        %2519 = vmatpush1.bf16.msra.mxu0 %v2499
        %2520 = vmatprep.subr.bf16.mxu0 0
        %2521 = vmatpush2.bf16.msra.mxu0 0
        %2522 = vmatprep.subr.bf16.mxu0 0
        %2523 = vmatpush2.bf16.msra.mxu0 0
        %2524 = vmatprep.subr.bf16.mxu0 0
        %2525 = vmatpush2.bf16.msra.mxu0 0
        %2526 = vmatprep.subr.bf16.mxu0 0
        %2527 = vmatpush2.bf16.msra.mxu0 0
        %2528 = vmatprep.subr.bf16.mxu0 0
        %2529 = vmatpush2.bf16.msra.mxu0 0
        %2530 = vmatprep.subr.bf16.mxu0 0
        %2531 = vmatpush2.bf16.msra.mxu0 0
        %2532 = vmatprep.subr.bf16.mxu0 0
        %2533 = vmatpush2.bf16.msra.mxu0 0
        %2534 = vmatprep.subr.bf16.mxu0 0
        %2535 = vmatpush2.bf16.msra.mxu0 0
        %2536 = vmatprep.mubr.bf16.mxu0 0
        %2537 = vmatmul.mubr.bf16.gmra.mxu0 %v2496
        %v2538 = vpop.f32.mrf.mxu0
        %v2539 = vadd.f32 0.0, %v2538
        %v2540 = vpop.f32.mrf.mxu0
        %v2541 = vadd.f32 0.0, %v2540
        %v2542 = vpop.f32.mrf.mxu0
        %v2543 = vpop.f32.mrf.mxu0
        %2544 = vdwg.mxu0
        %v2545 = vadd.f32 %v2483, %v2539
        %v2546 = vadd.f32 %v2484, %v2541
        %v2547 = vmul.bf16 %v2038, %v1070
        %v2548 = vmul.bf16 %v2035, %v1074
        %v2549 = vmul.bf16 %v2041, %v1072
        %s2550 = scalar_lea.vmem %s4, 104
        %v2551 = vld [vmem:[%s2550] sm:$0x7]
        %2555 = vrot.lane.b32.xlu0 %v2547, 94
        %v2556 = vpop.permute.xlu0 %2555
        %2557 = vrot.lane.b32.xlu0 %v2548, 94
        %v2558 = vpop.permute.xlu0 %2557
        %2559 = vrot.lane.b32.xlu0 %v2549, 94
        %v2560 = vpop.permute.xlu0 %2559
        %v2561 = vsel %vm1092, %v2556, %v2558
        %v2562 = vsel %vm1092, %v2558, %v2560
        %v2564 = vsel %vm497, %v2551, 0
        %v2567 = vsel %vm501, %v2561, 0
        %v2570 = vsel %vm501, %v2562, 0
        %2572 = vmatprep.subr.bf16.mxu0 0
        %2573 = vmatpush1.bf16.msra.mxu0 0
        %2574 = vmatprep.subr.bf16.mxu0 0
        %2575 = vmatpush1.bf16.msra.mxu0 0
        %2576 = vmatprep.subr.bf16.mxu0 0
        %2577 = vmatpush1.bf16.msra.mxu0 0
        %2578 = vmatprep.subr.bf16.mxu0 0
        %2579 = vmatpush1.bf16.msra.mxu0 0
        %2580 = vmatprep.subr.bf16.mxu0 0
        %2581 = vmatpush1.bf16.msra.mxu0 0
        %2582 = vmatprep.subr.bf16.mxu0 0
        %2583 = vmatpush1.bf16.msra.mxu0 0
        %2584 = vmatprep.subr.bf16.mxu0 0
        %2585 = vmatpush1.bf16.msra.mxu0 0
        %2586 = vmatprep.subr.bf16.mxu0 %v2570
        %2587 = vmatpush1.bf16.msra.mxu0 %v2567
        %2588 = vmatprep.subr.bf16.mxu0 0
        %2589 = vmatpush2.bf16.msra.mxu0 0
        %2590 = vmatprep.subr.bf16.mxu0 0
        %2591 = vmatpush2.bf16.msra.mxu0 0
        %2592 = vmatprep.subr.bf16.mxu0 0
        %2593 = vmatpush2.bf16.msra.mxu0 0
        %2594 = vmatprep.subr.bf16.mxu0 0
        %2595 = vmatpush2.bf16.msra.mxu0 0
        %2596 = vmatprep.subr.bf16.mxu0 0
        %2597 = vmatpush2.bf16.msra.mxu0 0
        %2598 = vmatprep.subr.bf16.mxu0 0
        %2599 = vmatpush2.bf16.msra.mxu0 0
        %2600 = vmatprep.subr.bf16.mxu0 0
        %2601 = vmatpush2.bf16.msra.mxu0 0
        %2602 = vmatprep.subr.bf16.mxu0 0
        %2603 = vmatpush2.bf16.msra.mxu0 0
        %2604 = vmatprep.mubr.bf16.mxu0 0
        %2605 = vmatmul.mubr.bf16.gmra.mxu0 %v2564
        %v2606 = vpop.f32.mrf.mxu0
        %v2607 = vadd.f32 0.0, %v2606
        %v2608 = vpop.f32.mrf.mxu0
        %v2609 = vadd.f32 0.0, %v2608
        %v2610 = vpop.f32.mrf.mxu0
        %v2611 = vpop.f32.mrf.mxu0
        %2612 = vdwg.mxu0
        %v2613 = vadd.f32 %v2545, %v2607
        %v2614 = vadd.f32 %v2546, %v2609
        %s2615 = scalar_lea.vmem %s5, 16
        %v2616 = vld [vmem:[%s2615] sm:$0x3f]
        %2618 = vset.pattern.permute.xlu0 0
        %2619 = vperm.xlu0 %2618, %v2616
        %v2620 = vpop.permute.xlu0 %2619
        %v2622 = vadd.f32 %v2613, %v2620
        %v2623 = vadd.f32 %v2614, %v2620
        %v2624 = vmax.f32 %v2622, 0.0
        %v2625 = vmax.f32 %v2623, 0.0
        %s2626 = scalar_lea.vmem %s6, 64
        %v2627 = vld [vmem:[%s2626] sm:$0xf]
        %v2628 = vld [vmem:[%s2626 + $0x4] sm:$0xf]
        %v2629 = vld [vmem:[%s2626 + $0x8] sm:$0xf]
        %v2630 = vld [vmem:[%s2626 + $0xc] sm:$0xf]
        %v2631 = vld [vmem:[%s2626 + $0x10] sm:$0xf]
        %v2632 = vld [vmem:[%s2626 + $0x14] sm:$0xf]
        %v2633 = vld [vmem:[%s2626 + $0x18] sm:$0xf]
        %v2634 = vld [vmem:[%s2626 + $0x1c] sm:$0xf]
        %v2635 = vpack.c.bf16 %v2624, %v2624
        %v2636 = vpack.c.bf16 %v2625, %v2625
        %v2645 = vunpack.c.l.b16 %v2627
        %v2646 = vunpack.c.l.b16 %v2628
        %v2647 = vunpack.c.l.b16 %v2629
        %v2648 = vunpack.c.l.b16 %v2630
        %v2649 = vunpack.c.l.b16 %v2631
        %v2650 = vunpack.c.l.b16 %v2632
        %v2651 = vunpack.c.l.b16 %v2633
        %v2652 = vunpack.c.l.b16 %v2634
        %v2653 = vpack.c.b16 %v2646, %v2645
        %v2654 = vpack.c.b16 %v2648, %v2647
        %v2655 = vpack.c.b16 %v2650, %v2649
        %v2656 = vpack.c.b16 %v2652, %v2651
        %v2658 = vsel %vm497, %v2653, 0
        %v2661 = vsel %vm497, %v2654, 0
        %v2664 = vsel %vm497, %v2655, 0
        %v2667 = vsel %vm497, %v2656, 0
        %v2670 = vsel %vm501, %v2635, 0
        %v2673 = vsel %vm501, %v2636, 0
        %2675 = vmatprep.subr.bf16.mxu0 0
        %2676 = vmatpush1.bf16.msra.mxu0 0
        %2677 = vmatprep.subr.bf16.mxu0 0
        %2678 = vmatpush1.bf16.msra.mxu0 0
        %2679 = vmatprep.subr.bf16.mxu0 0
        %2680 = vmatpush1.bf16.msra.mxu0 0
        %2681 = vmatprep.subr.bf16.mxu0 0
        %2682 = vmatpush1.bf16.msra.mxu0 0
        %2683 = vmatprep.subr.bf16.mxu0 0
        %2684 = vmatpush1.bf16.msra.mxu0 0
        %2685 = vmatprep.subr.bf16.mxu0 0
        %2686 = vmatpush1.bf16.msra.mxu0 0
        %2687 = vmatprep.subr.bf16.mxu0 0
        %2688 = vmatpush1.bf16.msra.mxu0 0
        %2689 = vmatprep.subr.bf16.mxu0 %v2673
        %2690 = vmatpush1.bf16.msra.mxu0 %v2670
        %2691 = vmatprep.subr.bf16.mxu0 0
        %2692 = vmatpush2.bf16.msra.mxu0 0
        %2693 = vmatprep.subr.bf16.mxu0 0
        %2694 = vmatpush2.bf16.msra.mxu0 0
        %2695 = vmatprep.subr.bf16.mxu0 0
        %2696 = vmatpush2.bf16.msra.mxu0 0
        %2697 = vmatprep.subr.bf16.mxu0 0
        %2698 = vmatpush2.bf16.msra.mxu0 0
        %2699 = vmatprep.subr.bf16.mxu0 0
        %2700 = vmatpush2.bf16.msra.mxu0 0
        %2701 = vmatprep.subr.bf16.mxu0 0
        %2702 = vmatpush2.bf16.msra.mxu0 0
        %2703 = vmatprep.subr.bf16.mxu0 0
        %2704 = vmatpush2.bf16.msra.mxu0 0
        %2705 = vmatprep.subr.bf16.mxu0 0
        %2706 = vmatpush2.bf16.msra.mxu0 0
        %2707 = vmatprep.mubr.bf16.mxu0 0
        %2708 = vmatmul.mubr.bf16.gmra.mxu0 %v2658
        %v2709 = vpop.f32.mrf.mxu0
        %v2710 = vadd.f32 0.0, %v2709
        %v2711 = vpop.f32.mrf.mxu0
        %v2712 = vadd.f32 0.0, %v2711
        %v2713 = vpop.f32.mrf.mxu0
        %v2714 = vadd.f32 0.0, %v2713
        %v2715 = vpop.f32.mrf.mxu0
        %v2716 = vadd.f32 0.0, %v2715
        %2717 = vmatprep.mubr.bf16.mxu0 0
        %2718 = vmatmul.mubr.bf16.gmra.mxu0 %v2661
        %v2719 = vpop.f32.mrf.mxu0
        %v2720 = vadd.f32 0.0, %v2719
        %v2721 = vpop.f32.mrf.mxu0
        %v2722 = vadd.f32 0.0, %v2721
        %v2723 = vpop.f32.mrf.mxu0
        %v2724 = vadd.f32 0.0, %v2723
        %v2725 = vpop.f32.mrf.mxu0
        %v2726 = vadd.f32 0.0, %v2725
        %2727 = vmatprep.mubr.bf16.mxu0 0
        %2728 = vmatmul.mubr.bf16.gmra.mxu0 %v2664
        %v2729 = vpop.f32.mrf.mxu0
        %v2730 = vadd.f32 0.0, %v2729
        %v2731 = vpop.f32.mrf.mxu0
        %v2732 = vadd.f32 0.0, %v2731
        %v2733 = vpop.f32.mrf.mxu0
        %v2734 = vadd.f32 0.0, %v2733
        %v2735 = vpop.f32.mrf.mxu0
        %v2736 = vadd.f32 0.0, %v2735
        %2737 = vmatprep.mubr.bf16.mxu0 0
        %2738 = vmatmul.mubr.bf16.gmra.mxu0 %v2667
        %v2739 = vpop.f32.mrf.mxu0
        %v2740 = vadd.f32 0.0, %v2739
        %v2741 = vpop.f32.mrf.mxu0
        %v2742 = vadd.f32 0.0, %v2741
        %v2743 = vpop.f32.mrf.mxu0
        %v2744 = vadd.f32 0.0, %v2743
        %v2745 = vpop.f32.mrf.mxu0
        %v2746 = vadd.f32 0.0, %v2745
        %2747 = vdwg.mxu0
        %v2748 = vadd.f32 %v1976, %v2710
        %v2749 = vadd.f32 %v1978, %v2712
        %v2750 = vadd.f32 %v1980, %v2714
        %v2751 = vadd.f32 %v1982, %v2716
        %v2752 = vadd.f32 %v1986, %v2720
        %v2753 = vadd.f32 %v1988, %v2722
        %v2754 = vadd.f32 %v1990, %v2724
        %v2755 = vadd.f32 %v1992, %v2726
        %v2756 = vadd.f32 %v1996, %v2730
        %v2757 = vadd.f32 %v1998, %v2732
        %v2758 = vadd.f32 %v2000, %v2734
        %v2759 = vadd.f32 %v2002, %v2736
        %v2760 = vadd.f32 %v2006, %v2740
        %v2761 = vadd.f32 %v2008, %v2742
        %v2762 = vadd.f32 %v2010, %v2744
        %v2763 = vadd.f32 %v2012, %v2746
        %s2764 = scalar_lea.vmem %s6, 96
        %v2765 = vld [vmem:[%s2764] sm:$0xf]
        %v2766 = vld [vmem:[%s2764 + $0x4] sm:$0xf]
        %v2767 = vld [vmem:[%s2764 + $0x8] sm:$0xf]
        %v2768 = vld [vmem:[%s2764 + $0xc] sm:$0xf]
        %v2769 = vld [vmem:[%s2764 + $0x10] sm:$0xf]
        %v2770 = vld [vmem:[%s2764 + $0x14] sm:$0xf]
        %v2771 = vld [vmem:[%s2764 + $0x18] sm:$0xf]
        %v2772 = vld [vmem:[%s2764 + $0x1c] sm:$0xf]
        %v2773 = vpack.c.bf16 %v423, %v423
        %v2774 = vpack.c.bf16 %v424, %v424
        %v2783 = vunpack.c.l.b16 %v2765
        %v2784 = vunpack.c.l.b16 %v2766
        %v2785 = vunpack.c.l.b16 %v2767
        %v2786 = vunpack.c.l.b16 %v2768
        %v2787 = vunpack.c.l.b16 %v2769
        %v2788 = vunpack.c.l.b16 %v2770
        %v2789 = vunpack.c.l.b16 %v2771
        %v2790 = vunpack.c.l.b16 %v2772
        %v2791 = vpack.c.b16 %v2784, %v2783
        %v2792 = vpack.c.b16 %v2786, %v2785
        %v2793 = vpack.c.b16 %v2788, %v2787
        %v2794 = vpack.c.b16 %v2790, %v2789
        %v2797 = vrot.slane %v2773, 1
        %v2798 = vrot.slane %v2774, 1
        %v2800 = vsel %vm497, %v2791, 0
        %v2803 = vsel %vm497, %v2792, 0
        %v2806 = vsel %vm497, %v2793, 0
        %v2809 = vsel %vm497, %v2794, 0
        %v2812 = vsel %vm501, %v2797, 0
        %v2815 = vsel %vm501, %v2798, 0
        %2817 = vmatprep.subr.bf16.mxu0 0
        %2818 = vmatpush1.bf16.msra.mxu0 0
        %2819 = vmatprep.subr.bf16.mxu0 0
        %2820 = vmatpush1.bf16.msra.mxu0 0
        %2821 = vmatprep.subr.bf16.mxu0 0
        %2822 = vmatpush1.bf16.msra.mxu0 0
        %2823 = vmatprep.subr.bf16.mxu0 0
        %2824 = vmatpush1.bf16.msra.mxu0 0
        %2825 = vmatprep.subr.bf16.mxu0 0
        %2826 = vmatpush1.bf16.msra.mxu0 0
        %2827 = vmatprep.subr.bf16.mxu0 0
        %2828 = vmatpush1.bf16.msra.mxu0 0
        %2829 = vmatprep.subr.bf16.mxu0 0
        %2830 = vmatpush1.bf16.msra.mxu0 0
        %2831 = vmatprep.subr.bf16.mxu0 %v2815
        %2832 = vmatpush1.bf16.msra.mxu0 %v2812
        %2833 = vmatprep.subr.bf16.mxu0 0
        %2834 = vmatpush2.bf16.msra.mxu0 0
        %2835 = vmatprep.subr.bf16.mxu0 0
        %2836 = vmatpush2.bf16.msra.mxu0 0
        %2837 = vmatprep.subr.bf16.mxu0 0
        %2838 = vmatpush2.bf16.msra.mxu0 0
        %2839 = vmatprep.subr.bf16.mxu0 0
        %2840 = vmatpush2.bf16.msra.mxu0 0
        %2841 = vmatprep.subr.bf16.mxu0 0
        %2842 = vmatpush2.bf16.msra.mxu0 0
        %2843 = vmatprep.subr.bf16.mxu0 0
        %2844 = vmatpush2.bf16.msra.mxu0 0
        %2845 = vmatprep.subr.bf16.mxu0 0
        %2846 = vmatpush2.bf16.msra.mxu0 0
        %2847 = vmatprep.subr.bf16.mxu0 0
        %2848 = vmatpush2.bf16.msra.mxu0 0
        %2849 = vmatprep.mubr.bf16.mxu0 0
        %2850 = vmatmul.mubr.bf16.gmra.mxu0 %v2800
        %v2851 = vpop.f32.mrf.mxu0
        %v2852 = vadd.f32 0.0, %v2851
        %v2853 = vpop.f32.mrf.mxu0
        %v2854 = vadd.f32 0.0, %v2853
        %v2855 = vpop.f32.mrf.mxu0
        %v2856 = vadd.f32 0.0, %v2855
        %v2857 = vpop.f32.mrf.mxu0
        %v2858 = vadd.f32 0.0, %v2857
        %2859 = vmatprep.mubr.bf16.mxu0 0
        %2860 = vmatmul.mubr.bf16.gmra.mxu0 %v2803
        %v2861 = vpop.f32.mrf.mxu0
        %v2862 = vadd.f32 0.0, %v2861
        %v2863 = vpop.f32.mrf.mxu0
        %v2864 = vadd.f32 0.0, %v2863
        %v2865 = vpop.f32.mrf.mxu0
        %v2866 = vadd.f32 0.0, %v2865
        %v2867 = vpop.f32.mrf.mxu0
        %v2868 = vadd.f32 0.0, %v2867
        %2869 = vmatprep.mubr.bf16.mxu0 0
        %2870 = vmatmul.mubr.bf16.gmra.mxu0 %v2806
        %v2871 = vpop.f32.mrf.mxu0
        %v2872 = vadd.f32 0.0, %v2871
        %v2873 = vpop.f32.mrf.mxu0
        %v2874 = vadd.f32 0.0, %v2873
        %v2875 = vpop.f32.mrf.mxu0
        %v2876 = vadd.f32 0.0, %v2875
        %v2877 = vpop.f32.mrf.mxu0
        %v2878 = vadd.f32 0.0, %v2877
        %2879 = vmatprep.mubr.bf16.mxu0 0
        %2880 = vmatmul.mubr.bf16.gmra.mxu0 %v2809
        %v2881 = vpop.f32.mrf.mxu0
        %v2882 = vadd.f32 0.0, %v2881
        %v2883 = vpop.f32.mrf.mxu0
        %v2884 = vadd.f32 0.0, %v2883
        %v2885 = vpop.f32.mrf.mxu0
        %v2886 = vadd.f32 0.0, %v2885
        %v2887 = vpop.f32.mrf.mxu0
        %v2888 = vadd.f32 0.0, %v2887
        %2889 = vdwg.mxu0
        %v2890 = vadd.f32 %v2748, %v2852
        %v2891 = vadd.f32 %v2749, %v2854
        %v2892 = vadd.f32 %v2750, %v2856
        %v2893 = vadd.f32 %v2751, %v2858
        %v2894 = vadd.f32 %v2752, %v2862
        %v2895 = vadd.f32 %v2753, %v2864
        %v2896 = vadd.f32 %v2754, %v2866
        %v2897 = vadd.f32 %v2755, %v2868
        %v2898 = vadd.f32 %v2756, %v2872
        %v2899 = vadd.f32 %v2757, %v2874
        %v2900 = vadd.f32 %v2758, %v2876
        %v2901 = vadd.f32 %v2759, %v2878
        %v2902 = vadd.f32 %v2760, %v2882
        %v2903 = vadd.f32 %v2761, %v2884
        %v2904 = vadd.f32 %v2762, %v2886
        %v2905 = vadd.f32 %v2763, %v2888
        %v2906 = vld [vmem:[%s7] sm:$0xff]
        %v2907 = vld [vmem:[%s7 + $0x8] sm:$0xff]
        %v2908 = vld [vmem:[%s7 + $0x10] sm:$0xff]
        %v2909 = vld [vmem:[%s7 + $0x18] sm:$0xff]
        %v2910 = vld [vmem:[%s7 + $0x20] sm:$0xff]
        %v2911 = vld [vmem:[%s7 + $0x28] sm:$0xff]
        %v2912 = vld [vmem:[%s7 + $0x30] sm:$0xff]
        %v2913 = vld [vmem:[%s7 + $0x38] sm:$0xff]
        %2915 = vset.pattern.permute.xlu0 0
        %2916 = vperm.xlu0 %2915, %v2906
        %v2917 = vpop.permute.xlu0 %2916
        %2920 = vset.pattern.permute.xlu0 0
        %2921 = vperm.xlu0 %2920, %v2907
        %v2922 = vpop.permute.xlu0 %2921
        %2925 = vset.pattern.permute.xlu0 0
        %2926 = vperm.xlu0 %2925, %v2908
        %v2927 = vpop.permute.xlu0 %2926
        %2930 = vset.pattern.permute.xlu0 0
        %2931 = vperm.xlu0 %2930, %v2909
        %v2932 = vpop.permute.xlu0 %2931
        %2935 = vset.pattern.permute.xlu0 0
        %2936 = vperm.xlu0 %2935, %v2910
        %v2937 = vpop.permute.xlu0 %2936
        %2940 = vset.pattern.permute.xlu0 0
        %2941 = vperm.xlu0 %2940, %v2911
        %v2942 = vpop.permute.xlu0 %2941
        %2945 = vset.pattern.permute.xlu0 0
        %2946 = vperm.xlu0 %2945, %v2912
        %v2947 = vpop.permute.xlu0 %2946
        %2950 = vset.pattern.permute.xlu0 0
        %2951 = vperm.xlu0 %2950, %v2913
        %v2952 = vpop.permute.xlu0 %2951
        %v2954 = vadd.f32 %v2890, %v2917
        %v2955 = vadd.f32 %v2891, %v2917
        %v2956 = vadd.f32 %v2892, %v2922
        %v2957 = vadd.f32 %v2893, %v2922
        %v2958 = vadd.f32 %v2894, %v2927
        %v2959 = vadd.f32 %v2895, %v2927
        %v2960 = vadd.f32 %v2896, %v2932
        %v2961 = vadd.f32 %v2897, %v2932
        %v2962 = vadd.f32 %v2898, %v2937
        %v2963 = vadd.f32 %v2899, %v2937
        %v2964 = vadd.f32 %v2900, %v2942
        %v2965 = vadd.f32 %v2901, %v2942
        %v2966 = vadd.f32 %v2902, %v2947
        %v2967 = vadd.f32 %v2903, %v2947
        %v2968 = vadd.f32 %v2904, %v2952
        %v2969 = vadd.f32 %v2905, %v2952
        %v2970 = vadd.f32 %v2954, %v305
        %v2971 = vadd.f32 %v2955, %v306
        %v2972 = vadd.f32 %v2956, %v307
        %v2973 = vadd.f32 %v2957, %v308
        %v2974 = vadd.f32 %v2958, %v309
        %v2975 = vadd.f32 %v2959, %v310
        %v2976 = vadd.f32 %v2960, %v311
        %v2977 = vadd.f32 %v2961, %v312
        %v2978 = vadd.f32 %v2962, %v313
        %v2979 = vadd.f32 %v2963, %v314
        %v2980 = vadd.f32 %v2964, %v315
        %v2981 = vadd.f32 %v2965, %v316
        %v2982 = vadd.f32 %v2966, %v317
        %v2983 = vadd.f32 %v2967, %v318
        %v2984 = vadd.f32 %v2968, %v319
        %v2985 = vadd.f32 %v2969, %v320
        %v2986 = vmax.f32 %v2970, 0.0
        %v2987 = vmax.f32 %v2971, 0.0
        %v2988 = vmax.f32 %v2972, 0.0
        %v2989 = vmax.f32 %v2973, 0.0
        %v2990 = vmax.f32 %v2974, 0.0
        %v2991 = vmax.f32 %v2975, 0.0
        %v2992 = vmax.f32 %v2976, 0.0
        %v2993 = vmax.f32 %v2977, 0.0
        %v2994 = vmax.f32 %v2978, 0.0
        %v2995 = vmax.f32 %v2979, 0.0
        %v2996 = vmax.f32 %v2980, 0.0
        %v2997 = vmax.f32 %v2981, 0.0
        %v2998 = vmax.f32 %v2982, 0.0
        %v2999 = vmax.f32 %v2983, 0.0
        %v3000 = vmax.f32 %v2984, 0.0
        %v3001 = vmax.f32 %v2985, 0.0
        %3002 = vst [vmem:[%s298] sm:$0xff] %v2986
        %3003 = vst [vmem:[%s298 + $0x8] sm:$0xff] %v2987
        %3004 = vst [vmem:[%s298 + $0x10] sm:$0xff] %v2988
        %3005 = vst [vmem:[%s298 + $0x18] sm:$0xff] %v2989
        %3006 = vst [vmem:[%s298 + $0x20] sm:$0xff] %v2990
        %3007 = vst [vmem:[%s298 + $0x28] sm:$0xff] %v2991
        %3008 = vst [vmem:[%s298 + $0x30] sm:$0xff] %v2992
        %3009 = vst [vmem:[%s298 + $0x38] sm:$0xff] %v2993
        %3010 = vst [vmem:[%s298 + $0x40] sm:$0xff] %v2994
        %3011 = vst [vmem:[%s298 + $0x48] sm:$0xff] %v2995
        %3012 = vst [vmem:[%s298 + $0x50] sm:$0xff] %v2996
        %3013 = vst [vmem:[%s298 + $0x58] sm:$0xff] %v2997
        %3014 = vst [vmem:[%s298 + $0x60] sm:$0xff] %v2998
        %3015 = vst [vmem:[%s298 + $0x68] sm:$0xff] %v2999
        %3016 = vst [vmem:[%s298 + $0x70] sm:$0xff] %v3000
        %3017 = vst [vmem:[%s298 + $0x78] sm:$0xff] %v3001
        %s3018 = sand.u32 %s203, 1
        %s3019 = scalar_lea.sflag [#allocation3], %s3018
        %s3020 = sand.u32 %s203, 1
        %s3021 = smul.addr %s3020, 128
        %s3022 = scalar_lea.vmem [#allocation2], %s3021
        // Predicated region
        $region53: #{tpu_custom_call.1} parent=51 // pred_check
          %p3023 = pneg %p213
        $region54: #{tpu_custom_call.1} parent=51 // pred_check_branch
          %3025 = sbr.rel (%p3023) target = $region56
        $region55: #{tpu_custom_call.1} parent=51 // pred_region
          %s3027 = ssub.s32 2048, 2048
          %3028 = vsyncadd %s3019, %s3027
          %s3029 = smul.addr %s22, 16
          %s3030 = smul.addr %s3029, 128
          %s3031 = scalar_lea.hbm %s8, %s3030
          %s3032 = sshll.u32 %s3022, 4
          %s3033 = int_to_ptr.vmem [resolvable:$true] %s3032
          %3038 = dma.vmem_to_hbm [thread:$0]  %s3033, 2048, %s3031, %s3019, 256, 256, 16
        $region56: #{tpu_custom_call.1} parent=51 // pred_fallthru
          _
      $region52: #{tpu_custom_call.1} parent=5 // pred_fallthru
        _
      %p3039 = scmp.le.s32.totalorder 2, %s17
      // Predicated region
      $region57: #{tpu_custom_call.1} parent=5 // pred_check
        %p3040 = pneg %p3039
      $region58: #{tpu_custom_call.1} parent=5 // pred_check_branch
        %3042 = sbr.rel (%p3040) target = $region60
      $region59: #{tpu_custom_call.1} parent=5 // pred_region
        %s3043 = ssub.s32 %s17, 2
        // Predicated region
        $region61: #{tpu_custom_call.1} parent=59 // pred_check
          %p3044 = pneg %p219
        $region62: #{tpu_custom_call.1} parent=59 // pred_check_branch
          %3046 = sbr.rel (%p3044) target = $region64
        $region63: #{tpu_custom_call.1} parent=59 // pred_region
          %s3047 = sand.u32 %s204, 1
          %s3048 = scalar_lea.sflag [#allocation3], %s3047
          %s3049 = sand.u32 %s204, 1
          %s3050 = smul.addr %s3049, 128
          %s3051 = scalar_lea.vmem [#allocation2], %s3050
          %3052 = dma.done %s3048, 2048
        $region64: #{tpu_custom_call.1} parent=59 // pred_fallthru
          _
      $region60: #{tpu_custom_call.1} parent=5 // pred_fallthru
        _
    $region6: #{tpu_custom_call.1} parent=1 // loop_footer
      %s21 = sadd.s32 1, %s17
    $region7: #{tpu_custom_call.1} parent=1 // loop_footer_branch
      %16 = sbr.rel target = $region3
    $region8: #{tpu_custom_call.1} parent=1 // loop_exit
      _
    %3053 = vsyncpa [#allocation3], 1
    %s3054 = scalar_lea.sflag [#allocation3], 1
    %3055 = vsyncpa %s3054, 1

</llo_original>
